<compile_context>
chip_gen: v5e
topology: v5e:2x2
jax: 0.10.0
libtpu: 0.0.40
codegen_flags: <defaults>
</compile_context>

<pallas_src>
import functools

import jax
import jax.numpy as jnp
from jax.experimental import pallas as pl
from jax.experimental.pallas import tpu as pltpu


# --------------------------- generation detection ---------------------------

def _detect_generation():
    kind = ""
    try:
        kind = jax.devices()[0].device_kind.lower()
    except Exception:
        pass
    is_v7 = ("v7" in kind) or ("tpu7" in kind)
    bf16_eup = ("v6" in kind) or is_v7          # bf16 EUP path on v6e / v7x only
    num_tc = 2 if is_v7 else 1                  # v7x: 2 TensorCores per chip
    try:
        vmem = int(pltpu.get_tpu_info().vmem_capacity_bytes) * 3 // 4
    except Exception:
        vmem = (48 if is_v7 else 100) * 1024 * 1024
    return kind, is_v7, bf16_eup, num_tc, vmem


_KIND, _IS_V7, _BF16_EUP, _NUM_TC, _VMEM_LIMIT = _detect_generation()
_EXP_DTYPE = jnp.bfloat16 if _BF16_EUP else jnp.float32


def _params(dimension_semantics):
    return pltpu.CompilerParams(
        dimension_semantics=dimension_semantics,
        vmem_limit_bytes=_VMEM_LIMIT,
    )


def _tile(dim, target, aligns):
    """Largest block size <= target that divides `dim` and is a multiple of one
    of `aligns` (tried in order); falls back to the full dimension."""
    if isinstance(aligns, int):
        aligns = (aligns,)
    if dim <= target:
        return dim
    for align in aligns:
        t = (target // align) * align
        while t >= align:
            if dim % t == 0:
                return t
            t -= align
    return dim


def _row_tile(m, target, align=16):
    """Row tile (sublane axis, bf16 -> 16-aligned).  On multi-TC chips (v7x)
    cap the tile so the row grid axis has extent >= num cores."""
    if _NUM_TC > 1:
        target = min(target, max(align, m // _NUM_TC))
    return _tile(m, target, (align,))


def _ln_f32(x, g, b, eps):
    mu = jnp.mean(x, axis=-1, keepdims=True)
    xc = x - mu
    var = jnp.mean(xc * xc, axis=-1, keepdims=True)
    return xc * jax.lax.rsqrt(var + eps) * g + b


# ----------------------------------------------------------------------------
# Kernel 1: tiled matmul + bias (+ optional GELU).
#   One-shot variant when the whole reduction fits one K tile (no accumulator
#   scratch, no "arbitrary" axis); multi-K variant with f32 VMEM accumulator
#   and pl.when init/finalize otherwise.
# ----------------------------------------------------------------------------
def _matmul_oneshot_kernel(x_ref, w_ref, b_ref, o_ref, *, activation):
    y = jnp.dot(x_ref[...], w_ref[...], preferred_element_type=jnp.float32)
    y = y + b_ref[...].astype(jnp.float32)
    if activation == "gelu":
        y = jax.nn.gelu(y, approximate=True)
    o_ref[...] = y.astype(o_ref.dtype)


def _matmul_kernel(x_ref, w_ref, b_ref, o_ref, acc_ref, *, activation):
    k = pl.program_id(2)

    @pl.when(k == 0)
    def _():
        acc_ref[...] = jnp.zeros_like(acc_ref)

    acc_ref[...] += jnp.dot(
        x_ref[...], w_ref[...], preferred_element_type=jnp.float32
    )

    @pl.when(k == pl.num_programs(2) - 1)
    def _():
        y = acc_ref[...] + b_ref[...].astype(jnp.float32)
        if activation == "gelu":
            y = jax.nn.gelu(y, approximate=True)
        o_ref[...] = y.astype(o_ref.dtype)


def matmul(x, w, b, activation=None, out_dtype=None, tm=512, tn=512, tk=1024):
    M, K = x.shape
    N = w.shape[1]
    tm = _row_tile(M, tm)
    tn = _tile(N, tn, (256, 128))      # 256-multiples match the v6e/v7x MXU
    tk = _tile(K, tk, (256, 128))
    out_dtype = x.dtype if out_dtype is None else out_dtype
    b2d = b.reshape(1, N)

    if tk == K:
        kern = functools.partial(_matmul_oneshot_kernel, activation=activation)
        return pl.pallas_call(
            kern,
            out_shape=jax.ShapeDtypeStruct((M, N), out_dtype),
            grid_spec=pltpu.PrefetchScalarGridSpec(
                num_scalar_prefetch=0,
                grid=(M // tm, N // tn),
                in_specs=[
                    pl.BlockSpec((tm, K), lambda i, j: (i, 0)),
                    pl.BlockSpec((K, tn), lambda i, j: (0, j)),
                    pl.BlockSpec((1, tn), lambda i, j: (0, j)),
                ],
                out_specs=pl.BlockSpec((tm, tn), lambda i, j: (i, j)),
            ),
            compiler_params=_params(("parallel", "parallel")),
        )(x, w, b2d)

    kern = functools.partial(_matmul_kernel, activation=activation)
    return pl.pallas_call(
        kern,
        out_shape=jax.ShapeDtypeStruct((M, N), out_dtype),
        grid_spec=pltpu.PrefetchScalarGridSpec(
            num_scalar_prefetch=0,
            grid=(M // tm, N // tn, K // tk),
            in_specs=[
                pl.BlockSpec((tm, tk), lambda i, j, k: (i, k)),
                pl.BlockSpec((tk, tn), lambda i, j, k: (k, j)),
                pl.BlockSpec((1, tn), lambda i, j, k: (0, j)),
            ],
            out_specs=pl.BlockSpec((tm, tn), lambda i, j, k: (i, j)),
            scratch_shapes=[pltpu.VMEM((tm, tn), jnp.float32)],
        ),
        compiler_params=_params(("parallel", "parallel", "arbitrary")),
    )(x, w, b2d)


# ----------------------------------------------------------------------------
# Kernel 2: plain LayerNorm (embedding normalization), tiled over rows.
# ----------------------------------------------------------------------------
def _layernorm_kernel(x_ref, g_ref, b_ref, o_ref, *, eps):
    x = x_ref[...].astype(jnp.float32)
    y = _ln_f32(x, g_ref[...].astype(jnp.float32),
                b_ref[...].astype(jnp.float32), eps)
    o_ref[...] = y.astype(o_ref.dtype)


def layernorm(x, gamma, beta, eps=1e-12, tm=512):
    M, H = x.shape
    tm = _row_tile(M, tm)
    kern = functools.partial(_layernorm_kernel, eps=eps)
    return pl.pallas_call(
        kern,
        out_shape=jax.ShapeDtypeStruct((M, H), x.dtype),
        grid_spec=pltpu.PrefetchScalarGridSpec(
            num_scalar_prefetch=0,
            grid=(M // tm,),
            in_specs=[
                pl.BlockSpec((tm, H), lambda i: (i, 0)),
                pl.BlockSpec((1, H), lambda i: (0, 0)),
                pl.BlockSpec((1, H), lambda i: (0, 0)),
            ],
            out_specs=pl.BlockSpec((tm, H), lambda i: (i, 0)),
        ),
        compiler_params=_params(("parallel",)),
    )(x, gamma.reshape(1, H), beta.reshape(1, H))


# ----------------------------------------------------------------------------
# Kernel 3: flash-style attention  +  output projection + residual + LayerNorm.
#   grid = (batch, kv_blocks).  qkv is passed three times with different
#   column-block indices so each operand only carries the columns it reads:
#     Q: (S, H)   resident block, column block 0
#     K: (tkv, H) streamed block, column block 1
#     V: (tkv, H) streamed block, column block 2
#   Heads are split with static lane slices in-kernel; online softmax keeps
#   running max / denominator / accumulator per head in f32 VMEM scratch.
#   At the last kv step the attention context is projected with W_o,
#   bias + residual are added and LayerNorm is applied -- all without the
#   context activation ever leaving VMEM.
#   NOTE: the 1/sqrt(head_dim) scale is folded into W_q / b_q at init.
# ----------------------------------------------------------------------------
def _attention_kernel(q_ref, k_ref, v_ref, res_ref, wo_ref, bo_ref, g_ref, b_ref,
                      o_ref, m_ref, l_ref, acc_ref, *, nh, hd, eps, exp_dtype):
    ki = pl.program_id(1)

    @pl.when(ki == 0)
    def _():
        m_ref[...] = jnp.full_like(m_ref, -jnp.inf)
        l_ref[...] = jnp.zeros_like(l_ref)
        acc_ref[...] = jnp.zeros_like(acc_ref)

    for h in range(nh):  # static unroll over heads
        qh = q_ref[:, h * hd:(h + 1) * hd]        # [S,   hd] bf16 (pre-scaled)
        kh = k_ref[:, h * hd:(h + 1) * hd]        # [Tkv, hd] bf16
        vh = v_ref[:, h * hd:(h + 1) * hd]        # [Tkv, hd] bf16

        s = jnp.einsum("qd,kd->qk", qh, kh,
                       preferred_element_type=jnp.float32)          # [S, Tkv] f32

        m_prev = m_ref[h]                                            # [S, 1] f32
        m_new = jnp.maximum(m_prev, jnp.max(s, axis=-1, keepdims=True))
        alpha = jnp.exp(m_prev - m_new)                              # f32, tiny
        # exp of the big [S, Tkv] block: bf16 on v6e/v7x (bf16 EUP), f32 on v5e.
        p = jnp.exp((s - m_new).astype(exp_dtype))
        l_ref[h] = alpha * l_ref[h] + jnp.sum(
            p.astype(jnp.float32), axis=-1, keepdims=True)
        acc_ref[h] = alpha * acc_ref[h] + jnp.dot(
            p.astype(vh.dtype), vh, preferred_element_type=jnp.float32)
        m_ref[h] = m_new

    @pl.when(ki == pl.num_programs(1) - 1)
    def _():
        # Fused: output projection + bias + residual + LayerNorm.
        y = bo_ref[...].astype(jnp.float32) + res_ref[...].astype(jnp.float32)
        for h in range(nh):
            ctx_h = (acc_ref[h] *
                     pl.reciprocal(l_ref[h], approx=True)).astype(wo_ref.dtype)
            y = y + jnp.dot(ctx_h, wo_ref[h * hd:(h + 1) * hd, :],
                            preferred_element_type=jnp.float32)
        y = _ln_f32(y, g_ref[...].astype(jnp.float32),
                    b_ref[...].astype(jnp.float32), eps)
        o_ref[...] = y.astype(o_ref.dtype)


def attention_proj_layernorm(qkv, res, wo, bo, gamma, beta,
                             B, S, nh, hd, eps=1e-12, tkv=512):
    H = nh * hd
    tkv = _tile(S, tkv, (16,))
    n_kv = S // tkv
    kern = functools.partial(_attention_kernel, nh=nh, hd=hd, eps=eps,
                             exp_dtype=_EXP_DTYPE)
    return pl.pallas_call(
        kern,
        out_shape=jax.ShapeDtypeStruct((B * S, H), qkv.dtype),
        grid_spec=pltpu.PrefetchScalarGridSpec(
            num_scalar_prefetch=0,
            grid=(B, n_kv),
            in_specs=[
                # Q columns only, resident across the kv axis.
                pl.BlockSpec((S, H), lambda b, k: (b, 0)),
                # K columns, streamed tkv-row blocks of batch b.
                pl.BlockSpec((tkv, H), lambda b, k: (b * n_kv + k, 1)),
                # V columns, streamed tkv-row blocks of batch b.
                pl.BlockSpec((tkv, H), lambda b, k: (b * n_kv + k, 2)),
                # Residual (pre-attention hidden state) of batch b.
                pl.BlockSpec((S, H), lambda b, k: (b, 0)),
                # Output-projection weight / bias, LayerNorm gamma / beta.
                pl.BlockSpec((H, H), lambda b, k: (0, 0)),
                pl.BlockSpec((1, H), lambda b, k: (0, 0)),
                pl.BlockSpec((1, H), lambda b, k: (0, 0)),
                pl.BlockSpec((1, H), lambda b, k: (0, 0)),
            ],
            out_specs=pl.BlockSpec((S, H), lambda b, k: (b, 0)),
            scratch_shapes=[
                pltpu.VMEM((nh, S, 1), jnp.float32),    # running max
                pltpu.VMEM((nh, S, 1), jnp.float32),    # running denominator
                pltpu.VMEM((nh, S, hd), jnp.float32),   # running numerator
            ],
        ),
        compiler_params=_params(("parallel", "arbitrary")),
    )(qkv, qkv, qkv, res, wo,
      bo.reshape(1, H), gamma.reshape(1, H), beta.reshape(1, H))


# ----------------------------------------------------------------------------
# Kernel 4: FFN (w1 -> GELU -> w2) + residual add + LayerNorm, fused.
# ----------------------------------------------------------------------------
def _ffn_res_ln_kernel(x_ref, w1_ref, b1_ref, w2_ref, b2_ref, g_ref, bb_ref,
                       o_ref, *, eps):
    x = x_ref[...]
    h = jnp.dot(x, w1_ref[...], preferred_element_type=jnp.float32)
    h = jax.nn.gelu(h + b1_ref[...].astype(jnp.float32), approximate=True)
    ff = jnp.dot(h.astype(x.dtype), w2_ref[...],
                 preferred_element_type=jnp.float32)
    y = ff + b2_ref[...].astype(jnp.float32) + x.astype(jnp.float32)
    y = _ln_f32(y, g_ref[...].astype(jnp.float32),
                bb_ref[...].astype(jnp.float32), eps)
    o_ref[...] = y.astype(o_ref.dtype)


def ffn_residual_layernorm(x, w1, b1, w2, b2, gamma, beta, eps=1e-12, tm=512):
    M, H = x.shape
    I = w1.shape[1]
    tm = _row_tile(M, tm)
    kern = functools.partial(_ffn_res_ln_kernel, eps=eps)
    return pl.pallas_call(
        kern,
        out_shape=jax.ShapeDtypeStruct((M, H), x.dtype),
        grid_spec=pltpu.PrefetchScalarGridSpec(
            num_scalar_prefetch=0,
            grid=(M // tm,),
            in_specs=[
                pl.BlockSpec((tm, H), lambda i: (i, 0)),
                pl.BlockSpec((H, I), lambda i: (0, 0)),
                pl.BlockSpec((1, I), lambda i: (0, 0)),
                pl.BlockSpec((I, H), lambda i: (0, 0)),
                pl.BlockSpec((1, H), lambda i: (0, 0)),
                pl.BlockSpec((1, H), lambda i: (0, 0)),
                pl.BlockSpec((1, H), lambda i: (0, 0)),
            ],
            out_specs=pl.BlockSpec((tm, H), lambda i: (i, 0)),
        ),
        compiler_params=_params(("parallel",)),
    )(x, w1, b1.reshape(1, I), w2, b2.reshape(1, H),
      gamma.reshape(1, H), beta.reshape(1, H))


# --------------------------- model definition -------------------------------

class Config:
    vocab_size = 64
    max_position = 32
    hidden = 256          # stands in for embedding_dim = 768 at small scale
    num_heads = 2
    head_dim = 128
    intermediate = 512
    num_layers = 2
    num_classes = 3
    head_pad = 128        # lane-dense classifier output, sliced back outside
    batch = 2
    seq = 16


def init_params(key, cfg):
    bf16 = jnp.bfloat16

    def nrm(k, shape):
        return (0.02 * jax.random.normal(k, shape, dtype=jnp.float32)).astype(bf16)

    keys = iter(jax.random.split(key, 8 + 8 * cfg.num_layers))
    H, I = cfg.hidden, cfg.intermediate
    q_scale = 1.0 / float(cfg.head_dim) ** 0.5  # folded into W_q / b_q

    cls_w = nrm(next(keys), (H, cfg.num_classes))
    cls_w_pad = jnp.zeros((H, cfg.head_pad), bf16).at[:, :cfg.num_classes].set(cls_w)
    p = {
        "word_emb": nrm(next(keys), (cfg.vocab_size, H)),
        "pos_emb": nrm(next(keys), (cfg.max_position, H)),
        "type_emb": nrm(next(keys), (2, H)),
        "emb_ln_g": jnp.ones((H,), bf16),
        "emb_ln_b": jnp.zeros((H,), bf16),
        "cls_w": cls_w_pad,
        "cls_b": jnp.zeros((cfg.head_pad,), bf16),
        "layers": [],
    }
    for _ in range(cfg.num_layers):
        wq = nrm(next(keys), (H, H))
        wk = nrm(next(keys), (H, H))
        wv = nrm(next(keys), (H, H))
        # Fold the attention scale into the Q projection (weight + bias).
        wq = (wq.astype(jnp.float32) * q_scale).astype(bf16)
        layer = {
            # fused QKV weight [H, 3H] (q | k | v column blocks)
            "w_qkv": jnp.concatenate([wq, wk, wv], axis=1),
            "b_qkv": jnp.zeros((3 * H,), bf16),
            "wo": nrm(next(keys), (H, H)), "bo": jnp.zeros((H,), bf16),
            "ln1_g": jnp.ones((H,), bf16), "ln1_b": jnp.zeros((H,), bf16),
            "w1": nrm(next(keys), (H, I)), "b1": jnp.zeros((I,), bf16),
            "w2": nrm(next(keys), (I, H)), "b2": jnp.zeros((H,), bf16),
            "ln2_g": jnp.ones((H,), bf16), "ln2_b": jnp.zeros((H,), bf16),
        }
        p["layers"].append(layer)
    return p


def forward(params, tokens, cfg):
    B, S = tokens.shape
    H, nh, hd = cfg.hidden, cfg.num_heads, cfg.head_dim
    M = B * S

    # Embedding gather + sums are XLA glue; normalization runs in-kernel.
    emb = (
        params["word_emb"][tokens]
        + params["pos_emb"][None, :S, :]
        + params["type_emb"][0][None, None, :]
    ).reshape(M, H)
    x = layernorm(emb, params["emb_ln_g"], params["emb_ln_b"])

    for lyr in params["layers"]:
        # Fused QKV projection: single tiled matmul against [H, 3H].
        qkv = matmul(x, lyr["w_qkv"], lyr["b_qkv"])
        # Flash-style attention + output projection + residual + LayerNorm,
        # all in one kernel (ctx never round-trips through HBM).
        x = attention_proj_layernorm(qkv, x, lyr["wo"], lyr["bo"],
                                     lyr["ln1_g"], lyr["ln1_b"], B, S, nh, hd)
        # FFN + residual + LayerNorm (one kernel).
        x = ffn_residual_layernorm(x, lyr["w1"], lyr["b1"], lyr["w2"], lyr["b2"],
                                   lyr["ln2_g"], lyr["ln2_b"])

    # Classification head: lane-dense padded output, sliced back outside.
    logits = matmul(x, params["cls_w"], params["cls_b"], out_dtype=jnp.float32)
    return logits[:, :cfg.num_classes].reshape(B, S, cfg.num_classes)


if __name__ == "__main__":
    cfg = Config()
    key = jax.random.PRNGKey(0)
    k_params, k_tokens = jax.random.split(key)

    params = init_params(k_params, cfg)
    tokens = jax.random.randint(
        k_tokens, (cfg.batch, cfg.seq), 0, cfg.vocab_size, dtype=jnp.int32
    )

    fwd = jax.jit(functools.partial(forward, cfg=cfg))
    preds = fwd(params, tokens)
    jax.block_until_ready(preds)
    assert preds.shape == (cfg.batch, cfg.seq, cfg.num_classes)
    assert bool(jnp.isfinite(preds).all())
    print("KERNEL_OK")
</pallas_src>

<mosaic_0001>
module attributes {stable_mosaic.version = 11 : i64} {
  func.func @_layernorm_kernel(%arg0: i32, %arg1: memref<32x256xbf16, #tpu.memory_space<vmem>>, %arg2: memref<1x256xbf16, #tpu.memory_space<vmem>>, %arg3: memref<1x256xbf16, #tpu.memory_space<vmem>>, %arg4: memref<32x256xbf16, #tpu.memory_space<vmem>>) attributes {dimension_semantics = [#tpu.dimension_semantics<parallel>], iteration_bounds = array<i64: 1>, scalar_prefetch = 0 : i64, scratch_operands = 0 : i64, tpu.core_type = #tpu.core_type<tc>, window_params = [{transform_indices = @transform_0, window_bounds = array<i64: 32, 256>}, {pipeline_mode = #tpu.pipeline_mode<synchronous>, transform_indices = @transform_1, window_bounds = array<i64: 1, 256>}, {pipeline_mode = #tpu.pipeline_mode<synchronous>, transform_indices = @transform_2, window_bounds = array<i64: 1, 256>}, {transform_indices = @transform_3, window_bounds = array<i64: 32, 256>}]} {
    %c0 = arith.constant 0 : index
    %c0_0 = arith.constant 0 : index
    %0 = vector.load %arg1[%c0, %c0_0] : memref<32x256xbf16, #tpu.memory_space<vmem>>, vector<32x256xbf16>
    %1 = arith.extf %0 : vector<32x256xbf16> to vector<32x256xf32>
    %c0_1 = arith.constant 0 : index
    %c0_2 = arith.constant 0 : index
    %2 = vector.load %arg2[%c0_1, %c0_2] : memref<1x256xbf16, #tpu.memory_space<vmem>>, vector<1x256xbf16>
    %3 = arith.extf %2 : vector<1x256xbf16> to vector<1x256xf32>
    %c0_3 = arith.constant 0 : index
    %c0_4 = arith.constant 0 : index
    %4 = vector.load %arg3[%c0_3, %c0_4] : memref<1x256xbf16, #tpu.memory_space<vmem>>, vector<1x256xbf16>
    %5 = arith.extf %4 : vector<1x256xbf16> to vector<1x256xf32>
    %cst = arith.constant dense<0.000000e+00> : vector<32xf32>
    %6 = vector.multi_reduction <add>, %1, %cst [1] : vector<32x256xf32> to vector<32xf32>
    %7 = vector.shape_cast %6 : vector<32xf32> to vector<32x1xf32>
    %cst_5 = arith.constant 2.560000e+02 : f32
    %8 = vector.broadcast %cst_5 : f32 to vector<32x1xf32>
    %9 = arith.divf %7, %8 : vector<32x1xf32>
    %10 = vector.broadcast %9 : vector<32x1xf32> to vector<32x256xf32>
    %11 = arith.subf %1, %10 : vector<32x256xf32>
    %12 = arith.mulf %11, %11 : vector<32x256xf32>
    %cst_6 = arith.constant dense<0.000000e+00> : vector<32xf32>
    %13 = vector.multi_reduction <add>, %12, %cst_6 [1] : vector<32x256xf32> to vector<32xf32>
    %14 = vector.shape_cast %13 : vector<32xf32> to vector<32x1xf32>
    %cst_7 = arith.constant 2.560000e+02 : f32
    %15 = vector.broadcast %cst_7 : f32 to vector<32x1xf32>
    %16 = arith.divf %14, %15 : vector<32x1xf32>
    %cst_8 = arith.constant 9.99999996E-13 : f32
    %17 = vector.broadcast %cst_8 : f32 to vector<32x1xf32>
    %18 = arith.addf %16, %17 : vector<32x1xf32>
    %19 = math.rsqrt %18 : vector<32x1xf32>
    %20 = vector.broadcast %19 : vector<32x1xf32> to vector<32x256xf32>
    %21 = arith.mulf %11, %20 : vector<32x256xf32>
    %22 = vector.broadcast %3 : vector<1x256xf32> to vector<32x256xf32>
    %23 = arith.mulf %21, %22 : vector<32x256xf32>
    %24 = vector.broadcast %5 : vector<1x256xf32> to vector<32x256xf32>
    %25 = arith.addf %23, %24 : vector<32x256xf32>
    %26 = arith.truncf %25 : vector<32x256xf32> to vector<32x256xbf16>
    %c0_9 = arith.constant 0 : index
    %c0_10 = arith.constant 0 : index
    %27 = vector.load %arg4[%c0_9, %c0_10] : memref<32x256xbf16, #tpu.memory_space<vmem>>, vector<32x256xbf16>
    tpu.vector_store %arg4[%c0_9, %c0_10], %26 {strides = array<i32>} : memref<32x256xbf16, #tpu.memory_space<vmem>>, vector<32x256xbf16>,
    return
  }
  func.func @transform_0(%arg0: i32) -> (i32, i32) {
    %c0_i32 = arith.constant 0 : i32
    %c0_i32_0 = arith.constant 0 : i32
    return %arg0, %c0_i32 : i32, i32
  }
  func.func @transform_1(%arg0: i32) -> (i32, i32) {
    %c0_i32 = arith.constant 0 : i32
    %c0_i32_0 = arith.constant 0 : i32
    %c0_i32_1 = arith.constant 0 : i32
    return %c0_i32, %c0_i32_0 : i32, i32
  }
  func.func @transform_2(%arg0: i32) -> (i32, i32) {
    %c0_i32 = arith.constant 0 : i32
    %c0_i32_0 = arith.constant 0 : i32
    %c0_i32_1 = arith.constant 0 : i32
    return %c0_i32, %c0_i32_0 : i32, i32
  }
  func.func @transform_3(%arg0: i32) -> (i32, i32) {
    %c0_i32 = arith.constant 0 : i32
    %c0_i32_0 = arith.constant 0 : i32
    return %arg0, %c0_i32 : i32, i32
  }
}

module attributes {stable_mosaic.version = 11 : i64} {
  func.func @_attention_kernel(%arg0: i32, %arg1: i32, %arg2: memref<16x256xbf16, #tpu.memory_space<vmem>>, %arg3: memref<16x256xbf16, #tpu.memory_space<vmem>>, %arg4: memref<16x256xbf16, #tpu.memory_space<vmem>>, %arg5: memref<16x256xbf16, #tpu.memory_space<vmem>>, %arg6: memref<256x256xbf16, #tpu.memory_space<vmem>>, %arg7: memref<1x256xbf16, #tpu.memory_space<vmem>>, %arg8: memref<1x256xbf16, #tpu.memory_space<vmem>>, %arg9: memref<1x256xbf16, #tpu.memory_space<vmem>>, %arg10: memref<16x256xbf16, #tpu.memory_space<vmem>>, %arg11: memref<2x16x1xf32, #tpu.memory_space<vmem>>, %arg12: memref<2x16x1xf32, #tpu.memory_space<vmem>>, %arg13: memref<2x16x128xf32, #tpu.memory_space<vmem>>) attributes {dimension_semantics = [#tpu.dimension_semantics<parallel>, #tpu.dimension_semantics<arbitrary>], iteration_bounds = array<i64: 2, 1>, scalar_prefetch = 0 : i64, scratch_operands = 3 : i64, tpu.core_type = #tpu.core_type<tc>, window_params = [{transform_indices = @transform_0, window_bounds = array<i64: 16, 256>}, {transform_indices = @transform_1, window_bounds = array<i64: 16, 256>}, {transform_indices = @transform_2, window_bounds = array<i64: 16, 256>}, {transform_indices = @transform_3, window_bounds = array<i64: 16, 256>}, {pipeline_mode = #tpu.pipeline_mode<synchronous>, transform_indices = @transform_4, window_bounds = array<i64: 256, 256>}, {pipeline_mode = #tpu.pipeline_mode<synchronous>, transform_indices = @transform_5, window_bounds = array<i64: 1, 256>}, {pipeline_mode = #tpu.pipeline_mode<synchronous>, transform_indices = @transform_6, window_bounds = array<i64: 1, 256>}, {pipeline_mode = #tpu.pipeline_mode<synchronous>, transform_indices = @transform_7, window_bounds = array<i64: 1, 256>}, {transform_indices = @transform_8, window_bounds = array<i64: 16, 256>}]} {
    %c0_i32 = arith.constant 0 : i32
    %0 = arith.cmpi eq, %arg1, %c0_i32 : i32
    %1 = arith.extui %0 : i1 to i32
    %c0_i32_0 = arith.constant 0 : i32
    %2 = arith.cmpi ne, %1, %c0_i32_0 : i32
    scf.if %2 {
      %cst_55 = arith.constant 0xFF800000 : f32
      %78 = vector.broadcast %cst_55 : f32 to vector<2x16x1xf32>
      %c0_56 = arith.constant 0 : index
      %c0_57 = arith.constant 0 : index
      %c0_58 = arith.constant 0 : index
      %79 = vector.load %arg11[%c0_56, %c0_57, %c0_58] : memref<2x16x1xf32, #tpu.memory_space<vmem>>, vector<2x16x1xf32>
      tpu.vector_store %arg11[%c0_56, %c0_57, %c0_58], %78 {strides = array<i32>} : memref<2x16x1xf32, #tpu.memory_space<vmem>>, vector<2x16x1xf32>,
      %cst_59 = arith.constant 0.000000e+00 : f32
      %80 = vector.broadcast %cst_59 : f32 to vector<2x16x1xf32>
      %c0_60 = arith.constant 0 : index
      %c0_61 = arith.constant 0 : index
      %c0_62 = arith.constant 0 : index
      %81 = vector.load %arg12[%c0_60, %c0_61, %c0_62] : memref<2x16x1xf32, #tpu.memory_space<vmem>>, vector<2x16x1xf32>
      tpu.vector_store %arg12[%c0_60, %c0_61, %c0_62], %80 {strides = array<i32>} : memref<2x16x1xf32, #tpu.memory_space<vmem>>, vector<2x16x1xf32>,
      %cst_63 = arith.constant 0.000000e+00 : f32
      %82 = vector.broadcast %cst_63 : f32 to vector<2x16x128xf32>
      %c0_64 = arith.constant 0 : index
      %c0_65 = arith.constant 0 : index
      %c0_66 = arith.constant 0 : index
      %83 = vector.load %arg13[%c0_64, %c0_65, %c0_66] : memref<2x16x128xf32, #tpu.memory_space<vmem>>, vector<2x16x128xf32>
      tpu.vector_store %arg13[%c0_64, %c0_65, %c0_66], %82 {strides = array<i32>} : memref<2x16x128xf32, #tpu.memory_space<vmem>>, vector<2x16x128xf32>,
    } else {
    }
    %c0 = arith.constant 0 : index
    %c0_1 = arith.constant 0 : index
    %3 = vector.load %arg2[%c0, %c0_1] : memref<16x256xbf16, #tpu.memory_space<vmem>>, vector<16x128xbf16>
    %c0_2 = arith.constant 0 : index
    %c0_3 = arith.constant 0 : index
    %4 = vector.load %arg3[%c0_2, %c0_3] : memref<16x256xbf16, #tpu.memory_space<vmem>>, vector<16x128xbf16>
    %c0_4 = arith.constant 0 : index
    %c0_5 = arith.constant 0 : index
    %5 = vector.load %arg4[%c0_4, %c0_5] : memref<16x256xbf16, #tpu.memory_space<vmem>>, vector<16x128xbf16>
    "tpu.trace_start"() <{level = 10 : i32, message = "qd,kd->qk"}> : () -> ()
    %cst = arith.constant dense<0.000000e+00> : vector<16x16xf32>
    %6 = tpu.matmul %3, %4, %cst {dimension_numbers = #tpu.dot_dimension_numbers<[1], [1], [0], [0], [0, 0, 1, 0], [], []>} : vector<16x128xbf16>, vector<16x128xbf16>, vector<16x16xf32> -> vector<16x16xf32>
    "tpu.trace_stop"() : () -> ()
    %c0_6 = arith.constant 0 : index
    %c0_7 = arith.constant 0 : index
    %c0_8 = arith.constant 0 : index
    %7 = vector.load %arg11[%c0_6, %c0_7, %c0_8] : memref<2x16x1xf32, #tpu.memory_space<vmem>>, vector<1x16x1xf32>
    %8 = vector.shape_cast %7 : vector<1x16x1xf32> to vector<16x1xf32>
    %cst_9 = arith.constant dense<0xFF800000> : vector<16xf32>
    %9 = vector.multi_reduction <maximumf>, %6, %cst_9 [1] : vector<16x16xf32> to vector<16xf32>
    %10 = vector.shape_cast %9 : vector<16xf32> to vector<16x1xf32>
    %11 = arith.maximumf %8, %10 : vector<16x1xf32>
    %12 = arith.subf %8, %11 : vector<16x1xf32>
    %13 = math.exp %12 : vector<16x1xf32>
    %14 = vector.broadcast %11 : vector<16x1xf32> to vector<16x16xf32>
    %15 = arith.subf %6, %14 : vector<16x16xf32>
    %16 = math.exp %15 : vector<16x16xf32>
    %c0_10 = arith.constant 0 : index
    %c0_11 = arith.constant 0 : index
    %c0_12 = arith.constant 0 : index
    %17 = vector.load %arg12[%c0_10, %c0_11, %c0_12] : memref<2x16x1xf32, #tpu.memory_space<vmem>>, vector<1x16x1xf32>
    %18 = vector.shape_cast %17 : vector<1x16x1xf32> to vector<16x1xf32>
    %19 = arith.mulf %13, %18 : vector<16x1xf32>
    %cst_13 = arith.constant dense<0.000000e+00> : vector<16xf32>
    %20 = vector.multi_reduction <add>, %16, %cst_13 [1] : vector<16x16xf32> to vector<16xf32>
    %21 = vector.shape_cast %20 : vector<16xf32> to vector<16x1xf32>
    %22 = arith.addf %19, %21 : vector<16x1xf32>
    %c0_14 = arith.constant 0 : index
    %c0_15 = arith.constant 0 : index
    %c0_16 = arith.constant 0 : index
    %23 = vector.load %arg12[%c0_14, %c0_15, %c0_16] : memref<2x16x1xf32, #tpu.memory_space<vmem>>, vector<1x16x1xf32>
    %24 = vector.shape_cast %23 : vector<1x16x1xf32> to vector<16x1xf32>
    %25 = vector.shape_cast %22 : vector<16x1xf32> to vector<1x16x1xf32>
    tpu.vector_store %arg12[%c0_14, %c0_15, %c0_16], %25 {strides = array<i32>} : memref<2x16x1xf32, #tpu.memory_space<vmem>>, vector<1x16x1xf32>,
    %c0_17 = arith.constant 0 : index
    %c0_18 = arith.constant 0 : index
    %c0_19 = arith.constant 0 : index
    %26 = vector.load %arg13[%c0_17, %c0_18, %c0_19] : memref<2x16x128xf32, #tpu.memory_space<vmem>>, vector<1x16x128xf32>
    %27 = vector.shape_cast %26 : vector<1x16x128xf32> to vector<16x128xf32>
    %28 = vector.broadcast %13 : vector<16x1xf32> to vector<16x128xf32>
    %29 = arith.mulf %28, %27 : vector<16x128xf32>
    %30 = arith.truncf %16 : vector<16x16xf32> to vector<16x16xbf16>
    %cst_20 = arith.constant dense<0.000000e+00> : vector<16x128xf32>
    %31 = tpu.matmul %30, %5, %cst_20 {dimension_numbers = #tpu.dot_dimension_numbers<[1], [0], [0], [1], [0, 0, 1, 1], [], []>} : vector<16x16xbf16>, vector<16x128xbf16>, vector<16x128xf32> -> vector<16x128xf32>
    %32 = arith.addf %29, %31 : vector<16x128xf32>
    %c0_21 = arith.constant 0 : index
    %c0_22 = arith.constant 0 : index
    %c0_23 = arith.constant 0 : index
    %33 = vector.load %arg13[%c0_21, %c0_22, %c0_23] : memref<2x16x128xf32, #tpu.memory_space<vmem>>, vector<1x16x128xf32>
    %34 = vector.shape_cast %33 : vector<1x16x128xf32> to vector<16x128xf32>
    %35 = vector.shape_cast %32 : vector<16x128xf32> to vector<1x16x128xf32>
    tpu.vector_store %arg13[%c0_21, %c0_22, %c0_23], %35 {strides = array<i32>} : memref<2x16x128xf32, #tpu.memory_space<vmem>>, vector<1x16x128xf32>,
    %c0_24 = arith.constant 0 : index
    %c0_25 = arith.constant 0 : index
    %c0_26 = arith.constant 0 : index
    %36 = vector.load %arg11[%c0_24, %c0_25, %c0_26] : memref<2x16x1xf32, #tpu.memory_space<vmem>>, vector<1x16x1xf32>
    %37 = vector.shape_cast %36 : vector<1x16x1xf32> to vector<16x1xf32>
    %38 = vector.shape_cast %11 : vector<16x1xf32> to vector<1x16x1xf32>
    tpu.vector_store %arg11[%c0_24, %c0_25, %c0_26], %38 {strides = array<i32>} : memref<2x16x1xf32, #tpu.memory_space<vmem>>, vector<1x16x1xf32>,
    %c0_27 = arith.constant 0 : index
    %c128 = arith.constant 128 : index
    %39 = vector.load %arg2[%c0_27, %c128] : memref<16x256xbf16, #tpu.memory_space<vmem>>, vector<16x128xbf16>
    %c0_28 = arith.constant 0 : index
    %c128_29 = arith.constant 128 : index
    %40 = vector.load %arg3[%c0_28, %c128_29] : memref<16x256xbf16, #tpu.memory_space<vmem>>, vector<16x128xbf16>
    %c0_30 = arith.constant 0 : index
    %c128_31 = arith.constant 128 : index
    %41 = vector.load %arg4[%c0_30, %c128_31] : memref<16x256xbf16, #tpu.memory_space<vmem>>, vector<16x128xbf16>
    "tpu.trace_start"() <{level = 10 : i32, message = "qd,kd->qk"}> : () -> ()
    %cst_32 = arith.constant dense<0.000000e+00> : vector<16x16xf32>
    %42 = tpu.matmul %39, %40, %cst_32 {dimension_numbers = #tpu.dot_dimension_numbers<[1], [1], [0], [0], [0, 0, 1, 0], [], []>} : vector<16x128xbf16>, vector<16x128xbf16>, vector<16x16xf32> -> vector<16x16xf32>
    "tpu.trace_stop"() : () -> ()
    %c1 = arith.constant 1 : index
    %c0_33 = arith.constant 0 : index
    %c0_34 = arith.constant 0 : index
    %43 = vector.load %arg11[%c1, %c0_33, %c0_34] : memref<2x16x1xf32, #tpu.memory_space<vmem>>, vector<1x16x1xf32>
    %44 = vector.shape_cast %43 : vector<1x16x1xf32> to vector<16x1xf32>
    %cst_35 = arith.constant dense<0xFF800000> : vector<16xf32>
    %45 = vector.multi_reduction <maximumf>, %42, %cst_35 [1] : vector<16x16xf32> to vector<16xf32>
    %46 = vector.shape_cast %45 : vector<16xf32> to vector<16x1xf32>
    %47 = arith.maximumf %44, %46 : vector<16x1xf32>
    %48 = arith.subf %44, %47 : vector<16x1xf32>
    %49 = math.exp %48 : vector<16x1xf32>
    %50 = vector.broadcast %47 : vector<16x1xf32> to vector<16x16xf32>
    %51 = arith.subf %42, %50 : vector<16x16xf32>
    %52 = math.exp %51 : vector<16x16xf32>
    %c1_36 = arith.constant 1 : index
    %c0_37 = arith.constant 0 : index
    %c0_38 = arith.constant 0 : index
    %53 = vector.load %arg12[%c1_36, %c0_37, %c0_38] : memref<2x16x1xf32, #tpu.memory_space<vmem>>, vector<1x16x1xf32>
    %54 = vector.shape_cast %53 : vector<1x16x1xf32> to vector<16x1xf32>
    %55 = arith.mulf %49, %54 : vector<16x1xf32>
    %cst_39 = arith.constant dense<0.000000e+00> : vector<16xf32>
    %56 = vector.multi_reduction <add>, %52, %cst_39 [1] : vector<16x16xf32> to vector<16xf32>
    %57 = vector.shape_cast %56 : vector<16xf32> to vector<16x1xf32>
    %58 = arith.addf %55, %57 : vector<16x1xf32>
    %c1_40 = arith.constant 1 : index
    %c0_41 = arith.constant 0 : index
    %c0_42 = arith.constant 0 : index
    %59 = vector.load %arg12[%c1_40, %c0_41, %c0_42] : memref<2x16x1xf32, #tpu.memory_space<vmem>>, vector<1x16x1xf32>
    %60 = vector.shape_cast %59 : vector<1x16x1xf32> to vector<16x1xf32>
    %61 = vector.shape_cast %58 : vector<16x1xf32> to vector<1x16x1xf32>
    tpu.vector_store %arg12[%c1_40, %c0_41, %c0_42], %61 {strides = array<i32>} : memref<2x16x1xf32, #tpu.memory_space<vmem>>, vector<1x16x1xf32>,
    %c1_43 = arith.constant 1 : index
    %c0_44 = arith.constant 0 : index
    %c0_45 = arith.constant 0 : index
    %62 = vector.load %arg13[%c1_43, %c0_44, %c0_45] : memref<2x16x128xf32, #tpu.memory_space<vmem>>, vector<1x16x128xf32>
    %63 = vector.shape_cast %62 : vector<1x16x128xf32> to vector<16x128xf32>
    %64 = vector.broadcast %49 : vector<16x1xf32> to vector<16x128xf32>
    %65 = arith.mulf %64, %63 : vector<16x128xf32>
    %66 = arith.truncf %52 : vector<16x16xf32> to vector<16x16xbf16>
    %cst_46 = arith.constant dense<0.000000e+00> : vector<16x128xf32>
    %67 = tpu.matmul %66, %41, %cst_46 {dimension_numbers = #tpu.dot_dimension_numbers<[1], [0], [0], [1], [0, 0, 1, 1], [], []>} : vector<16x16xbf16>, vector<16x128xbf16>, vector<16x128xf32> -> vector<16x128xf32>
    %68 = arith.addf %65, %67 : vector<16x128xf32>
    %c1_47 = arith.constant 1 : index
    %c0_48 = arith.constant 0 : index
    %c0_49 = arith.constant 0 : index
    %69 = vector.load %arg13[%c1_47, %c0_48, %c0_49] : memref<2x16x128xf32, #tpu.memory_space<vmem>>, vector<1x16x128xf32>
    %70 = vector.shape_cast %69 : vector<1x16x128xf32> to vector<16x128xf32>
    %71 = vector.shape_cast %68 : vector<16x128xf32> to vector<1x16x128xf32>
    tpu.vector_store %arg13[%c1_47, %c0_48, %c0_49], %71 {strides = array<i32>} : memref<2x16x128xf32, #tpu.memory_space<vmem>>, vector<1x16x128xf32>,
    %c1_50 = arith.constant 1 : index
    %c0_51 = arith.constant 0 : index
    %c0_52 = arith.constant 0 : index
    %72 = vector.load %arg11[%c1_50, %c0_51, %c0_52] : memref<2x16x1xf32, #tpu.memory_space<vmem>>, vector<1x16x1xf32>
    %73 = vector.shape_cast %72 : vector<1x16x1xf32> to vector<16x1xf32>
    %74 = vector.shape_cast %47 : vector<16x1xf32> to vector<1x16x1xf32>
    tpu.vector_store %arg11[%c1_50, %c0_51, %c0_52], %74 {strides = array<i32>} : memref<2x16x1xf32, #tpu.memory_space<vmem>>, vector<1x16x1xf32>,
    %c0_i32_53 = arith.constant 0 : i32
    %75 = arith.cmpi eq, %arg1, %c0_i32_53 : i32
    %76 = arith.extui %75 : i1 to i32
    %c0_i32_54 = arith.constant 0 : i32
    %77 = arith.cmpi ne, %76, %c0_i32_54 : i32
    scf.if %77 {
      %c0_55 = arith.constant 0 : index
      %c0_56 = arith.constant 0 : index
      %78 = vector.load %arg7[%c0_55, %c0_56] : memref<1x256xbf16, #tpu.memory_space<vmem>>, vector<1x256xbf16>
      %79 = arith.extf %78 : vector<1x256xbf16> to vector<1x256xf32>
      %c0_57 = arith.constant 0 : index
      %c0_58 = arith.constant 0 : index
      %80 = vector.load %arg5[%c0_57, %c0_58] : memref<16x256xbf16, #tpu.memory_space<vmem>>, vector<16x256xbf16>
      %81 = arith.extf %80 : vector<16x256xbf16> to vector<16x256xf32>
      %82 = vector.broadcast %79 : vector<1x256xf32> to vector<16x256xf32>
      %83 = arith.addf %82, %81 : vector<16x256xf32>
      %c0_59 = arith.constant 0 : index
      %c0_60 = arith.constant 0 : index
      %c0_61 = arith.constant 0 : index
      %84 = vector.load %arg13[%c0_59, %c0_60, %c0_61] : memref<2x16x128xf32, #tpu.memory_space<vmem>>, vector<1x16x128xf32>
      %85 = vector.shape_cast %84 : vector<1x16x128xf32> to vector<16x128xf32>
      %c0_62 = arith.constant 0 : index
      %c0_63 = arith.constant 0 : index
      %c0_64 = arith.constant 0 : index
      %86 = vector.load %arg12[%c0_62, %c0_63, %c0_64] : memref<2x16x1xf32, #tpu.memory_space<vmem>>, vector<1x16x1xf32>
      %87 = vector.shape_cast %86 : vector<1x16x1xf32> to vector<16x1xf32>
      %88 = tpu.reciprocal %87 {approx = true} : vector<16x1xf32> -> vector<16x1xf32>
      %89 = vector.broadcast %88 : vector<16x1xf32> to vector<16x128xf32>
      %90 = arith.mulf %85, %89 : vector<16x128xf32>
      %91 = arith.truncf %90 : vector<16x128xf32> to vector<16x128xbf16>
      %c0_65 = arith.constant 0 : index
      %c0_66 = arith.constant 0 : index
      %92 = vector.load %arg6[%c0_65, %c0_66] : memref<256x256xbf16, #tpu.memory_space<vmem>>, vector<128x256xbf16>
      %cst_67 = arith.constant dense<0.000000e+00> : vector<16x256xf32>
      %93 = tpu.matmul %91, %92, %cst_67 {dimension_numbers = #tpu.dot_dimension_numbers<[1], [0], [0], [1], [0, 0, 1, 1], [], []>} : vector<16x128xbf16>, vector<128x256xbf16>, vector<16x256xf32> -> vector<16x256xf32>
      %94 = arith.addf %83, %93 : vector<16x256xf32>
      %c1_68 = arith.constant 1 : index
      %c0_69 = arith.constant 0 : index
      %c0_70 = arith.constant 0 : index
      %95 = vector.load %arg13[%c1_68, %c0_69, %c0_70] : memref<2x16x128xf32, #tpu.memory_space<vmem>>, vector<1x16x128xf32>
      %96 = vector.shape_cast %95 : vector<1x16x128xf32> to vector<16x128xf32>
      %c1_71 = arith.constant 1 : index
      %c0_72 = arith.constant 0 : index
      %c0_73 = arith.constant 0 : index
      %97 = vector.load %arg12[%c1_71, %c0_72, %c0_73] : memref<2x16x1xf32, #tpu.memory_space<vmem>>, vector<1x16x1xf32>
      %98 = vector.shape_cast %97 : vector<1x16x1xf32> to vector<16x1xf32>
      %99 = tpu.reciprocal %98 {approx = true} : vector<16x1xf32> -> vector<16x1xf32>
      %100 = vector.broadcast %99 : vector<16x1xf32> to vector<16x128xf32>
      %101 = arith.mulf %96, %100 : vector<16x128xf32>
      %102 = arith.truncf %101 : vector<16x128xf32> to vector<16x128xbf16>
      %c128_74 = arith.constant 128 : index
      %c0_75 = arith.constant 0 : index
      %103 = vector.load %arg6[%c128_74, %c0_75] : memref<256x256xbf16, #tpu.memory_space<vmem>>, vector<128x256xbf16>
      %cst_76 = arith.constant dense<0.000000e+00> : vector<16x256xf32>
      %104 = tpu.matmul %102, %103, %cst_76 {dimension_numbers = #tpu.dot_dimension_numbers<[1], [0], [0], [1], [0, 0, 1, 1], [], []>} : vector<16x128xbf16>, vector<128x256xbf16>, vector<16x256xf32> -> vector<16x256xf32>
      %105 = arith.addf %94, %104 : vector<16x256xf32>
      %c0_77 = arith.constant 0 : index
      %c0_78 = arith.constant 0 : index
      %106 = vector.load %arg8[%c0_77, %c0_78] : memref<1x256xbf16, #tpu.memory_space<vmem>>, vector<1x256xbf16>
      %107 = arith.extf %106 : vector<1x256xbf16> to vector<1x256xf32>
      %c0_79 = arith.constant 0 : index
      %c0_80 = arith.constant 0 : index
      %108 = vector.load %arg9[%c0_79, %c0_80] : memref<1x256xbf16, #tpu.memory_space<vmem>>, vector<1x256xbf16>
      %109 = arith.extf %108 : vector<1x256xbf16> to vector<1x256xf32>
      %cst_81 = arith.constant dense<0.000000e+00> : vector<16xf32>
      %110 = vector.multi_reduction <add>, %105, %cst_81 [1] : vector<16x256xf32> to vector<16xf32>
      %111 = vector.shape_cast %110 : vector<16xf32> to vector<16x1xf32>
      %cst_82 = arith.constant 2.560000e+02 : f32
      %112 = vector.broadcast %cst_82 : f32 to vector<16x1xf32>
      %113 = arith.divf %111, %112 : vector<16x1xf32>
      %114 = vector.broadcast %113 : vector<16x1xf32> to vector<16x256xf32>
      %115 = arith.subf %105, %114 : vector<16x256xf32>
      %116 = arith.mulf %115, %115 : vector<16x256xf32>
      %cst_83 = arith.constant dense<0.000000e+00> : vector<16xf32>
      %117 = vector.multi_reduction <add>, %116, %cst_83 [1] : vector<16x256xf32> to vector<16xf32>
      %118 = vector.shape_cast %117 : vector<16xf32> to vector<16x1xf32>
      %cst_84 = arith.constant 2.560000e+02 : f32
      %119 = vector.broadcast %cst_84 : f32 to vector<16x1xf32>
      %120 = arith.divf %118, %119 : vector<16x1xf32>
      %cst_85 = arith.constant 9.99999996E-13 : f32
      %121 = vector.broadcast %cst_85 : f32 to vector<16x1xf32>
      %122 = arith.addf %120, %121 : vector<16x1xf32>
      %123 = math.rsqrt %122 : vector<16x1xf32>
      %124 = vector.broadcast %123 : vector<16x1xf32> to vector<16x256xf32>
      %125 = arith.mulf %115, %124 : vector<16x256xf32>
      %126 = vector.broadcast %107 : vector<1x256xf32> to vector<16x256xf32>
      %127 = arith.mulf %125, %126 : vector<16x256xf32>
      %128 = vector.broadcast %109 : vector<1x256xf32> to vector<16x256xf32>
      %129 = arith.addf %127, %128 : vector<16x256xf32>
      %130 = arith.truncf %129 : vector<16x256xf32> to vector<16x256xbf16>
      %c0_86 = arith.constant 0 : index
      %c0_87 = arith.constant 0 : index
      %131 = vector.load %arg10[%c0_86, %c0_87] : memref<16x256xbf16, #tpu.memory_space<vmem>>, vector<16x256xbf16>
      tpu.vector_store %arg10[%c0_86, %c0_87], %130 {strides = array<i32>} : memref<16x256xbf16, #tpu.memory_space<vmem>>, vector<16x256xbf16>,
    } else {
    }
    return
  }
  func.func @transform_0(%arg0: i32, %arg1: i32) -> (i32, i32) {
    %c0_i32 = arith.constant 0 : i32
    %c0_i32_0 = arith.constant 0 : i32
    return %arg0, %c0_i32 : i32, i32
  }
  func.func @transform_1(%arg0: i32, %arg1: i32) -> (i32, i32) {
    %c1_i32 = arith.constant 1 : i32
    %0 = arith.muli %arg0, %c1_i32 : i32
    %1 = arith.addi %0, %arg1 : i32
    %c1_i32_0 = arith.constant 1 : i32
    %c0_i32 = arith.constant 0 : i32
    return %1, %c1_i32_0 : i32, i32
  }
  func.func @transform_2(%arg0: i32, %arg1: i32) -> (i32, i32) {
    %c1_i32 = arith.constant 1 : i32
    %0 = arith.muli %arg0, %c1_i32 : i32
    %1 = arith.addi %0, %arg1 : i32
    %c2_i32 = arith.constant 2 : i32
    %c0_i32 = arith.constant 0 : i32
    return %1, %c2_i32 : i32, i32
  }
  func.func @transform_3(%arg0: i32, %arg1: i32) -> (i32, i32) {
    %c0_i32 = arith.constant 0 : i32
    %c0_i32_0 = arith.constant 0 : i32
    return %arg0, %c0_i32 : i32, i32
  }
  func.func @transform_4(%arg0: i32, %arg1: i32) -> (i32, i32) {
    %c0_i32 = arith.constant 0 : i32
    %c0_i32_0 = arith.constant 0 : i32
    %c0_i32_1 = arith.constant 0 : i32
    return %c0_i32, %c0_i32_0 : i32, i32
  }
  func.func @transform_5(%arg0: i32, %arg1: i32) -> (i32, i32) {
    %c0_i32 = arith.constant 0 : i32
    %c0_i32_0 = arith.constant 0 : i32
    %c0_i32_1 = arith.constant 0 : i32
    return %c0_i32, %c0_i32_0 : i32, i32
  }
  func.func @transform_6(%arg0: i32, %arg1: i32) -> (i32, i32) {
    %c0_i32 = arith.constant 0 : i32
    %c0_i32_0 = arith.constant 0 : i32
    %c0_i32_1 = arith.constant 0 : i32
    return %c0_i32, %c0_i32_0 : i32, i32
  }
  func.func @transform_7(%arg0: i32, %arg1: i32) -> (i32, i32) {
    %c0_i32 = arith.constant 0 : i32
    %c0_i32_0 = arith.constant 0 : i32
    %c0_i32_1 = arith.constant 0 : i32
    return %c0_i32, %c0_i32_0 : i32, i32
  }
  func.func @transform_8(%arg0: i32, %arg1: i32) -> (i32, i32) {
    %c0_i32 = arith.constant 0 : i32
    %c0_i32_0 = arith.constant 0 : i32
    return %arg0, %c0_i32 : i32, i32
  }
}

module attributes {stable_mosaic.version = 11 : i64} {
  func.func @_matmul_oneshot_kernel(%arg0: i32, %arg1: i32, %arg2: memref<32x256xbf16, #tpu.memory_space<vmem>>, %arg3: memref<256x256xbf16, #tpu.memory_space<vmem>>, %arg4: memref<1x256xbf16, #tpu.memory_space<vmem>>, %arg5: memref<32x256xbf16, #tpu.memory_space<vmem>>) attributes {dimension_semantics = [#tpu.dimension_semantics<parallel>, #tpu.dimension_semantics<parallel>], iteration_bounds = array<i64: 1, 3>, scalar_prefetch = 0 : i64, scratch_operands = 0 : i64, tpu.core_type = #tpu.core_type<tc>, window_params = [{transform_indices = @transform_0, window_bounds = array<i64: 32, 256>}, {transform_indices = @transform_1, window_bounds = array<i64: 256, 256>}, {transform_indices = @transform_2, window_bounds = array<i64: 1, 256>}, {transform_indices = @transform_3, window_bounds = array<i64: 32, 256>}]} {
    %c0 = arith.constant 0 : index
    %c0_0 = arith.constant 0 : index
    %0 = vector.load %arg2[%c0, %c0_0] : memref<32x256xbf16, #tpu.memory_space<vmem>>, vector<32x256xbf16>
    %c0_1 = arith.constant 0 : index
    %c0_2 = arith.constant 0 : index
    %1 = vector.load %arg3[%c0_1, %c0_2] : memref<256x256xbf16, #tpu.memory_space<vmem>>, vector<256x256xbf16>
    %cst = arith.constant dense<0.000000e+00> : vector<32x256xf32>
    %2 = tpu.matmul %0, %1, %cst {dimension_numbers = #tpu.dot_dimension_numbers<[1], [0], [0], [1], [0, 0, 1, 1], [], []>} : vector<32x256xbf16>, vector<256x256xbf16>, vector<32x256xf32> -> vector<32x256xf32>
    %c0_3 = arith.constant 0 : index
    %c0_4 = arith.constant 0 : index
    %3 = vector.load %arg4[%c0_3, %c0_4] : memref<1x256xbf16, #tpu.memory_space<vmem>>, vector<1x256xbf16>
    %4 = arith.extf %3 : vector<1x256xbf16> to vector<1x256xf32>
    %5 = vector.broadcast %4 : vector<1x256xf32> to vector<32x256xf32>
    %6 = arith.addf %2, %5 : vector<32x256xf32>
    %7 = arith.truncf %6 : vector<32x256xf32> to vector<32x256xbf16>
    %c0_5 = arith.constant 0 : index
    %c0_6 = arith.constant 0 : index
    %8 = vector.load %arg5[%c0_5, %c0_6] : memref<32x256xbf16, #tpu.memory_space<vmem>>, vector<32x256xbf16>
    tpu.vector_store %arg5[%c0_5, %c0_6], %7 {strides = array<i32>} : memref<32x256xbf16, #tpu.memory_space<vmem>>, vector<32x256xbf16>,
    return
  }
  func.func @transform_0(%arg0: i32, %arg1: i32) -> (i32, i32) {
    %c0_i32 = arith.constant 0 : i32
    %c0_i32_0 = arith.constant 0 : i32
    return %arg0, %c0_i32 : i32, i32
  }
  func.func @transform_1(%arg0: i32, %arg1: i32) -> (i32, i32) {
    %c0_i32 = arith.constant 0 : i32
    %c0_i32_0 = arith.constant 0 : i32
    return %c0_i32, %arg1 : i32, i32
  }
  func.func @transform_2(%arg0: i32, %arg1: i32) -> (i32, i32) {
    %c0_i32 = arith.constant 0 : i32
    %c0_i32_0 = arith.constant 0 : i32
    return %c0_i32, %arg1 : i32, i32
  }
  func.func @transform_3(%arg0: i32, %arg1: i32) -> (i32, i32) {
    %c0_i32 = arith.constant 0 : i32
    return %arg0, %arg1 : i32, i32
  }
}

module attributes {stable_mosaic.version = 11 : i64} {
  func.func @_ffn_res_ln_kernel(%arg0: i32, %arg1: memref<32x256xbf16, #tpu.memory_space<vmem>>, %arg2: memref<256x512xbf16, #tpu.memory_space<vmem>>, %arg3: memref<1x512xbf16, #tpu.memory_space<vmem>>, %arg4: memref<512x256xbf16, #tpu.memory_space<vmem>>, %arg5: memref<1x256xbf16, #tpu.memory_space<vmem>>, %arg6: memref<1x256xbf16, #tpu.memory_space<vmem>>, %arg7: memref<1x256xbf16, #tpu.memory_space<vmem>>, %arg8: memref<32x256xbf16, #tpu.memory_space<vmem>>) attributes {dimension_semantics = [#tpu.dimension_semantics<parallel>], iteration_bounds = array<i64: 1>, scalar_prefetch = 0 : i64, scratch_operands = 0 : i64, tpu.core_type = #tpu.core_type<tc>, window_params = [{transform_indices = @transform_0, window_bounds = array<i64: 32, 256>}, {pipeline_mode = #tpu.pipeline_mode<synchronous>, transform_indices = @transform_1, window_bounds = array<i64: 256, 512>}, {pipeline_mode = #tpu.pipeline_mode<synchronous>, transform_indices = @transform_2, window_bounds = array<i64: 1, 512>}, {pipeline_mode = #tpu.pipeline_mode<synchronous>, transform_indices = @transform_3, window_bounds = array<i64: 512, 256>}, {pipeline_mode = #tpu.pipeline_mode<synchronous>, transform_indices = @transform_4, window_bounds = array<i64: 1, 256>}, {pipeline_mode = #tpu.pipeline_mode<synchronous>, transform_indices = @transform_5, window_bounds = array<i64: 1, 256>}, {pipeline_mode = #tpu.pipeline_mode<synchronous>, transform_indices = @transform_6, window_bounds = array<i64: 1, 256>}, {transform_indices = @transform_7, window_bounds = array<i64: 32, 256>}]} {
    %c0 = arith.constant 0 : index
    %c0_0 = arith.constant 0 : index
    %0 = vector.load %arg1[%c0, %c0_0] : memref<32x256xbf16, #tpu.memory_space<vmem>>, vector<32x256xbf16>
    %c0_1 = arith.constant 0 : index
    %c0_2 = arith.constant 0 : index
    %1 = vector.load %arg2[%c0_1, %c0_2] : memref<256x512xbf16, #tpu.memory_space<vmem>>, vector<256x512xbf16>
    %cst = arith.constant dense<0.000000e+00> : vector<32x512xf32>
    %2 = tpu.matmul %0, %1, %cst {dimension_numbers = #tpu.dot_dimension_numbers<[1], [0], [0], [1], [0, 0, 1, 1], [], []>} : vector<32x256xbf16>, vector<256x512xbf16>, vector<32x512xf32> -> vector<32x512xf32>
    %c0_3 = arith.constant 0 : index
    %c0_4 = arith.constant 0 : index
    %3 = vector.load %arg3[%c0_3, %c0_4] : memref<1x512xbf16, #tpu.memory_space<vmem>>, vector<1x512xbf16>
    %4 = arith.extf %3 : vector<1x512xbf16> to vector<1x512xf32>
    %5 = vector.broadcast %4 : vector<1x512xf32> to vector<32x512xf32>
    %6 = arith.addf %2, %5 : vector<32x512xf32>
    %7 = arith.mulf %6, %6 : vector<32x512xf32>
    %8 = arith.mulf %6, %7 : vector<32x512xf32>
    %cst_5 = arith.constant 4.471500e-02 : f32
    %9 = vector.broadcast %cst_5 : f32 to vector<32x512xf32>
    %10 = arith.mulf %9, %8 : vector<32x512xf32>
    %11 = arith.addf %6, %10 : vector<32x512xf32>
    %cst_6 = arith.constant 0.797884583 : f32
    %12 = vector.broadcast %cst_6 : f32 to vector<32x512xf32>
    %13 = arith.mulf %12, %11 : vector<32x512xf32>
    %14 = math.tanh %13 : vector<32x512xf32>
    %cst_7 = arith.constant 1.000000e+00 : f32
    %15 = vector.broadcast %cst_7 : f32 to vector<32x512xf32>
    %16 = arith.addf %15, %14 : vector<32x512xf32>
    %cst_8 = arith.constant 5.000000e-01 : f32
    %17 = vector.broadcast %cst_8 : f32 to vector<32x512xf32>
    %18 = arith.mulf %17, %16 : vector<32x512xf32>
    %19 = arith.mulf %6, %18 : vector<32x512xf32>
    %20 = arith.truncf %19 : vector<32x512xf32> to vector<32x512xbf16>
    %c0_9 = arith.constant 0 : index
    %c0_10 = arith.constant 0 : index
    %21 = vector.load %arg4[%c0_9, %c0_10] : memref<512x256xbf16, #tpu.memory_space<vmem>>, vector<512x256xbf16>
    %cst_11 = arith.constant dense<0.000000e+00> : vector<32x256xf32>
    %22 = tpu.matmul %20, %21, %cst_11 {dimension_numbers = #tpu.dot_dimension_numbers<[1], [0], [0], [1], [0, 0, 1, 1], [], []>} : vector<32x512xbf16>, vector<512x256xbf16>, vector<32x256xf32> -> vector<32x256xf32>
    %c0_12 = arith.constant 0 : index
    %c0_13 = arith.constant 0 : index
    %23 = vector.load %arg5[%c0_12, %c0_13] : memref<1x256xbf16, #tpu.memory_space<vmem>>, vector<1x256xbf16>
    %24 = arith.extf %23 : vector<1x256xbf16> to vector<1x256xf32>
    %25 = vector.broadcast %24 : vector<1x256xf32> to vector<32x256xf32>
    %26 = arith.addf %22, %25 : vector<32x256xf32>
    %27 = arith.extf %0 : vector<32x256xbf16> to vector<32x256xf32>
    %28 = arith.addf %26, %27 : vector<32x256xf32>
    %c0_14 = arith.constant 0 : index
    %c0_15 = arith.constant 0 : index
    %29 = vector.load %arg6[%c0_14, %c0_15] : memref<1x256xbf16, #tpu.memory_space<vmem>>, vector<1x256xbf16>
    %30 = arith.extf %29 : vector<1x256xbf16> to vector<1x256xf32>
    %c0_16 = arith.constant 0 : index
    %c0_17 = arith.constant 0 : index
    %31 = vector.load %arg7[%c0_16, %c0_17] : memref<1x256xbf16, #tpu.memory_space<vmem>>, vector<1x256xbf16>
    %32 = arith.extf %31 : vector<1x256xbf16> to vector<1x256xf32>
    %cst_18 = arith.constant dense<0.000000e+00> : vector<32xf32>
    %33 = vector.multi_reduction <add>, %28, %cst_18 [1] : vector<32x256xf32> to vector<32xf32>
    %34 = vector.shape_cast %33 : vector<32xf32> to vector<32x1xf32>
    %cst_19 = arith.constant 2.560000e+02 : f32
    %35 = vector.broadcast %cst_19 : f32 to vector<32x1xf32>
    %36 = arith.divf %34, %35 : vector<32x1xf32>
    %37 = vector.broadcast %36 : vector<32x1xf32> to vector<32x256xf32>
    %38 = arith.subf %28, %37 : vector<32x256xf32>
    %39 = arith.mulf %38, %38 : vector<32x256xf32>
    %cst_20 = arith.constant dense<0.000000e+00> : vector<32xf32>
    %40 = vector.multi_reduction <add>, %39, %cst_20 [1] : vector<32x256xf32> to vector<32xf32>
    %41 = vector.shape_cast %40 : vector<32xf32> to vector<32x1xf32>
    %cst_21 = arith.constant 2.560000e+02 : f32
    %42 = vector.broadcast %cst_21 : f32 to vector<32x1xf32>
    %43 = arith.divf %41, %42 : vector<32x1xf32>
    %cst_22 = arith.constant 9.99999996E-13 : f32
    %44 = vector.broadcast %cst_22 : f32 to vector<32x1xf32>
    %45 = arith.addf %43, %44 : vector<32x1xf32>
    %46 = math.rsqrt %45 : vector<32x1xf32>
    %47 = vector.broadcast %46 : vector<32x1xf32> to vector<32x256xf32>
    %48 = arith.mulf %38, %47 : vector<32x256xf32>
    %49 = vector.broadcast %30 : vector<1x256xf32> to vector<32x256xf32>
    %50 = arith.mulf %48, %49 : vector<32x256xf32>
    %51 = vector.broadcast %32 : vector<1x256xf32> to vector<32x256xf32>
    %52 = arith.addf %50, %51 : vector<32x256xf32>
    %53 = arith.truncf %52 : vector<32x256xf32> to vector<32x256xbf16>
    %c0_23 = arith.constant 0 : index
    %c0_24 = arith.constant 0 : index
    %54 = vector.load %arg8[%c0_23, %c0_24] : memref<32x256xbf16, #tpu.memory_space<vmem>>, vector<32x256xbf16>
    tpu.vector_store %arg8[%c0_23, %c0_24], %53 {strides = array<i32>} : memref<32x256xbf16, #tpu.memory_space<vmem>>, vector<32x256xbf16>,
    return
  }
  func.func @transform_0(%arg0: i32) -> (i32, i32) {
    %c0_i32 = arith.constant 0 : i32
    %c0_i32_0 = arith.constant 0 : i32
    return %arg0, %c0_i32 : i32, i32
  }
  func.func @transform_1(%arg0: i32) -> (i32, i32) {
    %c0_i32 = arith.constant 0 : i32
    %c0_i32_0 = arith.constant 0 : i32
    %c0_i32_1 = arith.constant 0 : i32
    return %c0_i32, %c0_i32_0 : i32, i32
  }
  func.func @transform_2(%arg0: i32) -> (i32, i32) {
    %c0_i32 = arith.constant 0 : i32
    %c0_i32_0 = arith.constant 0 : i32
    %c0_i32_1 = arith.constant 0 : i32
    return %c0_i32, %c0_i32_0 : i32, i32
  }
  func.func @transform_3(%arg0: i32) -> (i32, i32) {
    %c0_i32 = arith.constant 0 : i32
    %c0_i32_0 = arith.constant 0 : i32
    %c0_i32_1 = arith.constant 0 : i32
    return %c0_i32, %c0_i32_0 : i32, i32
  }
  func.func @transform_4(%arg0: i32) -> (i32, i32) {
    %c0_i32 = arith.constant 0 : i32
    %c0_i32_0 = arith.constant 0 : i32
    %c0_i32_1 = arith.constant 0 : i32
    return %c0_i32, %c0_i32_0 : i32, i32
  }
  func.func @transform_5(%arg0: i32) -> (i32, i32) {
    %c0_i32 = arith.constant 0 : i32
    %c0_i32_0 = arith.constant 0 : i32
    %c0_i32_1 = arith.constant 0 : i32
    return %c0_i32, %c0_i32_0 : i32, i32
  }
  func.func @transform_6(%arg0: i32) -> (i32, i32) {
    %c0_i32 = arith.constant 0 : i32
    %c0_i32_0 = arith.constant 0 : i32
    %c0_i32_1 = arith.constant 0 : i32
    return %c0_i32, %c0_i32_0 : i32, i32
  }
  func.func @transform_7(%arg0: i32) -> (i32, i32) {
    %c0_i32 = arith.constant 0 : i32
    %c0_i32_0 = arith.constant 0 : i32
    return %arg0, %c0_i32 : i32, i32
  }
}

module attributes {stable_mosaic.version = 11 : i64} {
  func.func @_attention_kernel(%arg0: i32, %arg1: i32, %arg2: memref<16x256xbf16, #tpu.memory_space<vmem>>, %arg3: memref<16x256xbf16, #tpu.memory_space<vmem>>, %arg4: memref<16x256xbf16, #tpu.memory_space<vmem>>, %arg5: memref<16x256xbf16, #tpu.memory_space<vmem>>, %arg6: memref<256x256xbf16, #tpu.memory_space<vmem>>, %arg7: memref<1x256xbf16, #tpu.memory_space<vmem>>, %arg8: memref<1x256xbf16, #tpu.memory_space<vmem>>, %arg9: memref<1x256xbf16, #tpu.memory_space<vmem>>, %arg10: memref<16x256xbf16, #tpu.memory_space<vmem>>, %arg11: memref<2x16x1xf32, #tpu.memory_space<vmem>>, %arg12: memref<2x16x1xf32, #tpu.memory_space<vmem>>, %arg13: memref<2x16x128xf32, #tpu.memory_space<vmem>>) attributes {dimension_semantics = [#tpu.dimension_semantics<parallel>, #tpu.dimension_semantics<arbitrary>], iteration_bounds = array<i64: 2, 1>, scalar_prefetch = 0 : i64, scratch_operands = 3 : i64, tpu.core_type = #tpu.core_type<tc>, window_params = [{transform_indices = @transform_0, window_bounds = array<i64: 16, 256>}, {transform_indices = @transform_1, window_bounds = array<i64: 16, 256>}, {transform_indices = @transform_2, window_bounds = array<i64: 16, 256>}, {transform_indices = @transform_3, window_bounds = array<i64: 16, 256>}, {pipeline_mode = #tpu.pipeline_mode<synchronous>, transform_indices = @transform_4, window_bounds = array<i64: 256, 256>}, {pipeline_mode = #tpu.pipeline_mode<synchronous>, transform_indices = @transform_5, window_bounds = array<i64: 1, 256>}, {pipeline_mode = #tpu.pipeline_mode<synchronous>, transform_indices = @transform_6, window_bounds = array<i64: 1, 256>}, {pipeline_mode = #tpu.pipeline_mode<synchronous>, transform_indices = @transform_7, window_bounds = array<i64: 1, 256>}, {transform_indices = @transform_8, window_bounds = array<i64: 16, 256>}]} {
    %c0_i32 = arith.constant 0 : i32
    %0 = arith.cmpi eq, %arg1, %c0_i32 : i32
    %1 = arith.extui %0 : i1 to i32
    %c0_i32_0 = arith.constant 0 : i32
    %2 = arith.cmpi ne, %1, %c0_i32_0 : i32
    scf.if %2 {
      %cst_55 = arith.constant 0xFF800000 : f32
      %78 = vector.broadcast %cst_55 : f32 to vector<2x16x1xf32>
      %c0_56 = arith.constant 0 : index
      %c0_57 = arith.constant 0 : index
      %c0_58 = arith.constant 0 : index
      %79 = vector.load %arg11[%c0_56, %c0_57, %c0_58] : memref<2x16x1xf32, #tpu.memory_space<vmem>>, vector<2x16x1xf32>
      tpu.vector_store %arg11[%c0_56, %c0_57, %c0_58], %78 {strides = array<i32>} : memref<2x16x1xf32, #tpu.memory_space<vmem>>, vector<2x16x1xf32>,
      %cst_59 = arith.constant 0.000000e+00 : f32
      %80 = vector.broadcast %cst_59 : f32 to vector<2x16x1xf32>
      %c0_60 = arith.constant 0 : index
      %c0_61 = arith.constant 0 : index
      %c0_62 = arith.constant 0 : index
      %81 = vector.load %arg12[%c0_60, %c0_61, %c0_62] : memref<2x16x1xf32, #tpu.memory_space<vmem>>, vector<2x16x1xf32>
      tpu.vector_store %arg12[%c0_60, %c0_61, %c0_62], %80 {strides = array<i32>} : memref<2x16x1xf32, #tpu.memory_space<vmem>>, vector<2x16x1xf32>,
      %cst_63 = arith.constant 0.000000e+00 : f32
      %82 = vector.broadcast %cst_63 : f32 to vector<2x16x128xf32>
      %c0_64 = arith.constant 0 : index
      %c0_65 = arith.constant 0 : index
      %c0_66 = arith.constant 0 : index
      %83 = vector.load %arg13[%c0_64, %c0_65, %c0_66] : memref<2x16x128xf32, #tpu.memory_space<vmem>>, vector<2x16x128xf32>
      tpu.vector_store %arg13[%c0_64, %c0_65, %c0_66], %82 {strides = array<i32>} : memref<2x16x128xf32, #tpu.memory_space<vmem>>, vector<2x16x128xf32>,
    } else {
    }
    %c0 = arith.constant 0 : index
    %c0_1 = arith.constant 0 : index
    %3 = vector.load %arg2[%c0, %c0_1] : memref<16x256xbf16, #tpu.memory_space<vmem>>, vector<16x128xbf16>
    %c0_2 = arith.constant 0 : index
    %c0_3 = arith.constant 0 : index
    %4 = vector.load %arg3[%c0_2, %c0_3] : memref<16x256xbf16, #tpu.memory_space<vmem>>, vector<16x128xbf16>
    %c0_4 = arith.constant 0 : index
    %c0_5 = arith.constant 0 : index
    %5 = vector.load %arg4[%c0_4, %c0_5] : memref<16x256xbf16, #tpu.memory_space<vmem>>, vector<16x128xbf16>
    "tpu.trace_start"() <{level = 10 : i32, message = "qd,kd->qk"}> : () -> ()
    %cst = arith.constant dense<0.000000e+00> : vector<16x16xf32>
    %6 = tpu.matmul %3, %4, %cst {dimension_numbers = #tpu.dot_dimension_numbers<[1], [1], [0], [0], [0, 0, 1, 0], [], []>} : vector<16x128xbf16>, vector<16x128xbf16>, vector<16x16xf32> -> vector<16x16xf32>
    "tpu.trace_stop"() : () -> ()
    %c0_6 = arith.constant 0 : index
    %c0_7 = arith.constant 0 : index
    %c0_8 = arith.constant 0 : index
    %7 = vector.load %arg11[%c0_6, %c0_7, %c0_8] : memref<2x16x1xf32, #tpu.memory_space<vmem>>, vector<1x16x1xf32>
    %8 = vector.shape_cast %7 : vector<1x16x1xf32> to vector<16x1xf32>
    %cst_9 = arith.constant dense<0xFF800000> : vector<16xf32>
    %9 = vector.multi_reduction <maximumf>, %6, %cst_9 [1] : vector<16x16xf32> to vector<16xf32>
    %10 = vector.shape_cast %9 : vector<16xf32> to vector<16x1xf32>
    %11 = arith.maximumf %8, %10 : vector<16x1xf32>
    %12 = arith.subf %8, %11 : vector<16x1xf32>
    %13 = math.exp %12 : vector<16x1xf32>
    %14 = vector.broadcast %11 : vector<16x1xf32> to vector<16x16xf32>
    %15 = arith.subf %6, %14 : vector<16x16xf32>
    %16 = math.exp %15 : vector<16x16xf32>
    %c0_10 = arith.constant 0 : index
    %c0_11 = arith.constant 0 : index
    %c0_12 = arith.constant 0 : index
    %17 = vector.load %arg12[%c0_10, %c0_11, %c0_12] : memref<2x16x1xf32, #tpu.memory_space<vmem>>, vector<1x16x1xf32>
    %18 = vector.shape_cast %17 : vector<1x16x1xf32> to vector<16x1xf32>
    %19 = arith.mulf %13, %18 : vector<16x1xf32>
    %cst_13 = arith.constant dense<0.000000e+00> : vector<16xf32>
    %20 = vector.multi_reduction <add>, %16, %cst_13 [1] : vector<16x16xf32> to vector<16xf32>
    %21 = vector.shape_cast %20 : vector<16xf32> to vector<16x1xf32>
    %22 = arith.addf %19, %21 : vector<16x1xf32>
    %c0_14 = arith.constant 0 : index
    %c0_15 = arith.constant 0 : index
    %c0_16 = arith.constant 0 : index
    %23 = vector.load %arg12[%c0_14, %c0_15, %c0_16] : memref<2x16x1xf32, #tpu.memory_space<vmem>>, vector<1x16x1xf32>
    %24 = vector.shape_cast %23 : vector<1x16x1xf32> to vector<16x1xf32>
    %25 = vector.shape_cast %22 : vector<16x1xf32> to vector<1x16x1xf32>
    tpu.vector_store %arg12[%c0_14, %c0_15, %c0_16], %25 {strides = array<i32>} : memref<2x16x1xf32, #tpu.memory_space<vmem>>, vector<1x16x1xf32>,
    %c0_17 = arith.constant 0 : index
    %c0_18 = arith.constant 0 : index
    %c0_19 = arith.constant 0 : index
    %26 = vector.load %arg13[%c0_17, %c0_18, %c0_19] : memref<2x16x128xf32, #tpu.memory_space<vmem>>, vector<1x16x128xf32>
    %27 = vector.shape_cast %26 : vector<1x16x128xf32> to vector<16x128xf32>
    %28 = vector.broadcast %13 : vector<16x1xf32> to vector<16x128xf32>
    %29 = arith.mulf %28, %27 : vector<16x128xf32>
    %30 = arith.truncf %16 : vector<16x16xf32> to vector<16x16xbf16>
    %cst_20 = arith.constant dense<0.000000e+00> : vector<16x128xf32>
    %31 = tpu.matmul %30, %5, %cst_20 {dimension_numbers = #tpu.dot_dimension_numbers<[1], [0], [0], [1], [0, 0, 1, 1], [], []>} : vector<16x16xbf16>, vector<16x128xbf16>, vector<16x128xf32> -> vector<16x128xf32>
    %32 = arith.addf %29, %31 : vector<16x128xf32>
    %c0_21 = arith.constant 0 : index
    %c0_22 = arith.constant 0 : index
    %c0_23 = arith.constant 0 : index
    %33 = vector.load %arg13[%c0_21, %c0_22, %c0_23] : memref<2x16x128xf32, #tpu.memory_space<vmem>>, vector<1x16x128xf32>
    %34 = vector.shape_cast %33 : vector<1x16x128xf32> to vector<16x128xf32>
    %35 = vector.shape_cast %32 : vector<16x128xf32> to vector<1x16x128xf32>
    tpu.vector_store %arg13[%c0_21, %c0_22, %c0_23], %35 {strides = array<i32>} : memref<2x16x128xf32, #tpu.memory_space<vmem>>, vector<1x16x128xf32>,
    %c0_24 = arith.constant 0 : index
    %c0_25 = arith.constant 0 : index
    %c0_26 = arith.constant 0 : index
    %36 = vector.load %arg11[%c0_24, %c0_25, %c0_26] : memref<2x16x1xf32, #tpu.memory_space<vmem>>, vector<1x16x1xf32>
    %37 = vector.shape_cast %36 : vector<1x16x1xf32> to vector<16x1xf32>
    %38 = vector.shape_cast %11 : vector<16x1xf32> to vector<1x16x1xf32>
    tpu.vector_store %arg11[%c0_24, %c0_25, %c0_26], %38 {strides = array<i32>} : memref<2x16x1xf32, #tpu.memory_space<vmem>>, vector<1x16x1xf32>,
    %c0_27 = arith.constant 0 : index
    %c128 = arith.constant 128 : index
    %39 = vector.load %arg2[%c0_27, %c128] : memref<16x256xbf16, #tpu.memory_space<vmem>>, vector<16x128xbf16>
    %c0_28 = arith.constant 0 : index
    %c128_29 = arith.constant 128 : index
    %40 = vector.load %arg3[%c0_28, %c128_29] : memref<16x256xbf16, #tpu.memory_space<vmem>>, vector<16x128xbf16>
    %c0_30 = arith.constant 0 : index
    %c128_31 = arith.constant 128 : index
    %41 = vector.load %arg4[%c0_30, %c128_31] : memref<16x256xbf16, #tpu.memory_space<vmem>>, vector<16x128xbf16>
    "tpu.trace_start"() <{level = 10 : i32, message = "qd,kd->qk"}> : () -> ()
    %cst_32 = arith.constant dense<0.000000e+00> : vector<16x16xf32>
    %42 = tpu.matmul %39, %40, %cst_32 {dimension_numbers = #tpu.dot_dimension_numbers<[1], [1], [0], [0], [0, 0, 1, 0], [], []>} : vector<16x128xbf16>, vector<16x128xbf16>, vector<16x16xf32> -> vector<16x16xf32>
    "tpu.trace_stop"() : () -> ()
    %c1 = arith.constant 1 : index
    %c0_33 = arith.constant 0 : index
    %c0_34 = arith.constant 0 : index
    %43 = vector.load %arg11[%c1, %c0_33, %c0_34] : memref<2x16x1xf32, #tpu.memory_space<vmem>>, vector<1x16x1xf32>
    %44 = vector.shape_cast %43 : vector<1x16x1xf32> to vector<16x1xf32>
    %cst_35 = arith.constant dense<0xFF800000> : vector<16xf32>
    %45 = vector.multi_reduction <maximumf>, %42, %cst_35 [1] : vector<16x16xf32> to vector<16xf32>
    %46 = vector.shape_cast %45 : vector<16xf32> to vector<16x1xf32>
    %47 = arith.maximumf %44, %46 : vector<16x1xf32>
    %48 = arith.subf %44, %47 : vector<16x1xf32>
    %49 = math.exp %48 : vector<16x1xf32>
    %50 = vector.broadcast %47 : vector<16x1xf32> to vector<16x16xf32>
    %51 = arith.subf %42, %50 : vector<16x16xf32>
    %52 = math.exp %51 : vector<16x16xf32>
    %c1_36 = arith.constant 1 : index
    %c0_37 = arith.constant 0 : index
    %c0_38 = arith.constant 0 : index
    %53 = vector.load %arg12[%c1_36, %c0_37, %c0_38] : memref<2x16x1xf32, #tpu.memory_space<vmem>>, vector<1x16x1xf32>
    %54 = vector.shape_cast %53 : vector<1x16x1xf32> to vector<16x1xf32>
    %55 = arith.mulf %49, %54 : vector<16x1xf32>
    %cst_39 = arith.constant dense<0.000000e+00> : vector<16xf32>
    %56 = vector.multi_reduction <add>, %52, %cst_39 [1] : vector<16x16xf32> to vector<16xf32>
    %57 = vector.shape_cast %56 : vector<16xf32> to vector<16x1xf32>
    %58 = arith.addf %55, %57 : vector<16x1xf32>
    %c1_40 = arith.constant 1 : index
    %c0_41 = arith.constant 0 : index
    %c0_42 = arith.constant 0 : index
    %59 = vector.load %arg12[%c1_40, %c0_41, %c0_42] : memref<2x16x1xf32, #tpu.memory_space<vmem>>, vector<1x16x1xf32>
    %60 = vector.shape_cast %59 : vector<1x16x1xf32> to vector<16x1xf32>
    %61 = vector.shape_cast %58 : vector<16x1xf32> to vector<1x16x1xf32>
    tpu.vector_store %arg12[%c1_40, %c0_41, %c0_42], %61 {strides = array<i32>} : memref<2x16x1xf32, #tpu.memory_space<vmem>>, vector<1x16x1xf32>,
    %c1_43 = arith.constant 1 : index
    %c0_44 = arith.constant 0 : index
    %c0_45 = arith.constant 0 : index
    %62 = vector.load %arg13[%c1_43, %c0_44, %c0_45] : memref<2x16x128xf32, #tpu.memory_space<vmem>>, vector<1x16x128xf32>
    %63 = vector.shape_cast %62 : vector<1x16x128xf32> to vector<16x128xf32>
    %64 = vector.broadcast %49 : vector<16x1xf32> to vector<16x128xf32>
    %65 = arith.mulf %64, %63 : vector<16x128xf32>
    %66 = arith.truncf %52 : vector<16x16xf32> to vector<16x16xbf16>
    %cst_46 = arith.constant dense<0.000000e+00> : vector<16x128xf32>
    %67 = tpu.matmul %66, %41, %cst_46 {dimension_numbers = #tpu.dot_dimension_numbers<[1], [0], [0], [1], [0, 0, 1, 1], [], []>} : vector<16x16xbf16>, vector<16x128xbf16>, vector<16x128xf32> -> vector<16x128xf32>
    %68 = arith.addf %65, %67 : vector<16x128xf32>
    %c1_47 = arith.constant 1 : index
    %c0_48 = arith.constant 0 : index
    %c0_49 = arith.constant 0 : index
    %69 = vector.load %arg13[%c1_47, %c0_48, %c0_49] : memref<2x16x128xf32, #tpu.memory_space<vmem>>, vector<1x16x128xf32>
    %70 = vector.shape_cast %69 : vector<1x16x128xf32> to vector<16x128xf32>
    %71 = vector.shape_cast %68 : vector<16x128xf32> to vector<1x16x128xf32>
    tpu.vector_store %arg13[%c1_47, %c0_48, %c0_49], %71 {strides = array<i32>} : memref<2x16x128xf32, #tpu.memory_space<vmem>>, vector<1x16x128xf32>,
    %c1_50 = arith.constant 1 : index
    %c0_51 = arith.constant 0 : index
    %c0_52 = arith.constant 0 : index
    %72 = vector.load %arg11[%c1_50, %c0_51, %c0_52] : memref<2x16x1xf32, #tpu.memory_space<vmem>>, vector<1x16x1xf32>
    %73 = vector.shape_cast %72 : vector<1x16x1xf32> to vector<16x1xf32>
    %74 = vector.shape_cast %47 : vector<16x1xf32> to vector<1x16x1xf32>
    tpu.vector_store %arg11[%c1_50, %c0_51, %c0_52], %74 {strides = array<i32>} : memref<2x16x1xf32, #tpu.memory_space<vmem>>, vector<1x16x1xf32>,
    %c0_i32_53 = arith.constant 0 : i32
    %75 = arith.cmpi eq, %arg1, %c0_i32_53 : i32
    %76 = arith.extui %75 : i1 to i32
    %c0_i32_54 = arith.constant 0 : i32
    %77 = arith.cmpi ne, %76, %c0_i32_54 : i32
    scf.if %77 {
      %c0_55 = arith.constant 0 : index
      %c0_56 = arith.constant 0 : index
      %78 = vector.load %arg7[%c0_55, %c0_56] : memref<1x256xbf16, #tpu.memory_space<vmem>>, vector<1x256xbf16>
      %79 = arith.extf %78 : vector<1x256xbf16> to vector<1x256xf32>
      %c0_57 = arith.constant 0 : index
      %c0_58 = arith.constant 0 : index
      %80 = vector.load %arg5[%c0_57, %c0_58] : memref<16x256xbf16, #tpu.memory_space<vmem>>, vector<16x256xbf16>
      %81 = arith.extf %80 : vector<16x256xbf16> to vector<16x256xf32>
      %82 = vector.broadcast %79 : vector<1x256xf32> to vector<16x256xf32>
      %83 = arith.addf %82, %81 : vector<16x256xf32>
      %c0_59 = arith.constant 0 : index
      %c0_60 = arith.constant 0 : index
      %c0_61 = arith.constant 0 : index
      %84 = vector.load %arg13[%c0_59, %c0_60, %c0_61] : memref<2x16x128xf32, #tpu.memory_space<vmem>>, vector<1x16x128xf32>
      %85 = vector.shape_cast %84 : vector<1x16x128xf32> to vector<16x128xf32>
      %c0_62 = arith.constant 0 : index
      %c0_63 = arith.constant 0 : index
      %c0_64 = arith.constant 0 : index
      %86 = vector.load %arg12[%c0_62, %c0_63, %c0_64] : memref<2x16x1xf32, #tpu.memory_space<vmem>>, vector<1x16x1xf32>
      %87 = vector.shape_cast %86 : vector<1x16x1xf32> to vector<16x1xf32>
      %88 = tpu.reciprocal %87 {approx = true} : vector<16x1xf32> -> vector<16x1xf32>
      %89 = vector.broadcast %88 : vector<16x1xf32> to vector<16x128xf32>
      %90 = arith.mulf %85, %89 : vector<16x128xf32>
      %91 = arith.truncf %90 : vector<16x128xf32> to vector<16x128xbf16>
      %c0_65 = arith.constant 0 : index
      %c0_66 = arith.constant 0 : index
      %92 = vector.load %arg6[%c0_65, %c0_66] : memref<256x256xbf16, #tpu.memory_space<vmem>>, vector<128x256xbf16>
      %cst_67 = arith.constant dense<0.000000e+00> : vector<16x256xf32>
      %93 = tpu.matmul %91, %92, %cst_67 {dimension_numbers = #tpu.dot_dimension_numbers<[1], [0], [0], [1], [0, 0, 1, 1], [], []>} : vector<16x128xbf16>, vector<128x256xbf16>, vector<16x256xf32> -> vector<16x256xf32>
      %94 = arith.addf %83, %93 : vector<16x256xf32>
      %c1_68 = arith.constant 1 : index
      %c0_69 = arith.constant 0 : index
      %c0_70 = arith.constant 0 : index
      %95 = vector.load %arg13[%c1_68, %c0_69, %c0_70] : memref<2x16x128xf32, #tpu.memory_space<vmem>>, vector<1x16x128xf32>
      %96 = vector.shape_cast %95 : vector<1x16x128xf32> to vector<16x128xf32>
      %c1_71 = arith.constant 1 : index
      %c0_72 = arith.constant 0 : index
      %c0_73 = arith.constant 0 : index
      %97 = vector.load %arg12[%c1_71, %c0_72, %c0_73] : memref<2x16x1xf32, #tpu.memory_space<vmem>>, vector<1x16x1xf32>
      %98 = vector.shape_cast %97 : vector<1x16x1xf32> to vector<16x1xf32>
      %99 = tpu.reciprocal %98 {approx = true} : vector<16x1xf32> -> vector<16x1xf32>
      %100 = vector.broadcast %99 : vector<16x1xf32> to vector<16x128xf32>
      %101 = arith.mulf %96, %100 : vector<16x128xf32>
      %102 = arith.truncf %101 : vector<16x128xf32> to vector<16x128xbf16>
      %c128_74 = arith.constant 128 : index
      %c0_75 = arith.constant 0 : index
      %103 = vector.load %arg6[%c128_74, %c0_75] : memref<256x256xbf16, #tpu.memory_space<vmem>>, vector<128x256xbf16>
      %cst_76 = arith.constant dense<0.000000e+00> : vector<16x256xf32>
      %104 = tpu.matmul %102, %103, %cst_76 {dimension_numbers = #tpu.dot_dimension_numbers<[1], [0], [0], [1], [0, 0, 1, 1], [], []>} : vector<16x128xbf16>, vector<128x256xbf16>, vector<16x256xf32> -> vector<16x256xf32>
      %105 = arith.addf %94, %104 : vector<16x256xf32>
      %c0_77 = arith.constant 0 : index
      %c0_78 = arith.constant 0 : index
      %106 = vector.load %arg8[%c0_77, %c0_78] : memref<1x256xbf16, #tpu.memory_space<vmem>>, vector<1x256xbf16>
      %107 = arith.extf %106 : vector<1x256xbf16> to vector<1x256xf32>
      %c0_79 = arith.constant 0 : index
      %c0_80 = arith.constant 0 : index
      %108 = vector.load %arg9[%c0_79, %c0_80] : memref<1x256xbf16, #tpu.memory_space<vmem>>, vector<1x256xbf16>
      %109 = arith.extf %108 : vector<1x256xbf16> to vector<1x256xf32>
      %cst_81 = arith.constant dense<0.000000e+00> : vector<16xf32>
      %110 = vector.multi_reduction <add>, %105, %cst_81 [1] : vector<16x256xf32> to vector<16xf32>
      %111 = vector.shape_cast %110 : vector<16xf32> to vector<16x1xf32>
      %cst_82 = arith.constant 2.560000e+02 : f32
      %112 = vector.broadcast %cst_82 : f32 to vector<16x1xf32>
      %113 = arith.divf %111, %112 : vector<16x1xf32>
      %114 = vector.broadcast %113 : vector<16x1xf32> to vector<16x256xf32>
      %115 = arith.subf %105, %114 : vector<16x256xf32>
      %116 = arith.mulf %115, %115 : vector<16x256xf32>
      %cst_83 = arith.constant dense<0.000000e+00> : vector<16xf32>
      %117 = vector.multi_reduction <add>, %116, %cst_83 [1] : vector<16x256xf32> to vector<16xf32>
      %118 = vector.shape_cast %117 : vector<16xf32> to vector<16x1xf32>
      %cst_84 = arith.constant 2.560000e+02 : f32
      %119 = vector.broadcast %cst_84 : f32 to vector<16x1xf32>
      %120 = arith.divf %118, %119 : vector<16x1xf32>
      %cst_85 = arith.constant 9.99999996E-13 : f32
      %121 = vector.broadcast %cst_85 : f32 to vector<16x1xf32>
      %122 = arith.addf %120, %121 : vector<16x1xf32>
      %123 = math.rsqrt %122 : vector<16x1xf32>
      %124 = vector.broadcast %123 : vector<16x1xf32> to vector<16x256xf32>
      %125 = arith.mulf %115, %124 : vector<16x256xf32>
      %126 = vector.broadcast %107 : vector<1x256xf32> to vector<16x256xf32>
      %127 = arith.mulf %125, %126 : vector<16x256xf32>
      %128 = vector.broadcast %109 : vector<1x256xf32> to vector<16x256xf32>
      %129 = arith.addf %127, %128 : vector<16x256xf32>
      %130 = arith.truncf %129 : vector<16x256xf32> to vector<16x256xbf16>
      %c0_86 = arith.constant 0 : index
      %c0_87 = arith.constant 0 : index
      %131 = vector.load %arg10[%c0_86, %c0_87] : memref<16x256xbf16, #tpu.memory_space<vmem>>, vector<16x256xbf16>
      tpu.vector_store %arg10[%c0_86, %c0_87], %130 {strides = array<i32>} : memref<16x256xbf16, #tpu.memory_space<vmem>>, vector<16x256xbf16>,
    } else {
    }
    return
  }
  func.func @transform_0(%arg0: i32, %arg1: i32) -> (i32, i32) {
    %c0_i32 = arith.constant 0 : i32
    %c0_i32_0 = arith.constant 0 : i32
    return %arg0, %c0_i32 : i32, i32
  }
  func.func @transform_1(%arg0: i32, %arg1: i32) -> (i32, i32) {
    %c1_i32 = arith.constant 1 : i32
    %0 = arith.muli %arg0, %c1_i32 : i32
    %1 = arith.addi %0, %arg1 : i32
    %c1_i32_0 = arith.constant 1 : i32
    %c0_i32 = arith.constant 0 : i32
    return %1, %c1_i32_0 : i32, i32
  }
  func.func @transform_2(%arg0: i32, %arg1: i32) -> (i32, i32) {
    %c1_i32 = arith.constant 1 : i32
    %0 = arith.muli %arg0, %c1_i32 : i32
    %1 = arith.addi %0, %arg1 : i32
    %c2_i32 = arith.constant 2 : i32
    %c0_i32 = arith.constant 0 : i32
    return %1, %c2_i32 : i32, i32
  }
  func.func @transform_3(%arg0: i32, %arg1: i32) -> (i32, i32) {
    %c0_i32 = arith.constant 0 : i32
    %c0_i32_0 = arith.constant 0 : i32
    return %arg0, %c0_i32 : i32, i32
  }
  func.func @transform_4(%arg0: i32, %arg1: i32) -> (i32, i32) {
    %c0_i32 = arith.constant 0 : i32
    %c0_i32_0 = arith.constant 0 : i32
    %c0_i32_1 = arith.constant 0 : i32
    return %c0_i32, %c0_i32_0 : i32, i32
  }
  func.func @transform_5(%arg0: i32, %arg1: i32) -> (i32, i32) {
    %c0_i32 = arith.constant 0 : i32
    %c0_i32_0 = arith.constant 0 : i32
    %c0_i32_1 = arith.constant 0 : i32
    return %c0_i32, %c0_i32_0 : i32, i32
  }
  func.func @transform_6(%arg0: i32, %arg1: i32) -> (i32, i32) {
    %c0_i32 = arith.constant 0 : i32
    %c0_i32_0 = arith.constant 0 : i32
    %c0_i32_1 = arith.constant 0 : i32
    return %c0_i32, %c0_i32_0 : i32, i32
  }
  func.func @transform_7(%arg0: i32, %arg1: i32) -> (i32, i32) {
    %c0_i32 = arith.constant 0 : i32
    %c0_i32_0 = arith.constant 0 : i32
    %c0_i32_1 = arith.constant 0 : i32
    return %c0_i32, %c0_i32_0 : i32, i32
  }
  func.func @transform_8(%arg0: i32, %arg1: i32) -> (i32, i32) {
    %c0_i32 = arith.constant 0 : i32
    %c0_i32_0 = arith.constant 0 : i32
    return %arg0, %c0_i32 : i32, i32
  }
}

module attributes {stable_mosaic.version = 11 : i64} {
  func.func @_matmul_oneshot_kernel(%arg0: i32, %arg1: i32, %arg2: memref<32x256xbf16, #tpu.memory_space<vmem>>, %arg3: memref<256x128xbf16, #tpu.memory_space<vmem>>, %arg4: memref<1x128xbf16, #tpu.memory_space<vmem>>, %arg5: memref<32x128xf32, #tpu.memory_space<vmem>>) attributes {dimension_semantics = [#tpu.dimension_semantics<parallel>, #tpu.dimension_semantics<parallel>], iteration_bounds = array<i64: 1, 1>, scalar_prefetch = 0 : i64, scratch_operands = 0 : i64, tpu.core_type = #tpu.core_type<tc>, window_params = [{transform_indices = @transform_0, window_bounds = array<i64: 32, 256>}, {transform_indices = @transform_1, window_bounds = array<i64: 256, 128>}, {transform_indices = @transform_2, window_bounds = array<i64: 1, 128>}, {transform_indices = @transform_3, window_bounds = array<i64: 32, 128>}]} {
    %c0 = arith.constant 0 : index
    %c0_0 = arith.constant 0 : index
    %0 = vector.load %arg2[%c0, %c0_0] : memref<32x256xbf16, #tpu.memory_space<vmem>>, vector<32x256xbf16>
    %c0_1 = arith.constant 0 : index
    %c0_2 = arith.constant 0 : index
    %1 = vector.load %arg3[%c0_1, %c0_2] : memref<256x128xbf16, #tpu.memory_space<vmem>>, vector<256x128xbf16>
    %cst = arith.constant dense<0.000000e+00> : vector<32x128xf32>
    %2 = tpu.matmul %0, %1, %cst {dimension_numbers = #tpu.dot_dimension_numbers<[1], [0], [0], [1], [0, 0, 1, 1], [], []>} : vector<32x256xbf16>, vector<256x128xbf16>, vector<32x128xf32> -> vector<32x128xf32>
    %c0_3 = arith.constant 0 : index
    %c0_4 = arith.constant 0 : index
    %3 = vector.load %arg4[%c0_3, %c0_4] : memref<1x128xbf16, #tpu.memory_space<vmem>>, vector<1x128xbf16>
    %4 = arith.extf %3 : vector<1x128xbf16> to vector<1x128xf32>
    %5 = vector.broadcast %4 : vector<1x128xf32> to vector<32x128xf32>
    %6 = arith.addf %2, %5 : vector<32x128xf32>
    %c0_5 = arith.constant 0 : index
    %c0_6 = arith.constant 0 : index
    %7 = vector.load %arg5[%c0_5, %c0_6] : memref<32x128xf32, #tpu.memory_space<vmem>>, vector<32x128xf32>
    tpu.vector_store %arg5[%c0_5, %c0_6], %6 {strides = array<i32>} : memref<32x128xf32, #tpu.memory_space<vmem>>, vector<32x128xf32>,
    return
  }
  func.func @transform_0(%arg0: i32, %arg1: i32) -> (i32, i32) {
    %c0_i32 = arith.constant 0 : i32
    %c0_i32_0 = arith.constant 0 : i32
    return %arg0, %c0_i32 : i32, i32
  }
  func.func @transform_1(%arg0: i32, %arg1: i32) -> (i32, i32) {
    %c0_i32 = arith.constant 0 : i32
    %c0_i32_0 = arith.constant 0 : i32
    return %c0_i32, %arg1 : i32, i32
  }
  func.func @transform_2(%arg0: i32, %arg1: i32) -> (i32, i32) {
    %c0_i32 = arith.constant 0 : i32
    %c0_i32_0 = arith.constant 0 : i32
    return %c0_i32, %arg1 : i32, i32
  }
  func.func @transform_3(%arg0: i32, %arg1: i32) -> (i32, i32) {
    %c0_i32 = arith.constant 0 : i32
    return %arg0, %arg1 : i32, i32
  }
}

</mosaic_0001>

<llo_original>
// kernel: forward.8
$region0: #{forward.8}
  #allocation0 [shape = 'u32[]', space=smem, size = 0x4, offset = 0x4, fixed_abs, tag = 'smem constant byte address 0x4 - core index']
  #allocation1 [shape = 'u32[72,128]{1,0:T(1,128)}', space=vmem, size = 0x9000, scoped, tag = 'internal scratch']
  %s0 = inlined_call_operand.vmem [shape: bf16[32,256], index: 0, kind: input, shape index: {}]
  %s1 = inlined_call_operand.vmem [shape: bf16[1,256], index: 1, kind: input, shape index: {}]
  %s2 = inlined_call_operand.vmem [shape: bf16[1,256], index: 2, kind: input, shape index: {}]
  %s3 = inlined_call_operand.vmem [shape: bf16[32,256], index: 3, kind: output, shape index: {}]
  %s4 = sld [smem:[#allocation0]]
  $region22: #{forward.8} parent=0
    _
  %s6 = ssub.s32 1, %s4
  %s7 = scalar_select 0, %s6, %s4
  // Predicated region
  $region2: #{forward.8} parent=0 // pred_check
    _
  $region3: #{forward.8} parent=0 // pred_check_branch
    %9 = sbr.rel (0) target = $region5
  $region4: #{forward.8} parent=0 // pred_region
    _
  $region5: #{forward.8} parent=0 // pred_fallthru
    _
  // Predicated region
  $region6: #{forward.8} parent=0 // pred_check
    _
  $region7: #{forward.8} parent=0 // pred_check_branch
    %11 = sbr.rel (0) target = $region9
  $region8: #{forward.8} parent=0 // pred_region
    _
  $region9: #{forward.8} parent=0 // pred_fallthru
    _
  // Predicated region
  $region10: #{forward.8} parent=0 // pred_check
    _
  $region11: #{forward.8} parent=0 // pred_check_branch
    %13 = sbr.rel (0) target = $region13
  $region12: #{forward.8} parent=0 // pred_region
    _
  $region13: #{forward.8} parent=0 // pred_fallthru
    _
  %v14 = vld [vmem:[%s0] sm:$0xff]
  %v15 = vld [vmem:[%s0 + $0x8] sm:$0xff]
  %v16 = vld [vmem:[%s0 + $0x10] sm:$0xff]
  %v17 = vld [vmem:[%s0 + $0x18] sm:$0xff]
  %v18 = vunpack.c.l.bf16 %v14
  %v19 = vunpack.c.h.bf16 %v14
  %v20 = vunpack.c.l.bf16 %v15
  %v21 = vunpack.c.h.bf16 %v15
  %v22 = vunpack.c.l.bf16 %v16
  %v23 = vunpack.c.h.bf16 %v16
  %v24 = vunpack.c.l.bf16 %v17
  %v25 = vunpack.c.h.bf16 %v17
  %v26 = vld [vmem:[%s1] sm:$0x3]
  %v27 = vunpack.c.l.bf16 %v26
  %v28 = vld [vmem:[%s2] sm:$0x3]
  %v29 = vunpack.c.l.bf16 %v28
  %v30 = vadd.f32 %v18, %v19
  %31 = vadd.xlane.f32.xlu0 %v30
  %v32 = vpop.xlane.xlu0 %31
  %v33 = vadd.f32 %v20, %v21
  %34 = vadd.xlane.f32.xlu0 %v33
  %v35 = vpop.xlane.xlu0 %34
  %v36 = vadd.f32 %v22, %v23
  %37 = vadd.xlane.f32.xlu0 %v36
  %v38 = vpop.xlane.xlu0 %37
  %v39 = vadd.f32 %v24, %v25
  %40 = vadd.xlane.f32.xlu0 %v39
  %v41 = vpop.xlane.xlu0 %40
  %v42 = vrcp.pop 256.0
  %v43 = vmul.f32 256.0, %v42
  %v44 = vsub.f32 1.0, %v43
  %v45 = vmul.f32 %v42, %v44
  %v46 = vadd.f32 %v42, %v45
  %vm47 = vweird.f32 %v42
  %v48 = vsel %vm47, %v42, %v46
  %v49 = vmul.f32 %v32, %v48
  %v50 = vmul.f32 %v35, %v48
  %v51 = vmul.f32 %v38, %v48
  %v52 = vmul.f32 %v41, %v48
  %v53 = vsub.f32 %v18, %v49
  %v54 = vsub.f32 %v19, %v49
  %v55 = vsub.f32 %v20, %v50
  %v56 = vsub.f32 %v21, %v50
  %v57 = vsub.f32 %v22, %v51
  %v58 = vsub.f32 %v23, %v51
  %v59 = vsub.f32 %v24, %v52
  %v60 = vsub.f32 %v25, %v52
  %v61 = vmul.f32 %v53, %v53
  %v62 = vmul.f32 %v54, %v54
  %v63 = vmul.f32 %v55, %v55
  %v64 = vmul.f32 %v56, %v56
  %v65 = vmul.f32 %v57, %v57
  %v66 = vmul.f32 %v58, %v58
  %v67 = vmul.f32 %v59, %v59
  %v68 = vmul.f32 %v60, %v60
  %v69 = vadd.f32 %v61, %v62
  %70 = vadd.xlane.f32.xlu0 %v69
  %v71 = vpop.xlane.xlu0 %70
  %v72 = vadd.f32 %v63, %v64
  %73 = vadd.xlane.f32.xlu0 %v72
  %v74 = vpop.xlane.xlu0 %73
  %v75 = vadd.f32 %v65, %v66
  %76 = vadd.xlane.f32.xlu0 %v75
  %v77 = vpop.xlane.xlu0 %76
  %v78 = vadd.f32 %v67, %v68
  %79 = vadd.xlane.f32.xlu0 %v78
  %v80 = vpop.xlane.xlu0 %79
  %v81 = vmul.f32 %v71, %v48
  %v82 = vmul.f32 %v74, %v48
  %v83 = vmul.f32 %v77, %v48
  %v84 = vmul.f32 %v80, %v48
  %v85 = vadd.f32 %v81, 1e-12
  %v86 = vadd.f32 %v82, 1e-12
  %v87 = vadd.f32 %v83, 1e-12
  %v88 = vadd.f32 %v84, 1e-12
  %v89 = vrsqrt.pop %v85
  %v90 = vmul.f32 %v89, %v85
  %v91 = vmul.f32 %v90, %v89
  %v92 = vmul.f32 0.5, %v91
  %v93 = vsub.f32 1.5, %v92
  %v94 = vmul.f32 %v89, %v93
  %vm95 = vweird.f32 %v85
  %vm96 = vweird.f32 %v89
  %vm97 = vmor %vm95, %vm96
  %v98 = vsel %vm97, %v89, %v94
  %v99 = vrsqrt.pop %v86
  %v100 = vmul.f32 %v99, %v86
  %v101 = vmul.f32 %v100, %v99
  %v102 = vmul.f32 0.5, %v101
  %v103 = vsub.f32 1.5, %v102
  %v104 = vmul.f32 %v99, %v103
  %vm105 = vweird.f32 %v86
  %vm106 = vweird.f32 %v99
  %vm107 = vmor %vm105, %vm106
  %v108 = vsel %vm107, %v99, %v104
  %v109 = vrsqrt.pop %v87
  %v110 = vmul.f32 %v109, %v87
  %v111 = vmul.f32 %v110, %v109
  %v112 = vmul.f32 0.5, %v111
  %v113 = vsub.f32 1.5, %v112
  %v114 = vmul.f32 %v109, %v113
  %vm115 = vweird.f32 %v87
  %vm116 = vweird.f32 %v109
  %vm117 = vmor %vm115, %vm116
  %v118 = vsel %vm117, %v109, %v114
  %v119 = vrsqrt.pop %v88
  %v120 = vmul.f32 %v119, %v88
  %v121 = vmul.f32 %v120, %v119
  %v122 = vmul.f32 0.5, %v121
  %v123 = vsub.f32 1.5, %v122
  %v124 = vmul.f32 %v119, %v123
  %vm125 = vweird.f32 %v88
  %vm126 = vweird.f32 %v119
  %vm127 = vmor %vm125, %vm126
  %v128 = vsel %vm127, %v119, %v124
  %v129 = vmul.f32 %v53, %v98
  %v130 = vmul.f32 %v54, %v98
  %v131 = vmul.f32 %v55, %v108
  %v132 = vmul.f32 %v56, %v108
  %v133 = vmul.f32 %v57, %v118
  %v134 = vmul.f32 %v58, %v118
  %v135 = vmul.f32 %v59, %v128
  %v136 = vmul.f32 %v60, %v128
  %v138 = vperm.slane %v27, 0
  %v139 = vperm.slane %v27, 2
  %v142 = vperm.slane %v138, 0
  %v143 = vperm.slane %v139, 0
  %v144 = vmul.f32 %v129, %v142
  %v145 = vmul.f32 %v130, %v143
  %v146 = vmul.f32 %v131, %v142
  %v147 = vmul.f32 %v132, %v143
  %v148 = vmul.f32 %v133, %v142
  %v149 = vmul.f32 %v134, %v143
  %v150 = vmul.f32 %v135, %v142
  %v151 = vmul.f32 %v136, %v143
  %v153 = vperm.slane %v29, 0
  %v154 = vperm.slane %v29, 2
  %v157 = vperm.slane %v153, 0
  %v158 = vperm.slane %v154, 0
  %v159 = vadd.f32 %v144, %v157
  %v160 = vadd.f32 %v145, %v158
  %v161 = vadd.f32 %v146, %v157
  %v162 = vadd.f32 %v147, %v158
  %v163 = vadd.f32 %v148, %v157
  %v164 = vadd.f32 %v149, %v158
  %v165 = vadd.f32 %v150, %v157
  %v166 = vadd.f32 %v151, %v158
  %v167 = vpack.c.bf16 %v160, %v159
  %v168 = vpack.c.bf16 %v162, %v161
  %v169 = vpack.c.bf16 %v164, %v163
  %v170 = vpack.c.bf16 %v166, %v165
  %171 = vst [vmem:[%s3] sm:$0xff] %v167
  %172 = vst [vmem:[%s3 + $0x8] sm:$0xff] %v168
  %173 = vst [vmem:[%s3 + $0x10] sm:$0xff] %v169
  %174 = vst [vmem:[%s3 + $0x18] sm:$0xff] %v170
  // Predicated region
  $region14: #{forward.8} parent=0 // pred_check
    _
  $region15: #{forward.8} parent=0 // pred_check_branch
    %176 = sbr.rel (0) target = $region17
  $region16: #{forward.8} parent=0 // pred_region
    _
  $region17: #{forward.8} parent=0 // pred_fallthru
    _
  // Predicated region
  $region18: #{forward.8} parent=0 // pred_check
    _
  $region19: #{forward.8} parent=0 // pred_check_branch
    %178 = sbr.rel (0) target = $region21
  $region20: #{forward.8} parent=0 // pred_region
    _
  $region21: #{forward.8} parent=0 // pred_fallthru
    _

// kernel: forward.9
$region0: #{forward.9}
  #allocation0 [shape = 'u32[]', space=smem, size = 0x4, offset = 0x4, fixed_abs, tag = 'smem constant byte address 0x4 - core index']
  #allocation1 [shape = 'u32[72,128]{1,0:T(1,128)}', space=vmem, size = 0x9000, scoped, tag = 'internal scratch']
  %s0 = inlined_call_operand.vmem [shape: bf16[32,256], index: 0, kind: input, shape index: {}]
  %s1 = inlined_call_operand.hbm [shape: bf16[256,768], index: 1, kind: input, shape index: {}]
  %s2 = inlined_call_operand.vmem [shape: bf16[1,768], index: 2, kind: input, shape index: {}]
  %s3 = inlined_call_operand.vmem [shape: bf16[32,768], index: 3, kind: output, shape index: {}]
  %s4 = sld [smem:[#allocation0]]
  $region83: #{forward.9} parent=0
    _
  %s6 = ssub.s32 1, %s4
  %s7 = scalar_select 0, %s6, %s4
  $region1: #{forward.9} parent=0
    #allocation2 [shape = 'u8[262144]{0}', space=vmem, size = 0x40000, scoped, tag = 'input window, operand 1']
    #allocation3 [shape = 's32[2]{0}', space=sflag, size = 0x8, scoped, tag = 'scoped memory for forward.9']
    #allocation4 [shape = 'u8[32768]{0}', space=vmem, size = 0x8000, scoped, tag = 'output window, operand 0']
    %8 = vsyncpa [#allocation3], 0
    %s9 = scalar_lea.sflag [#allocation3], 1
    %10 = vsyncpa %s9, 0
    loop: start=0, step=1, limit=5
    $region2: #{forward.9} parent=1 // loop_pre_header
      _
    $region3: #{forward.9} parent=1 // loop_header
      %s12 = sphi 0, %s16
      %p13 = scmp.ge.s32.totalorder %s12, 5
      %s19 = sphi 0, %s31
      %s20 = sphi 0, %s27
      %s21 = sphi 0, %s19
      %s22 = sphi 0, %s20
      %s23 = sphi 0, %s21
      %s24 = sphi 0, %s22
      %s34 = sphi 0, %s36
      %s37 = sphi 0, %s34
      %s38 = sphi 0, %s37
      %s54 = sphi 0, %s38
      %s60 = sphi 0, %s62
      %s63 = sphi 0, %s60
      %s64 = sphi 0, %s63
      %s80 = sphi 0, %s64
      %s86 = sphi 0, %s88
      %s89 = sphi 0, %s86
      %s90 = sphi 0, %s89
      %s106 = sphi 0, %s90
      %s114 = sphi 0, %s116
      %s117 = sphi 0, %s114
      %s118 = sphi 0, %s117
      %s134 = sphi 0, %s118
    $region4: #{forward.9} parent=1 // loop_header_branch
      %15 = sbr.rel (%p13) target = $region8
    $region5: #{forward.9} parent=1 // loop_body
      %s17 = ssub.s32 %s12, 1
      %s18 = ssub.s32 %s12, 2
      %s25 = sadd.s32 1, %s20
      %p26 = scmp.ge.s32.totalorder %s25, 3
      %s27 = scalar_select %p26, 0, %s25
      %s28 = sadd.s32 1, %s19
      %s29 = scalar_select %p26, %s28, %s19
      %p30 = scmp.ge.s32.totalorder %s29, 1
      %s31 = scalar_select %p30, 0, %s29
      %s32 = ssub.s32 %s19, %s31
      %p33 = scmp.eq.s32.totalorder %s32, 0
      %s35 = sadd.s32 %s34, 1
      %s36 = scalar_select %p33, %s34, %s35
      %p39 = pneg %p33
      %p40 = scmp.eq.s32.totalorder %s12, 2
      %p41 = por %p39, %p40
      %p42 = scmp.ne.s32.totalorder %s34, %s37
      %p43 = scmp.eq.s32.totalorder %s12, 0
      %p44 = por %p42, %p43
      %p45 = scmp.ne.s32.totalorder %s34, %s37
      %p46 = scmp.eq.s32.totalorder %s17, 2
      %p47 = por %p45, %p46
      %p48 = scmp.ne.s32.totalorder %s37, %s38
      %p49 = scmp.eq.s32.totalorder %s17, 0
      %p50 = por %p48, %p49
      %p51 = scmp.ne.s32.totalorder %s37, %s38
      %p52 = scmp.eq.s32.totalorder %s18, 2
      %p53 = por %p51, %p52
      %p55 = scmp.ne.s32.totalorder %s38, %s54
      %p56 = scmp.eq.s32.totalorder %s18, 0
      %p57 = por %p55, %p56
      %s58 = ssub.s32 %s20, %s27
      %p59 = scmp.eq.s32.totalorder %s58, 0
      %s61 = sadd.s32 %s60, 1
      %s62 = scalar_select %p59, %s60, %s61
      %p65 = pneg %p59
      %p66 = scmp.eq.s32.totalorder %s12, 2
      %p67 = por %p65, %p66
      %p68 = scmp.ne.s32.totalorder %s60, %s63
      %p69 = scmp.eq.s32.totalorder %s12, 0
      %p70 = por %p68, %p69
      %p71 = scmp.ne.s32.totalorder %s60, %s63
      %p72 = scmp.eq.s32.totalorder %s17, 2
      %p73 = por %p71, %p72
      %p74 = scmp.ne.s32.totalorder %s63, %s64
      %p75 = scmp.eq.s32.totalorder %s17, 0
      %p76 = por %p74, %p75
      %p77 = scmp.ne.s32.totalorder %s63, %s64
      %p78 = scmp.eq.s32.totalorder %s18, 2
      %p79 = por %p77, %p78
      %p81 = scmp.ne.s32.totalorder %s64, %s80
      %p82 = scmp.eq.s32.totalorder %s18, 0
      %p83 = por %p81, %p82
      %s84 = ssub.s32 %s20, %s27
      %p85 = scmp.eq.s32.totalorder %s84, 0
      %s87 = sadd.s32 %s86, 1
      %s88 = scalar_select %p85, %s86, %s87
      %p91 = pneg %p85
      %p92 = scmp.eq.s32.totalorder %s12, 2
      %p93 = por %p91, %p92
      %p94 = scmp.ne.s32.totalorder %s86, %s89
      %p95 = scmp.eq.s32.totalorder %s12, 0
      %p96 = por %p94, %p95
      %p97 = scmp.ne.s32.totalorder %s86, %s89
      %p98 = scmp.eq.s32.totalorder %s17, 2
      %p99 = por %p97, %p98
      %p100 = scmp.ne.s32.totalorder %s89, %s90
      %p101 = scmp.eq.s32.totalorder %s17, 0
      %p102 = por %p100, %p101
      %p103 = scmp.ne.s32.totalorder %s89, %s90
      %p104 = scmp.eq.s32.totalorder %s18, 2
      %p105 = por %p103, %p104
      %p107 = scmp.ne.s32.totalorder %s90, %s106
      %p108 = scmp.eq.s32.totalorder %s18, 0
      %p109 = por %p107, %p108
      %s110 = ssub.s32 %s19, %s31
      %s111 = ssub.s32 %s20, %s27
      %s112 = sor.u32 %s110, %s111
      %p113 = scmp.eq.s32.totalorder %s112, 0
      %s115 = sadd.s32 %s114, 1
      %s116 = scalar_select %p113, %s114, %s115
      %p119 = pneg %p113
      %p120 = scmp.eq.s32.totalorder %s12, 2
      %p121 = por %p119, %p120
      %p122 = scmp.ne.s32.totalorder %s114, %s117
      %p123 = scmp.eq.s32.totalorder %s12, 0
      %p124 = por %p122, %p123
      %p125 = scmp.ne.s32.totalorder %s114, %s117
      %p126 = scmp.eq.s32.totalorder %s17, 2
      %p127 = por %p125, %p126
      %p128 = scmp.ne.s32.totalorder %s117, %s118
      %p129 = scmp.eq.s32.totalorder %s17, 0
      %p130 = por %p128, %p129
      %p131 = scmp.ne.s32.totalorder %s117, %s118
      %p132 = scmp.eq.s32.totalorder %s18, 2
      %p133 = por %p131, %p132
      %p135 = scmp.ne.s32.totalorder %s118, %s134
      %p136 = scmp.eq.s32.totalorder %s18, 0
      %p137 = por %p135, %p136
      %p138 = scmp.le.s32.totalorder 1, %s12
      %p139 = scmp.lt.s32.totalorder %s12, 4
      %p140 = pnand %p138, %p139
      %p141 = pneg %p140
      // Predicated region
      $region9: #{forward.9} parent=5 // pred_check
        _
      $region10: #{forward.9} parent=5 // pred_check_branch
        %143 = sbr.rel (%p140) target = $region12
      $region11: #{forward.9} parent=5 // pred_region
        %s144 = ssub.s32 %s12, 1
        // Predicated region
        $region13: #{forward.9} parent=11 // pred_check
          %p145 = pneg %p50
        $region14: #{forward.9} parent=11 // pred_check_branch
          %147 = sbr.rel (%p145) target = $region16
        $region15: #{forward.9} parent=11 // pred_region
          %s148 = smul.u32 4, %s21
          %p149 = scmp.lt.s32.totalorder %s148, 3
          %s150 = scalar_select %p149, %s148, 3
          %s151 = smul.addr %s150, 2
          %s152 = smul.addr %s151, 4
          %s153 = scalar_lea.vmem %s0, %s152
          %s154 = smul.u32 4, %s21
        $region16: #{forward.9} parent=11 // pred_fallthru
          _
      $region12: #{forward.9} parent=5 // pred_fallthru
        _
      %p155 = scmp.lt.s32.totalorder %s12, 3
      // Predicated region
      $region17: #{forward.9} parent=5 // pred_check
        %p156 = pneg %p155
      $region18: #{forward.9} parent=5 // pred_check_branch
        %158 = sbr.rel (%p156) target = $region20
      $region19: #{forward.9} parent=5 // pred_region
        // Predicated region
        $region21: #{forward.9} parent=19 // pred_check
          %p159 = pneg %p70
        $region22: #{forward.9} parent=19 // pred_check_branch
          %161 = sbr.rel (%p159) target = $region24
        $region23: #{forward.9} parent=19 // pred_region
          %s162 = sand.u32 %s60, 1
          %s163 = scalar_lea.sflag [#allocation3], %s162
          %s164 = sand.u32 %s60, 1
          %s165 = smul.addr %s164, 256
          %s166 = scalar_lea.vmem [#allocation2], %s165
          %s167 = smul.u32 2, %s20
          %169 = vsyncadd %s163, 0
          %s170 = smul.addr %s167, 4
          %s171 = scalar_lea.hbm %s1, %s170
          %s172 = sshll.u32 %s171, 4
          %s173 = int_to_ptr.hbm [resolvable:$true] %s172
          %s174 = sshll.u32 %s166, 4
          %s175 = int_to_ptr.vmem [resolvable:$true] %s174
          %180 = dma.hbm_to_vmem [thread:$0]  %s173, 4096, %s175, %s163, 384, 128, 8
        $region24: #{forward.9} parent=19 // pred_fallthru
          _
        // Predicated region
        $region25: #{forward.9} parent=19 // pred_check
          %p181 = pneg %p96
        $region26: #{forward.9} parent=19 // pred_check_branch
          %183 = sbr.rel (%p181) target = $region28
        $region27: #{forward.9} parent=19 // pred_region
          %s184 = smul.u32 2, %s20
          %p185 = scmp.lt.s32.totalorder %s184, 5
          %s186 = scalar_select %p185, %s184, 5
          %s187 = scalar_lea.vmem %s2, %s186
          %s188 = smul.u32 2, %s20
        $region28: #{forward.9} parent=19 // pred_fallthru
          _
      $region20: #{forward.9} parent=5 // pred_fallthru
        _
      %p189 = scmp.le.s32.totalorder 1, %s12
      %p190 = scmp.lt.s32.totalorder %s12, 4
      %p191 = pnand %p189, %p190
      %p192 = pneg %p191
      // Predicated region
      $region29: #{forward.9} parent=5 // pred_check
        _
      $region30: #{forward.9} parent=5 // pred_check_branch
        %194 = sbr.rel (%p191) target = $region32
      $region31: #{forward.9} parent=5 // pred_region
        %s195 = ssub.s32 %s12, 1
        %s196 = sand.u32 %s63, 1
        %s197 = scalar_lea.sflag [#allocation3], %s196
        %s198 = sand.u32 %s63, 1
        %s199 = smul.addr %s198, 256
        %s200 = scalar_lea.vmem [#allocation2], %s199
        // Predicated region
        $region33: #{forward.9} parent=31 // pred_check
          %p201 = pneg %p76
        $region34: #{forward.9} parent=31 // pred_check_branch
          %203 = sbr.rel (%p201) target = $region36
        $region35: #{forward.9} parent=31 // pred_region
          %205 = dma.done %s197, 4096
        $region36: #{forward.9} parent=31 // pred_fallthru
          _
        %s206 = smul.u32 4, %s21
        %p207 = scmp.lt.s32.totalorder %s206, 3
        %s208 = scalar_select %p207, %s206, 3
        %s209 = smul.addr %s208, 2
        %s210 = smul.addr %s209, 4
        %s211 = scalar_lea.vmem %s0, %s210
        %p212 = pneg %p50
        %p213 = pneg %p47
        %s214 = sand.u32 %s63, 1
        %s215 = scalar_lea.sflag [#allocation3], %s214
        %s216 = sand.u32 %s63, 1
        %s217 = smul.addr %s216, 256
        %s218 = scalar_lea.vmem [#allocation2], %s217
        %p219 = pneg %p76
        %p220 = pneg %p73
        %s221 = smul.u32 2, %s22
        %p222 = scmp.lt.s32.totalorder %s221, 5
        %s223 = scalar_select %p222, %s221, 5
        %s224 = scalar_lea.vmem %s2, %s223
        %p225 = pneg %p102
        %p226 = pneg %p99
        %p227 = pneg %p130
        %p228 = pneg %p127
        %s229 = sand.u32 %s117, 1
        %s230 = sand.u32 %s117, 1
        %s231 = smul.addr %s230, 32
        %s232 = scalar_lea.vmem [#allocation4], %s231
        %s233 = smul.u32 4, %s21
        %p234 = scmp.lt.s32.totalorder %s233, 3
        %s235 = scalar_select %p234, %s233, 3
        %s236 = smul.addr %s235, 2
        %s237 = smul.addr %s236, 4
        %s238 = scalar_lea.vmem %s0, %s237
        %s239 = smul.u32 4, %s21
        %s240 = smul.u32 2, %s22
        %s241 = smul.u32 2, %s22
        %p242 = scmp.lt.s32.totalorder %s241, 5
        %s243 = scalar_select %p242, %s241, 5
        %s244 = scalar_lea.vmem %s2, %s243
        %s245 = smul.u32 2, %s22
        %s246 = smul.u32 4, %s21
        %s247 = smul.u32 2, %s22
        %v248 = vld [vmem:[%s238] sm:$0xff]
        %v249 = vld [vmem:[%s238 + $0x8] sm:$0xff]
        %v250 = vld [vmem:[%s238 + $0x10] sm:$0xff]
        %v251 = vld [vmem:[%s238 + $0x18] sm:$0xff]
        %v252 = vld [vmem:[%s200] sm:$0xff]
        %v253 = vld [vmem:[%s200 + $0x8] sm:$0xff]
        %v254 = vld [vmem:[%s200 + $0x10] sm:$0xff]
        %v255 = vld [vmem:[%s200 + $0x18] sm:$0xff]
        %v256 = vld [vmem:[%s200 + $0x20] sm:$0xff]
        %v257 = vld [vmem:[%s200 + $0x28] sm:$0xff]
        %v258 = vld [vmem:[%s200 + $0x30] sm:$0xff]
        %v259 = vld [vmem:[%s200 + $0x38] sm:$0xff]
        %v260 = vld [vmem:[%s200 + $0x40] sm:$0xff]
        %v261 = vld [vmem:[%s200 + $0x48] sm:$0xff]
        %v262 = vld [vmem:[%s200 + $0x50] sm:$0xff]
        %v263 = vld [vmem:[%s200 + $0x58] sm:$0xff]
        %v264 = vld [vmem:[%s200 + $0x60] sm:$0xff]
        %v265 = vld [vmem:[%s200 + $0x68] sm:$0xff]
        %v266 = vld [vmem:[%s200 + $0x70] sm:$0xff]
        %v267 = vld [vmem:[%s200 + $0x78] sm:$0xff]
        %v268 = vld [vmem:[%s200 + $0x80] sm:$0xff]
        %v269 = vld [vmem:[%s200 + $0x88] sm:$0xff]
        %v270 = vld [vmem:[%s200 + $0x90] sm:$0xff]
        %v271 = vld [vmem:[%s200 + $0x98] sm:$0xff]
        %v272 = vld [vmem:[%s200 + $0xa0] sm:$0xff]
        %v273 = vld [vmem:[%s200 + $0xa8] sm:$0xff]
        %v274 = vld [vmem:[%s200 + $0xb0] sm:$0xff]
        %v275 = vld [vmem:[%s200 + $0xb8] sm:$0xff]
        %v276 = vld [vmem:[%s200 + $0xc0] sm:$0xff]
        %v277 = vld [vmem:[%s200 + $0xc8] sm:$0xff]
        %v278 = vld [vmem:[%s200 + $0xd0] sm:$0xff]
        %v279 = vld [vmem:[%s200 + $0xd8] sm:$0xff]
        %v280 = vld [vmem:[%s200 + $0xe0] sm:$0xff]
        %v281 = vld [vmem:[%s200 + $0xe8] sm:$0xff]
        %v282 = vld [vmem:[%s200 + $0xf0] sm:$0xff]
        %v283 = vld [vmem:[%s200 + $0xf8] sm:$0xff]
        %v284 = vld [vmem:[%s244] sm:$0x3]
        %v285 = vunpack.c.l.bf16 %v284
        %v287 = vperm.slane %v285, 0
        %v288 = vperm.slane %v285, 2
        %v291 = vperm.slane %v287, 0
        %v292 = vperm.slane %v288, 0
        %v297 = vunpack.c.l.b16 %v248
        %v298 = vunpack.c.h.b16 %v248
        %v299 = vunpack.c.l.b16 %v249
        %v300 = vunpack.c.h.b16 %v249
        %v301 = vunpack.c.l.b16 %v250
        %v302 = vunpack.c.h.b16 %v250
        %v303 = vunpack.c.l.b16 %v251
        %v304 = vunpack.c.h.b16 %v251
        %v305 = vpack.c.b16 %v299, %v297
        %v306 = vpack.c.b16 %v300, %v298
        %v307 = vpack.c.b16 %v303, %v301
        %v308 = vpack.c.b16 %v304, %v302
        %v345 = vunpack.c.l.b16 %v252
        %v346 = vunpack.c.h.b16 %v252
        %v347 = vunpack.c.l.b16 %v253
        %v348 = vunpack.c.h.b16 %v253
        %v349 = vunpack.c.l.b16 %v254
        %v350 = vunpack.c.h.b16 %v254
        %v351 = vunpack.c.l.b16 %v255
        %v352 = vunpack.c.h.b16 %v255
        %v353 = vunpack.c.l.b16 %v256
        %v354 = vunpack.c.h.b16 %v256
        %v355 = vunpack.c.l.b16 %v257
        %v356 = vunpack.c.h.b16 %v257
        %v357 = vunpack.c.l.b16 %v258
        %v358 = vunpack.c.h.b16 %v258
        %v359 = vunpack.c.l.b16 %v259
        %v360 = vunpack.c.h.b16 %v259
        %v361 = vunpack.c.l.b16 %v260
        %v362 = vunpack.c.h.b16 %v260
        %v363 = vunpack.c.l.b16 %v261
        %v364 = vunpack.c.h.b16 %v261
        %v365 = vunpack.c.l.b16 %v262
        %v366 = vunpack.c.h.b16 %v262
        %v367 = vunpack.c.l.b16 %v263
        %v368 = vunpack.c.h.b16 %v263
        %v369 = vunpack.c.l.b16 %v264
        %v370 = vunpack.c.h.b16 %v264
        %v371 = vunpack.c.l.b16 %v265
        %v372 = vunpack.c.h.b16 %v265
        %v373 = vunpack.c.l.b16 %v266
        %v374 = vunpack.c.h.b16 %v266
        %v375 = vunpack.c.l.b16 %v267
        %v376 = vunpack.c.h.b16 %v267
        %v377 = vunpack.c.l.b16 %v268
        %v378 = vunpack.c.h.b16 %v268
        %v379 = vunpack.c.l.b16 %v269
        %v380 = vunpack.c.h.b16 %v269
        %v381 = vunpack.c.l.b16 %v270
        %v382 = vunpack.c.h.b16 %v270
        %v383 = vunpack.c.l.b16 %v271
        %v384 = vunpack.c.h.b16 %v271
        %v385 = vunpack.c.l.b16 %v272
        %v386 = vunpack.c.h.b16 %v272
        %v387 = vunpack.c.l.b16 %v273
        %v388 = vunpack.c.h.b16 %v273
        %v389 = vunpack.c.l.b16 %v274
        %v390 = vunpack.c.h.b16 %v274
        %v391 = vunpack.c.l.b16 %v275
        %v392 = vunpack.c.h.b16 %v275
        %v393 = vunpack.c.l.b16 %v276
        %v394 = vunpack.c.h.b16 %v276
        %v395 = vunpack.c.l.b16 %v277
        %v396 = vunpack.c.h.b16 %v277
        %v397 = vunpack.c.l.b16 %v278
        %v398 = vunpack.c.h.b16 %v278
        %v399 = vunpack.c.l.b16 %v279
        %v400 = vunpack.c.h.b16 %v279
        %v401 = vunpack.c.l.b16 %v280
        %v402 = vunpack.c.h.b16 %v280
        %v403 = vunpack.c.l.b16 %v281
        %v404 = vunpack.c.h.b16 %v281
        %v405 = vunpack.c.l.b16 %v282
        %v406 = vunpack.c.h.b16 %v282
        %v407 = vunpack.c.l.b16 %v283
        %v408 = vunpack.c.h.b16 %v283
        %v409 = vpack.c.b16 %v347, %v345
        %v410 = vpack.c.b16 %v348, %v346
        %v411 = vpack.c.b16 %v351, %v349
        %v412 = vpack.c.b16 %v352, %v350
        %v413 = vpack.c.b16 %v355, %v353
        %v414 = vpack.c.b16 %v356, %v354
        %v415 = vpack.c.b16 %v359, %v357
        %v416 = vpack.c.b16 %v360, %v358
        %v417 = vpack.c.b16 %v363, %v361
        %v418 = vpack.c.b16 %v364, %v362
        %v419 = vpack.c.b16 %v367, %v365
        %v420 = vpack.c.b16 %v368, %v366
        %v421 = vpack.c.b16 %v371, %v369
        %v422 = vpack.c.b16 %v372, %v370
        %v423 = vpack.c.b16 %v375, %v373
        %v424 = vpack.c.b16 %v376, %v374
        %v425 = vpack.c.b16 %v379, %v377
        %v426 = vpack.c.b16 %v380, %v378
        %v427 = vpack.c.b16 %v383, %v381
        %v428 = vpack.c.b16 %v384, %v382
        %v429 = vpack.c.b16 %v387, %v385
        %v430 = vpack.c.b16 %v388, %v386
        %v431 = vpack.c.b16 %v391, %v389
        %v432 = vpack.c.b16 %v392, %v390
        %v433 = vpack.c.b16 %v395, %v393
        %v434 = vpack.c.b16 %v396, %v394
        %v435 = vpack.c.b16 %v399, %v397
        %v436 = vpack.c.b16 %v400, %v398
        %v437 = vpack.c.b16 %v403, %v401
        %v438 = vpack.c.b16 %v404, %v402
        %v439 = vpack.c.b16 %v407, %v405
        %v440 = vpack.c.b16 %v408, %v406
        %473 = vmatpush.bf16.msra.mxu0 %v423
        %474 = vmatpush.bf16.msra.mxu0 %v421
        %475 = vmatpush.bf16.msra.mxu0 %v419
        %476 = vmatpush.bf16.msra.mxu0 %v417
        %477 = vmatpush.bf16.msra.mxu0 %v415
        %478 = vmatpush.bf16.msra.mxu0 %v413
        %479 = vmatpush.bf16.msra.mxu0 %v411
        %480 = vmatpush.bf16.msra.mxu0 %v409
        %481 = vmatmul.bf16.gmra.mxu0 %v305
        %v482 = vpop.f32.mrf.mxu0
        %v483 = vadd.f32 %v291, %v482
        %v484 = vpop.f32.mrf.mxu0
        %v485 = vadd.f32 %v291, %v484
        %486 = vmatmul.bf16.gmra.mxu0 %v307
        %v487 = vpop.f32.mrf.mxu0
        %v488 = vadd.f32 %v291, %v487
        %v489 = vpop.f32.mrf.mxu0
        %v490 = vadd.f32 %v291, %v489
        %491 = vdwg.mxu0
        %492 = vmatpush.bf16.msra.mxu0 %v439
        %493 = vmatpush.bf16.msra.mxu0 %v437
        %494 = vmatpush.bf16.msra.mxu0 %v435
        %495 = vmatpush.bf16.msra.mxu0 %v433
        %496 = vmatpush.bf16.msra.mxu0 %v431
        %497 = vmatpush.bf16.msra.mxu0 %v429
        %498 = vmatpush.bf16.msra.mxu0 %v427
        %499 = vmatpush.bf16.msra.mxu0 %v425
        %500 = vmatmul.bf16.gmra.mxu0 %v306
        %v501 = vpop.f32.mrf.mxu0
        %v502 = vadd.f32 %v483, %v501
        %v503 = vpop.f32.mrf.mxu0
        %v504 = vadd.f32 %v485, %v503
        %505 = vmatmul.bf16.gmra.mxu0 %v308
        %v506 = vpop.f32.mrf.mxu0
        %v507 = vadd.f32 %v488, %v506
        %v508 = vpop.f32.mrf.mxu0
        %v509 = vadd.f32 %v490, %v508
        %510 = vdwg.mxu0
        %511 = vmatpush.bf16.msra.mxu0 %v424
        %512 = vmatpush.bf16.msra.mxu0 %v422
        %513 = vmatpush.bf16.msra.mxu0 %v420
        %514 = vmatpush.bf16.msra.mxu0 %v418
        %515 = vmatpush.bf16.msra.mxu0 %v416
        %516 = vmatpush.bf16.msra.mxu0 %v414
        %517 = vmatpush.bf16.msra.mxu0 %v412
        %518 = vmatpush.bf16.msra.mxu0 %v410
        %519 = vmatmul.bf16.gmra.mxu0 %v305
        %v520 = vpop.f32.mrf.mxu0
        %v521 = vadd.f32 %v292, %v520
        %v522 = vpop.f32.mrf.mxu0
        %v523 = vadd.f32 %v292, %v522
        %524 = vmatmul.bf16.gmra.mxu0 %v307
        %v525 = vpop.f32.mrf.mxu0
        %v526 = vadd.f32 %v292, %v525
        %v527 = vpop.f32.mrf.mxu0
        %v528 = vadd.f32 %v292, %v527
        %529 = vdwg.mxu0
        %530 = vmatpush.bf16.msra.mxu0 %v440
        %531 = vmatpush.bf16.msra.mxu0 %v438
        %532 = vmatpush.bf16.msra.mxu0 %v436
        %533 = vmatpush.bf16.msra.mxu0 %v434
        %534 = vmatpush.bf16.msra.mxu0 %v432
        %535 = vmatpush.bf16.msra.mxu0 %v430
        %536 = vmatpush.bf16.msra.mxu0 %v428
        %537 = vmatpush.bf16.msra.mxu0 %v426
        %538 = vmatmul.bf16.gmra.mxu0 %v306
        %v539 = vpop.f32.mrf.mxu0
        %v540 = vadd.f32 %v521, %v539
        %v541 = vpop.f32.mrf.mxu0
        %v542 = vadd.f32 %v523, %v541
        %543 = vmatmul.bf16.gmra.mxu0 %v308
        %v544 = vpop.f32.mrf.mxu0
        %v545 = vadd.f32 %v526, %v544
        %v546 = vpop.f32.mrf.mxu0
        %v547 = vadd.f32 %v528, %v546
        %548 = vdwg.mxu0
        %v549 = vpack.c.bf16 %v540, %v502
        %v550 = vpack.c.bf16 %v542, %v504
        %v551 = vpack.c.bf16 %v545, %v507
        %v552 = vpack.c.bf16 %v547, %v509
        %553 = vst [vmem:[%s232] sm:$0xff] %v549
        %554 = vst [vmem:[%s232 + $0x8] sm:$0xff] %v550
        %555 = vst [vmem:[%s232 + $0x10] sm:$0xff] %v551
        %556 = vst [vmem:[%s232 + $0x18] sm:$0xff] %v552
        %s557 = sand.u32 %s117, 1
        %s558 = sand.u32 %s117, 1
        %s559 = smul.addr %s558, 32
        %s560 = scalar_lea.vmem [#allocation4], %s559
        // Predicated region
        $region37: #{forward.9} parent=31 // pred_check
          %p561 = pneg %p127
        $region38: #{forward.9} parent=31 // pred_check_branch
          %563 = sbr.rel (%p561) target = $region40
        $region39: #{forward.9} parent=31 // pred_region
          %s564 = smul.u32 4, %s21
          %s565 = smul.u32 2, %s22
          %s566 = smul.addr %s564, 6
          %s567 = sadd.s32 %s565, %s566
          %s568 = smul.addr %s567, 4
          %s569 = scalar_lea.vmem %s3, %s568
          // Predicated region
          $region41: #{forward.9} parent=39 // pred_check
            _
          $region42: #{forward.9} parent=39 // pred_check_branch
            %571 = sbr.rel (0) target = $region44
          $region43: #{forward.9} parent=39 // pred_region
            // Predicated region
            $region45: #{forward.9} parent=43 // pred_check
              _
            $region46: #{forward.9} parent=43 // pred_check_branch
              %573 = sbr.rel (0) target = $region48
            $region47: #{forward.9} parent=43 // pred_region
              // Predicated region
              $region60: #{forward.9} parent=47 // pred_check
                _
              $region61: #{forward.9} parent=47 // pred_check_branch
                %595 = sbr.rel (0) target = $region63
              $region62: #{forward.9} parent=47 // pred_region
                loop: start=0, step=1, limit=1
                $region64: #{forward.9} parent=62 // loop_pre_header
                  _
                $region65: #{forward.9} parent=62 // loop_header
                  %s597 = sphi 0, %s601
                  %p598 = scmp.ge.s32.totalorder %s597, 1
                  %s602 = sphi %s560, %s560
                  %s603 = sphi %s569, %s569
                $region66: #{forward.9} parent=62 // loop_header_branch
                  %600 = sbr.rel (%p598) target = $region70
                $region67: #{forward.9} parent=62 // loop_body
                  %v604 = vld [vmem:[%s602] sm:$0xff]
                  %605 = vst [vmem:[%s603] sm:$0xff] %v604
                  %v606 = vld [vmem:[%s602 + $0x8] sm:$0xff]
                  %607 = vst [vmem:[%s603 + $0x18] sm:$0xff] %v606
                  %v608 = vld [vmem:[%s602 + $0x10] sm:$0xff]
                  %609 = vst [vmem:[%s603 + $0x30] sm:$0xff] %v608
                  %v610 = vld [vmem:[%s602 + $0x18] sm:$0xff]
                  %611 = vst [vmem:[%s603 + $0x48] sm:$0xff] %v610
                $region68: #{forward.9} parent=62 // loop_footer
                  %s601 = sadd.s32 1, %s597
                $region69: #{forward.9} parent=62 // loop_footer_branch
                  %596 = sbr.rel target = $region65
                $region70: #{forward.9} parent=62 // loop_exit
                  _
              $region63: #{forward.9} parent=47 // pred_fallthru
                _
              // Predicated region
              $region71: #{forward.9} parent=47 // pred_check
                _
              $region72: #{forward.9} parent=47 // pred_check_branch
                %613 = sbr.rel target = $region74
              $region73: #{forward.9} parent=47 // pred_region
                _
              $region74: #{forward.9} parent=47 // pred_fallthru
                _
            $region48: #{forward.9} parent=43 // pred_fallthru
              _
            // Predicated region
            $region49: #{forward.9} parent=43 // pred_check
              _
            $region50: #{forward.9} parent=43 // pred_check_branch
              %575 = sbr.rel target = $region52
            $region51: #{forward.9} parent=43 // pred_region
              %s577 = ssub.s32 256, 1
              loop: start=0, step=1, limit=1
              $region53: #{forward.9} parent=51 // loop_pre_header
                _
              $region54: #{forward.9} parent=51 // loop_header
                %s579 = sphi 0, %s583
                %p580 = scmp.ge.s32.totalorder %s579, 1
                %s584 = sphi %s560, %s560
                %s585 = sphi %s569, %s569
              $region55: #{forward.9} parent=51 // loop_header_branch
                %582 = sbr.rel (%p580) target = $region59
              $region56: #{forward.9} parent=51 // loop_body
                %v586 = vld [vmem:[%s584] sm:%s577]
                %587 = vst [vmem:[%s585] sm:%s577] %v586
                %v588 = vld [vmem:[%s584 + $0x8] sm:%s577]
                %589 = vst [vmem:[%s585 + $0x18] sm:%s577] %v588
                %v590 = vld [vmem:[%s584 + $0x10] sm:%s577]
                %591 = vst [vmem:[%s585 + $0x30] sm:%s577] %v590
                %v592 = vld [vmem:[%s584 + $0x18] sm:%s577]
                %593 = vst [vmem:[%s585 + $0x48] sm:%s577] %v592
              $region57: #{forward.9} parent=51 // loop_footer
                %s583 = sadd.s32 1, %s579
              $region58: #{forward.9} parent=51 // loop_footer_branch
                %578 = sbr.rel target = $region54
              $region59: #{forward.9} parent=51 // loop_exit
                _
            $region52: #{forward.9} parent=43 // pred_fallthru
              _
          $region44: #{forward.9} parent=39 // pred_fallthru
            _
          %614 = vnop
        $region40: #{forward.9} parent=31 // pred_fallthru
          _
      $region32: #{forward.9} parent=5 // pred_fallthru
        _
      %p615 = scmp.le.s32.totalorder 2, %s12
      // Predicated region
      $region75: #{forward.9} parent=5 // pred_check
        %p616 = pneg %p615
      $region76: #{forward.9} parent=5 // pred_check_branch
        %618 = sbr.rel (%p616) target = $region78
      $region77: #{forward.9} parent=5 // pred_region
        %s619 = ssub.s32 %s12, 2
        // Predicated region
        $region79: #{forward.9} parent=77 // pred_check
          %p620 = pneg %p133
        $region80: #{forward.9} parent=77 // pred_check_branch
          %622 = sbr.rel (%p620) target = $region82
        $region81: #{forward.9} parent=77 // pred_region
          %s623 = sand.u32 %s118, 1
          %s624 = sand.u32 %s118, 1
          %s625 = smul.addr %s624, 32
          %s626 = scalar_lea.vmem [#allocation4], %s625
        $region82: #{forward.9} parent=77 // pred_fallthru
          _
      $region78: #{forward.9} parent=5 // pred_fallthru
        _
    $region6: #{forward.9} parent=1 // loop_footer
      %s16 = sadd.s32 1, %s12
    $region7: #{forward.9} parent=1 // loop_footer_branch
      %11 = sbr.rel target = $region3
    $region8: #{forward.9} parent=1 // loop_exit
      _
    %627 = vsyncpa [#allocation3], 1
    %s628 = scalar_lea.sflag [#allocation3], 1
    %629 = vsyncpa %s628, 1

// kernel: forward.10
$region0: #{forward.10}
  #allocation0 [shape = 'u32[]', space=smem, size = 0x4, offset = 0x4, fixed_abs, tag = 'smem constant byte address 0x4 - core index']
  #allocation1 [shape = 'u32[72,128]{1,0:T(1,128)}', space=vmem, size = 0x9000, scoped, tag = 'internal scratch']
  #allocation2 [shape = 'f32[2,16,1]{2,1,0:T(8,128)}', space=vmem, size = 0x4000, scoped, tag = 'scratch operand']
  #allocation3 [shape = 'f32[2,16,1]{2,1,0:T(8,128)}', space=vmem, size = 0x4000, scoped, tag = 'scratch operand']
  #allocation4 [shape = 'f32[2,16,128]{2,1,0:T(8,128)}', space=vmem, size = 0x4000, scoped, tag = 'scratch operand']
  %s0 = inlined_call_operand.vmem [shape: bf16[32,768], index: 0, kind: input, shape index: {}, may-alias: {0,1,2}]
  %s1 = inlined_call_operand.vmem [shape: bf16[32,768], index: 1, kind: input, shape index: {}, may-alias: {0,1,2}]
  %s2 = inlined_call_operand.vmem [shape: bf16[32,768], index: 2, kind: input, shape index: {}, may-alias: {0,1,2}]
  %s3 = inlined_call_operand.vmem [shape: bf16[32,256], index: 3, kind: input, shape index: {}]
  %s4 = inlined_call_operand.vmem [shape: bf16[256,256], index: 4, kind: input, shape index: {}]
  %s5 = inlined_call_operand.vmem [shape: bf16[1,256], index: 5, kind: input, shape index: {}]
  %s6 = inlined_call_operand.vmem [shape: bf16[1,256], index: 6, kind: input, shape index: {}]
  %s7 = inlined_call_operand.vmem [shape: bf16[1,256], index: 7, kind: input, shape index: {}]
  %s8 = inlined_call_operand.vmem [shape: bf16[32,256], index: 8, kind: output, shape index: {}]
  %s9 = sld [smem:[#allocation0]]
  $region187: #{forward.10} parent=0
    _
  %s11 = ssub.s32 1, %s9
  %s12 = scalar_select 0, %s11, %s9
  $region1: #{forward.10} parent=0
    #allocation5 [shape = 'u8[16384]{0}', space=vmem, size = 0x4000, scoped, tag = 'input window, operand 0']
    #allocation6 [shape = 'u8[16384]{0}', space=vmem, size = 0x4000, scoped, tag = 'input window, operand 1']
    #allocation7 [shape = 'u8[16384]{0}', space=vmem, size = 0x4000, scoped, tag = 'input window, operand 2']
    loop: start=0, step=1, limit=4
    $region2: #{forward.10} parent=1 // loop_pre_header
      _
    $region3: #{forward.10} parent=1 // loop_header
      %s14 = sphi 0, %s18
      %p15 = scmp.ge.s32.totalorder %s14, 4
      %s21 = sphi 0, %s33
      %s22 = sphi 0, %s29
      %s23 = sphi 0, %s21
      %s24 = sphi 0, %s22
      %s25 = sphi 0, %s23
      %s26 = sphi 0, %s24
      %s36 = sphi 0, %s38
      %s39 = sphi 0, %s36
      %s40 = sphi 0, %s39
      %s56 = sphi 0, %s40
      %s64 = sphi 0, %s66
      %s67 = sphi 0, %s64
      %s68 = sphi 0, %s67
      %s84 = sphi 0, %s68
      %s92 = sphi 0, %s94
      %s95 = sphi 0, %s92
      %s96 = sphi 0, %s95
      %s112 = sphi 0, %s96
      %s118 = sphi 0, %s120
      %s121 = sphi 0, %s118
      %s122 = sphi 0, %s121
      %s138 = sphi 0, %s122
      %s142 = sphi 0, %s142
      %s144 = sphi 0, %s142
      %s145 = sphi 0, %s144
      %s159 = sphi 0, %s145
      %s163 = sphi 0, %s163
      %s165 = sphi 0, %s163
      %s166 = sphi 0, %s165
      %s180 = sphi 0, %s166
      %s184 = sphi 0, %s184
      %s186 = sphi 0, %s184
      %s187 = sphi 0, %s186
      %s201 = sphi 0, %s187
      %s205 = sphi 0, %s205
      %s207 = sphi 0, %s205
      %s208 = sphi 0, %s207
      %s222 = sphi 0, %s208
      %s228 = sphi 0, %s230
      %s231 = sphi 0, %s228
      %s232 = sphi 0, %s231
      %s248 = sphi 0, %s232
    $region4: #{forward.10} parent=1 // loop_header_branch
      %17 = sbr.rel (%p15) target = $region8
    $region5: #{forward.10} parent=1 // loop_body
      %s19 = ssub.s32 %s14, 1
      %s20 = ssub.s32 %s14, 2
      %s27 = sadd.s32 1, %s22
      %p28 = scmp.ge.s32.totalorder %s27, 1
      %s29 = scalar_select %p28, 0, %s27
      %s30 = sadd.s32 1, %s21
      %s31 = scalar_select %p28, %s30, %s21
      %p32 = scmp.ge.s32.totalorder %s31, 2
      %s33 = scalar_select %p32, 0, %s31
      %s34 = ssub.s32 %s21, %s33
      %p35 = scmp.eq.s32.totalorder %s34, 0
      %s37 = sadd.s32 %s36, 1
      %s38 = scalar_select %p35, %s36, %s37
      %p41 = pneg %p35
      %p42 = scmp.eq.s32.totalorder %s14, 1
      %p43 = por %p41, %p42
      %p44 = scmp.ne.s32.totalorder %s36, %s39
      %p45 = scmp.eq.s32.totalorder %s14, 0
      %p46 = por %p44, %p45
      %p47 = scmp.ne.s32.totalorder %s36, %s39
      %p48 = scmp.eq.s32.totalorder %s19, 1
      %p49 = por %p47, %p48
      %p50 = scmp.ne.s32.totalorder %s39, %s40
      %p51 = scmp.eq.s32.totalorder %s19, 0
      %p52 = por %p50, %p51
      %p53 = scmp.ne.s32.totalorder %s39, %s40
      %p54 = scmp.eq.s32.totalorder %s20, 1
      %p55 = por %p53, %p54
      %p57 = scmp.ne.s32.totalorder %s40, %s56
      %p58 = scmp.eq.s32.totalorder %s20, 0
      %p59 = por %p57, %p58
      %s60 = sadd.s32 %s21, %s22
      %s61 = sadd.s32 %s33, %s29
      %s62 = ssub.s32 %s60, %s61
      %p63 = scmp.eq.s32.totalorder %s62, 0
      %s65 = sadd.s32 %s64, 1
      %s66 = scalar_select %p63, %s64, %s65
      %p69 = pneg %p63
      %p70 = scmp.eq.s32.totalorder %s14, 1
      %p71 = por %p69, %p70
      %p72 = scmp.ne.s32.totalorder %s64, %s67
      %p73 = scmp.eq.s32.totalorder %s14, 0
      %p74 = por %p72, %p73
      %p75 = scmp.ne.s32.totalorder %s64, %s67
      %p76 = scmp.eq.s32.totalorder %s19, 1
      %p77 = por %p75, %p76
      %p78 = scmp.ne.s32.totalorder %s67, %s68
      %p79 = scmp.eq.s32.totalorder %s19, 0
      %p80 = por %p78, %p79
      %p81 = scmp.ne.s32.totalorder %s67, %s68
      %p82 = scmp.eq.s32.totalorder %s20, 1
      %p83 = por %p81, %p82
      %p85 = scmp.ne.s32.totalorder %s68, %s84
      %p86 = scmp.eq.s32.totalorder %s20, 0
      %p87 = por %p85, %p86
      %s88 = sadd.s32 %s21, %s22
      %s89 = sadd.s32 %s33, %s29
      %s90 = ssub.s32 %s88, %s89
      %p91 = scmp.eq.s32.totalorder %s90, 0
      %s93 = sadd.s32 %s92, 1
      %s94 = scalar_select %p91, %s92, %s93
      %p97 = pneg %p91
      %p98 = scmp.eq.s32.totalorder %s14, 1
      %p99 = por %p97, %p98
      %p100 = scmp.ne.s32.totalorder %s92, %s95
      %p101 = scmp.eq.s32.totalorder %s14, 0
      %p102 = por %p100, %p101
      %p103 = scmp.ne.s32.totalorder %s92, %s95
      %p104 = scmp.eq.s32.totalorder %s19, 1
      %p105 = por %p103, %p104
      %p106 = scmp.ne.s32.totalorder %s95, %s96
      %p107 = scmp.eq.s32.totalorder %s19, 0
      %p108 = por %p106, %p107
      %p109 = scmp.ne.s32.totalorder %s95, %s96
      %p110 = scmp.eq.s32.totalorder %s20, 1
      %p111 = por %p109, %p110
      %p113 = scmp.ne.s32.totalorder %s96, %s112
      %p114 = scmp.eq.s32.totalorder %s20, 0
      %p115 = por %p113, %p114
      %s116 = ssub.s32 %s21, %s33
      %p117 = scmp.eq.s32.totalorder %s116, 0
      %s119 = sadd.s32 %s118, 1
      %s120 = scalar_select %p117, %s118, %s119
      %p123 = pneg %p117
      %p124 = scmp.eq.s32.totalorder %s14, 1
      %p125 = por %p123, %p124
      %p126 = scmp.ne.s32.totalorder %s118, %s121
      %p127 = scmp.eq.s32.totalorder %s14, 0
      %p128 = por %p126, %p127
      %p129 = scmp.ne.s32.totalorder %s118, %s121
      %p130 = scmp.eq.s32.totalorder %s19, 1
      %p131 = por %p129, %p130
      %p132 = scmp.ne.s32.totalorder %s121, %s122
      %p133 = scmp.eq.s32.totalorder %s19, 0
      %p134 = por %p132, %p133
      %p135 = scmp.ne.s32.totalorder %s121, %s122
      %p136 = scmp.eq.s32.totalorder %s20, 1
      %p137 = por %p135, %p136
      %p139 = scmp.ne.s32.totalorder %s122, %s138
      %p140 = scmp.eq.s32.totalorder %s20, 0
      %p141 = por %p139, %p140
      %s143 = sadd.s32 %s142, 1
      %p146 = scmp.eq.s32.totalorder %s14, 1
      %p147 = scmp.ne.s32.totalorder %s142, %s144
      %p148 = scmp.eq.s32.totalorder %s14, 0
      %p149 = por %p147, %p148
      %p150 = scmp.ne.s32.totalorder %s142, %s144
      %p151 = scmp.eq.s32.totalorder %s19, 1
      %p152 = por %p150, %p151
      %p153 = scmp.ne.s32.totalorder %s144, %s145
      %p154 = scmp.eq.s32.totalorder %s19, 0
      %p155 = por %p153, %p154
      %p156 = scmp.ne.s32.totalorder %s144, %s145
      %p157 = scmp.eq.s32.totalorder %s20, 1
      %p158 = por %p156, %p157
      %p160 = scmp.ne.s32.totalorder %s145, %s159
      %p161 = scmp.eq.s32.totalorder %s20, 0
      %p162 = por %p160, %p161
      %s164 = sadd.s32 %s163, 1
      %p167 = scmp.eq.s32.totalorder %s14, 1
      %p168 = scmp.ne.s32.totalorder %s163, %s165
      %p169 = scmp.eq.s32.totalorder %s14, 0
      %p170 = por %p168, %p169
      %p171 = scmp.ne.s32.totalorder %s163, %s165
      %p172 = scmp.eq.s32.totalorder %s19, 1
      %p173 = por %p171, %p172
      %p174 = scmp.ne.s32.totalorder %s165, %s166
      %p175 = scmp.eq.s32.totalorder %s19, 0
      %p176 = por %p174, %p175
      %p177 = scmp.ne.s32.totalorder %s165, %s166
      %p178 = scmp.eq.s32.totalorder %s20, 1
      %p179 = por %p177, %p178
      %p181 = scmp.ne.s32.totalorder %s166, %s180
      %p182 = scmp.eq.s32.totalorder %s20, 0
      %p183 = por %p181, %p182
      %s185 = sadd.s32 %s184, 1
      %p188 = scmp.eq.s32.totalorder %s14, 1
      %p189 = scmp.ne.s32.totalorder %s184, %s186
      %p190 = scmp.eq.s32.totalorder %s14, 0
      %p191 = por %p189, %p190
      %p192 = scmp.ne.s32.totalorder %s184, %s186
      %p193 = scmp.eq.s32.totalorder %s19, 1
      %p194 = por %p192, %p193
      %p195 = scmp.ne.s32.totalorder %s186, %s187
      %p196 = scmp.eq.s32.totalorder %s19, 0
      %p197 = por %p195, %p196
      %p198 = scmp.ne.s32.totalorder %s186, %s187
      %p199 = scmp.eq.s32.totalorder %s20, 1
      %p200 = por %p198, %p199
      %p202 = scmp.ne.s32.totalorder %s187, %s201
      %p203 = scmp.eq.s32.totalorder %s20, 0
      %p204 = por %p202, %p203
      %s206 = sadd.s32 %s205, 1
      %p209 = scmp.eq.s32.totalorder %s14, 1
      %p210 = scmp.ne.s32.totalorder %s205, %s207
      %p211 = scmp.eq.s32.totalorder %s14, 0
      %p212 = por %p210, %p211
      %p213 = scmp.ne.s32.totalorder %s205, %s207
      %p214 = scmp.eq.s32.totalorder %s19, 1
      %p215 = por %p213, %p214
      %p216 = scmp.ne.s32.totalorder %s207, %s208
      %p217 = scmp.eq.s32.totalorder %s19, 0
      %p218 = por %p216, %p217
      %p219 = scmp.ne.s32.totalorder %s207, %s208
      %p220 = scmp.eq.s32.totalorder %s20, 1
      %p221 = por %p219, %p220
      %p223 = scmp.ne.s32.totalorder %s208, %s222
      %p224 = scmp.eq.s32.totalorder %s20, 0
      %p225 = por %p223, %p224
      %s226 = ssub.s32 %s21, %s33
      %p227 = scmp.eq.s32.totalorder %s226, 0
      %s229 = sadd.s32 %s228, 1
      %s230 = scalar_select %p227, %s228, %s229
      %p233 = pneg %p227
      %p234 = scmp.eq.s32.totalorder %s14, 1
      %p235 = por %p233, %p234
      %p236 = scmp.ne.s32.totalorder %s228, %s231
      %p237 = scmp.eq.s32.totalorder %s14, 0
      %p238 = por %p236, %p237
      %p239 = scmp.ne.s32.totalorder %s228, %s231
      %p240 = scmp.eq.s32.totalorder %s19, 1
      %p241 = por %p239, %p240
      %p242 = scmp.ne.s32.totalorder %s231, %s232
      %p243 = scmp.eq.s32.totalorder %s19, 0
      %p244 = por %p242, %p243
      %p245 = scmp.ne.s32.totalorder %s231, %s232
      %p246 = scmp.eq.s32.totalorder %s20, 1
      %p247 = por %p245, %p246
      %p249 = scmp.ne.s32.totalorder %s232, %s248
      %p250 = scmp.eq.s32.totalorder %s20, 0
      %p251 = por %p249, %p250
      %p252 = scmp.le.s32.totalorder 1, %s14
      %p253 = scmp.lt.s32.totalorder %s14, 3
      %p254 = pnand %p252, %p253
      %p255 = pneg %p254
      // Predicated region
      $region9: #{forward.10} parent=5 // pred_check
        _
      $region10: #{forward.10} parent=5 // pred_check_branch
        %257 = sbr.rel (%p254) target = $region12
      $region11: #{forward.10} parent=5 // pred_region
        %s258 = ssub.s32 %s14, 1
        // Predicated region
        $region13: #{forward.10} parent=11 // pred_check
          %p259 = pneg %p155
        $region14: #{forward.10} parent=11 // pred_check_branch
          %261 = sbr.rel (%p259) target = $region16
        $region15: #{forward.10} parent=11 // pred_region
          _
        $region16: #{forward.10} parent=11 // pred_fallthru
          _
        // Predicated region
        $region17: #{forward.10} parent=11 // pred_check
          %p262 = pneg %p176
        $region18: #{forward.10} parent=11 // pred_check_branch
          %264 = sbr.rel (%p262) target = $region20
        $region19: #{forward.10} parent=11 // pred_region
          _
        $region20: #{forward.10} parent=11 // pred_fallthru
          _
        // Predicated region
        $region21: #{forward.10} parent=11 // pred_check
          %p265 = pneg %p197
        $region22: #{forward.10} parent=11 // pred_check_branch
          %267 = sbr.rel (%p265) target = $region24
        $region23: #{forward.10} parent=11 // pred_region
          _
        $region24: #{forward.10} parent=11 // pred_fallthru
          _
        // Predicated region
        $region25: #{forward.10} parent=11 // pred_check
          %p268 = pneg %p218
        $region26: #{forward.10} parent=11 // pred_check_branch
          %270 = sbr.rel (%p268) target = $region28
        $region27: #{forward.10} parent=11 // pred_region
          _
        $region28: #{forward.10} parent=11 // pred_fallthru
          _
      $region12: #{forward.10} parent=5 // pred_fallthru
        _
      %p271 = scmp.lt.s32.totalorder %s14, 2
      // Predicated region
      $region29: #{forward.10} parent=5 // pred_check
        %p272 = pneg %p271
      $region30: #{forward.10} parent=5 // pred_check_branch
        %274 = sbr.rel (%p272) target = $region32
      $region31: #{forward.10} parent=5 // pred_region
        // Predicated region
        $region33: #{forward.10} parent=31 // pred_check
          %p275 = pneg %p46
        $region34: #{forward.10} parent=31 // pred_check_branch
          %277 = sbr.rel (%p275) target = $region36
        $region35: #{forward.10} parent=31 // pred_region
          %s278 = sand.u32 %s36, 1
          %s279 = sand.u32 %s36, 1
          %s280 = smul.addr %s279, 16
          %s281 = scalar_lea.vmem [#allocation5], %s280
          %s282 = smul.u32 2, %s21
          %s283 = smul.addr %s282, 6
          %s284 = smul.addr %s283, 4
          %s285 = scalar_lea.vmem %s0, %s284
          // Predicated region
          $region37: #{forward.10} parent=35 // pred_check
            _
          $region38: #{forward.10} parent=35 // pred_check_branch
            %287 = sbr.rel (0) target = $region40
          $region39: #{forward.10} parent=35 // pred_region
            // Predicated region
            $region41: #{forward.10} parent=39 // pred_check
              _
            $region42: #{forward.10} parent=39 // pred_check_branch
              %289 = sbr.rel (0) target = $region44
            $region43: #{forward.10} parent=39 // pred_region
              // Predicated region
              $region56: #{forward.10} parent=43 // pred_check
                _
              $region57: #{forward.10} parent=43 // pred_check_branch
                %307 = sbr.rel (0) target = $region59
              $region58: #{forward.10} parent=43 // pred_region
                loop: start=0, step=1, limit=1
                $region60: #{forward.10} parent=58 // loop_pre_header
                  _
                $region61: #{forward.10} parent=58 // loop_header
                  %s309 = sphi 0, %s313
                  %p310 = scmp.ge.s32.totalorder %s309, 1
                  %s314 = sphi %s285, %s285
                  %s315 = sphi %s281, %s281
                $region62: #{forward.10} parent=58 // loop_header_branch
                  %312 = sbr.rel (%p310) target = $region66
                $region63: #{forward.10} parent=58 // loop_body
                  %v316 = vld [vmem:[%s314] sm:$0xff]
                  %317 = vst [vmem:[%s315] sm:$0xff] %v316
                  %v318 = vld [vmem:[%s314 + $0x18] sm:$0xff]
                  %319 = vst [vmem:[%s315 + $0x8] sm:$0xff] %v318
                $region64: #{forward.10} parent=58 // loop_footer
                  %s313 = sadd.s32 1, %s309
                $region65: #{forward.10} parent=58 // loop_footer_branch
                  %308 = sbr.rel target = $region61
                $region66: #{forward.10} parent=58 // loop_exit
                  _
              $region59: #{forward.10} parent=43 // pred_fallthru
                _
              // Predicated region
              $region67: #{forward.10} parent=43 // pred_check
                _
              $region68: #{forward.10} parent=43 // pred_check_branch
                %321 = sbr.rel target = $region70
              $region69: #{forward.10} parent=43 // pred_region
                _
              $region70: #{forward.10} parent=43 // pred_fallthru
                _
            $region44: #{forward.10} parent=39 // pred_fallthru
              _
            // Predicated region
            $region45: #{forward.10} parent=39 // pred_check
              _
            $region46: #{forward.10} parent=39 // pred_check_branch
              %291 = sbr.rel target = $region48
            $region47: #{forward.10} parent=39 // pred_region
              %s293 = ssub.s32 256, 1
              loop: start=0, step=1, limit=1
              $region49: #{forward.10} parent=47 // loop_pre_header
                _
              $region50: #{forward.10} parent=47 // loop_header
                %s295 = sphi 0, %s299
                %p296 = scmp.ge.s32.totalorder %s295, 1
                %s300 = sphi %s285, %s285
                %s301 = sphi %s281, %s281
              $region51: #{forward.10} parent=47 // loop_header_branch
                %298 = sbr.rel (%p296) target = $region55
              $region52: #{forward.10} parent=47 // loop_body
                %v302 = vld [vmem:[%s300] sm:%s293]
                %303 = vst [vmem:[%s301] sm:%s293] %v302
                %v304 = vld [vmem:[%s300 + $0x18] sm:%s293]
                %305 = vst [vmem:[%s301 + $0x8] sm:%s293] %v304
              $region53: #{forward.10} parent=47 // loop_footer
                %s299 = sadd.s32 1, %s295
              $region54: #{forward.10} parent=47 // loop_footer_branch
                %294 = sbr.rel target = $region50
              $region55: #{forward.10} parent=47 // loop_exit
                _
            $region48: #{forward.10} parent=39 // pred_fallthru
              _
          $region40: #{forward.10} parent=35 // pred_fallthru
            _
          %322 = vnop
        $region36: #{forward.10} parent=31 // pred_fallthru
          _
        // Predicated region
        $region71: #{forward.10} parent=31 // pred_check
          %p323 = pneg %p74
        $region72: #{forward.10} parent=31 // pred_check_branch
          %325 = sbr.rel (%p323) target = $region74
        $region73: #{forward.10} parent=31 // pred_region
          %s326 = sand.u32 %s64, 1
          %s327 = sand.u32 %s64, 1
          %s328 = smul.addr %s327, 16
          %s329 = scalar_lea.vmem [#allocation6], %s328
          %s330 = sadd.s32 %s21, %s22
          %s331 = smul.u32 2, %s330
          %s332 = smul.addr %s331, 6
          %s333 = sadd.s32 2, %s332
          %s334 = smul.addr %s333, 4
          %s335 = scalar_lea.vmem %s1, %s334
          // Predicated region
          $region75: #{forward.10} parent=73 // pred_check
            _
          $region76: #{forward.10} parent=73 // pred_check_branch
            %337 = sbr.rel (0) target = $region78
          $region77: #{forward.10} parent=73 // pred_region
            // Predicated region
            $region79: #{forward.10} parent=77 // pred_check
              _
            $region80: #{forward.10} parent=77 // pred_check_branch
              %339 = sbr.rel (0) target = $region82
            $region81: #{forward.10} parent=77 // pred_region
              // Predicated region
              $region94: #{forward.10} parent=81 // pred_check
                _
              $region95: #{forward.10} parent=81 // pred_check_branch
                %357 = sbr.rel (0) target = $region97
              $region96: #{forward.10} parent=81 // pred_region
                loop: start=0, step=1, limit=1
                $region98: #{forward.10} parent=96 // loop_pre_header
                  _
                $region99: #{forward.10} parent=96 // loop_header
                  %s359 = sphi 0, %s363
                  %p360 = scmp.ge.s32.totalorder %s359, 1
                  %s364 = sphi %s335, %s335
                  %s365 = sphi %s329, %s329
                $region100: #{forward.10} parent=96 // loop_header_branch
                  %362 = sbr.rel (%p360) target = $region104
                $region101: #{forward.10} parent=96 // loop_body
                  %v366 = vld [vmem:[%s364] sm:$0xff]
                  %367 = vst [vmem:[%s365] sm:$0xff] %v366
                  %v368 = vld [vmem:[%s364 + $0x18] sm:$0xff]
                  %369 = vst [vmem:[%s365 + $0x8] sm:$0xff] %v368
                $region102: #{forward.10} parent=96 // loop_footer
                  %s363 = sadd.s32 1, %s359
                $region103: #{forward.10} parent=96 // loop_footer_branch
                  %358 = sbr.rel target = $region99
                $region104: #{forward.10} parent=96 // loop_exit
                  _
              $region97: #{forward.10} parent=81 // pred_fallthru
                _
              // Predicated region
              $region105: #{forward.10} parent=81 // pred_check
                _
              $region106: #{forward.10} parent=81 // pred_check_branch
                %371 = sbr.rel target = $region108
              $region107: #{forward.10} parent=81 // pred_region
                _
              $region108: #{forward.10} parent=81 // pred_fallthru
                _
            $region82: #{forward.10} parent=77 // pred_fallthru
              _
            // Predicated region
            $region83: #{forward.10} parent=77 // pred_check
              _
            $region84: #{forward.10} parent=77 // pred_check_branch
              %341 = sbr.rel target = $region86
            $region85: #{forward.10} parent=77 // pred_region
              %s343 = ssub.s32 256, 1
              loop: start=0, step=1, limit=1
              $region87: #{forward.10} parent=85 // loop_pre_header
                _
              $region88: #{forward.10} parent=85 // loop_header
                %s345 = sphi 0, %s349
                %p346 = scmp.ge.s32.totalorder %s345, 1
                %s350 = sphi %s335, %s335
                %s351 = sphi %s329, %s329
              $region89: #{forward.10} parent=85 // loop_header_branch
                %348 = sbr.rel (%p346) target = $region93
              $region90: #{forward.10} parent=85 // loop_body
                %v352 = vld [vmem:[%s350] sm:%s343]
                %353 = vst [vmem:[%s351] sm:%s343] %v352
                %v354 = vld [vmem:[%s350 + $0x18] sm:%s343]
                %355 = vst [vmem:[%s351 + $0x8] sm:%s343] %v354
              $region91: #{forward.10} parent=85 // loop_footer
                %s349 = sadd.s32 1, %s345
              $region92: #{forward.10} parent=85 // loop_footer_branch
                %344 = sbr.rel target = $region88
              $region93: #{forward.10} parent=85 // loop_exit
                _
            $region86: #{forward.10} parent=77 // pred_fallthru
              _
          $region78: #{forward.10} parent=73 // pred_fallthru
            _
          %372 = vnop
        $region74: #{forward.10} parent=31 // pred_fallthru
          _
        // Predicated region
        $region109: #{forward.10} parent=31 // pred_check
          %p373 = pneg %p102
        $region110: #{forward.10} parent=31 // pred_check_branch
          %375 = sbr.rel (%p373) target = $region112
        $region111: #{forward.10} parent=31 // pred_region
          %s376 = sand.u32 %s92, 1
          %s377 = sand.u32 %s92, 1
          %s378 = smul.addr %s377, 16
          %s379 = scalar_lea.vmem [#allocation7], %s378
          %s380 = sadd.s32 %s21, %s22
          %s381 = smul.u32 2, %s380
          %s382 = smul.addr %s381, 6
          %s383 = sadd.s32 4, %s382
          %s384 = smul.addr %s383, 4
          %s385 = scalar_lea.vmem %s2, %s384
          // Predicated region
          $region113: #{forward.10} parent=111 // pred_check
            _
          $region114: #{forward.10} parent=111 // pred_check_branch
            %387 = sbr.rel (0) target = $region116
          $region115: #{forward.10} parent=111 // pred_region
            // Predicated region
            $region117: #{forward.10} parent=115 // pred_check
              _
            $region118: #{forward.10} parent=115 // pred_check_branch
              %389 = sbr.rel (0) target = $region120
            $region119: #{forward.10} parent=115 // pred_region
              // Predicated region
              $region132: #{forward.10} parent=119 // pred_check
                _
              $region133: #{forward.10} parent=119 // pred_check_branch
                %407 = sbr.rel (0) target = $region135
              $region134: #{forward.10} parent=119 // pred_region
                loop: start=0, step=1, limit=1
                $region136: #{forward.10} parent=134 // loop_pre_header
                  _
                $region137: #{forward.10} parent=134 // loop_header
                  %s409 = sphi 0, %s413
                  %p410 = scmp.ge.s32.totalorder %s409, 1
                  %s414 = sphi %s385, %s385
                  %s415 = sphi %s379, %s379
                $region138: #{forward.10} parent=134 // loop_header_branch
                  %412 = sbr.rel (%p410) target = $region142
                $region139: #{forward.10} parent=134 // loop_body
                  %v416 = vld [vmem:[%s414] sm:$0xff]
                  %417 = vst [vmem:[%s415] sm:$0xff] %v416
                  %v418 = vld [vmem:[%s414 + $0x18] sm:$0xff]
                  %419 = vst [vmem:[%s415 + $0x8] sm:$0xff] %v418
                $region140: #{forward.10} parent=134 // loop_footer
                  %s413 = sadd.s32 1, %s409
                $region141: #{forward.10} parent=134 // loop_footer_branch
                  %408 = sbr.rel target = $region137
                $region142: #{forward.10} parent=134 // loop_exit
                  _
              $region135: #{forward.10} parent=119 // pred_fallthru
                _
              // Predicated region
              $region143: #{forward.10} parent=119 // pred_check
                _
              $region144: #{forward.10} parent=119 // pred_check_branch
                %421 = sbr.rel target = $region146
              $region145: #{forward.10} parent=119 // pred_region
                _
              $region146: #{forward.10} parent=119 // pred_fallthru
                _
            $region120: #{forward.10} parent=115 // pred_fallthru
              _
            // Predicated region
            $region121: #{forward.10} parent=115 // pred_check
              _
            $region122: #{forward.10} parent=115 // pred_check_branch
              %391 = sbr.rel target = $region124
            $region123: #{forward.10} parent=115 // pred_region
              %s393 = ssub.s32 256, 1
              loop: start=0, step=1, limit=1
              $region125: #{forward.10} parent=123 // loop_pre_header
                _
              $region126: #{forward.10} parent=123 // loop_header
                %s395 = sphi 0, %s399
                %p396 = scmp.ge.s32.totalorder %s395, 1
                %s400 = sphi %s385, %s385
                %s401 = sphi %s379, %s379
              $region127: #{forward.10} parent=123 // loop_header_branch
                %398 = sbr.rel (%p396) target = $region131
              $region128: #{forward.10} parent=123 // loop_body
                %v402 = vld [vmem:[%s400] sm:%s393]
                %403 = vst [vmem:[%s401] sm:%s393] %v402
                %v404 = vld [vmem:[%s400 + $0x18] sm:%s393]
                %405 = vst [vmem:[%s401 + $0x8] sm:%s393] %v404
              $region129: #{forward.10} parent=123 // loop_footer
                %s399 = sadd.s32 1, %s395
              $region130: #{forward.10} parent=123 // loop_footer_branch
                %394 = sbr.rel target = $region126
              $region131: #{forward.10} parent=123 // loop_exit
                _
            $region124: #{forward.10} parent=115 // pred_fallthru
              _
          $region116: #{forward.10} parent=111 // pred_fallthru
            _
          %422 = vnop
        $region112: #{forward.10} parent=31 // pred_fallthru
          _
        // Predicated region
        $region147: #{forward.10} parent=31 // pred_check
          %p423 = pneg %p128
        $region148: #{forward.10} parent=31 // pred_check_branch
          %425 = sbr.rel (%p423) target = $region150
        $region149: #{forward.10} parent=31 // pred_region
          %s426 = smul.u32 2, %s21
          %p427 = scmp.lt.s32.totalorder %s426, 3
          %s428 = scalar_select %p427, %s426, 3
          %s429 = smul.addr %s428, 2
          %s430 = smul.addr %s429, 4
          %s431 = scalar_lea.vmem %s3, %s430
          %s432 = smul.u32 2, %s21
        $region150: #{forward.10} parent=31 // pred_fallthru
          _
      $region32: #{forward.10} parent=5 // pred_fallthru
        _
      %p433 = scmp.le.s32.totalorder 1, %s14
      %p434 = scmp.lt.s32.totalorder %s14, 3
      %p435 = pnand %p433, %p434
      %p436 = pneg %p435
      // Predicated region
      $region151: #{forward.10} parent=5 // pred_check
        _
      $region152: #{forward.10} parent=5 // pred_check_branch
        %438 = sbr.rel (%p435) target = $region154
      $region153: #{forward.10} parent=5 // pred_region
        %s439 = ssub.s32 %s14, 1
        %s440 = sand.u32 %s39, 1
        %s441 = sand.u32 %s39, 1
        %s442 = smul.addr %s441, 16
        %s443 = scalar_lea.vmem [#allocation5], %s442
        // Predicated region
        $region155: #{forward.10} parent=153 // pred_check
          %p444 = pneg %p52
        $region156: #{forward.10} parent=153 // pred_check_branch
          %446 = sbr.rel (%p444) target = $region158
        $region157: #{forward.10} parent=153 // pred_region
          _
        $region158: #{forward.10} parent=153 // pred_fallthru
          _
        %s447 = sand.u32 %s67, 1
        %s448 = sand.u32 %s67, 1
        %s449 = smul.addr %s448, 16
        %s450 = scalar_lea.vmem [#allocation6], %s449
        // Predicated region
        $region159: #{forward.10} parent=153 // pred_check
          %p451 = pneg %p80
        $region160: #{forward.10} parent=153 // pred_check_branch
          %453 = sbr.rel (%p451) target = $region162
        $region161: #{forward.10} parent=153 // pred_region
          _
        $region162: #{forward.10} parent=153 // pred_fallthru
          _
        %s454 = sand.u32 %s95, 1
        %s455 = sand.u32 %s95, 1
        %s456 = smul.addr %s455, 16
        %s457 = scalar_lea.vmem [#allocation7], %s456
        // Predicated region
        $region163: #{forward.10} parent=153 // pred_check
          %p458 = pneg %p108
        $region164: #{forward.10} parent=153 // pred_check_branch
          %460 = sbr.rel (%p458) target = $region166
        $region165: #{forward.10} parent=153 // pred_region
          _
        $region166: #{forward.10} parent=153 // pred_fallthru
          _
        %s461 = sand.u32 %s39, 1
        %s462 = sand.u32 %s39, 1
        %s463 = smul.addr %s462, 16
        %s464 = scalar_lea.vmem [#allocation5], %s463
        %p465 = pneg %p52
        %p466 = pneg %p49
        %s467 = sand.u32 %s67, 1
        %s468 = sand.u32 %s67, 1
        %s469 = smul.addr %s468, 16
        %s470 = scalar_lea.vmem [#allocation6], %s469
        %p471 = pneg %p80
        %p472 = pneg %p77
        %s473 = sand.u32 %s95, 1
        %s474 = sand.u32 %s95, 1
        %s475 = smul.addr %s474, 16
        %s476 = scalar_lea.vmem [#allocation7], %s475
        %p477 = pneg %p108
        %p478 = pneg %p105
        %s479 = smul.u32 2, %s23
        %p480 = scmp.lt.s32.totalorder %s479, 3
        %s481 = scalar_select %p480, %s479, 3
        %s482 = smul.addr %s481, 2
        %s483 = smul.addr %s482, 4
        %s484 = scalar_lea.vmem %s3, %s483
        %p485 = pneg %p134
        %p486 = pneg %p131
        %p487 = pneg %p155
        %p488 = pneg %p152
        %p489 = pneg %p176
        %p490 = pneg %p173
        %p491 = pneg %p197
        %p492 = pneg %p194
        %p493 = pneg %p218
        %p494 = pneg %p215
        %p495 = pneg %p244
        %p496 = pneg %p241
        %s497 = smul.u32 2, %s23
        %p498 = scmp.lt.s32.totalorder %s497, 3
        %s499 = scalar_select %p498, %s497, 3
        %s500 = smul.addr %s499, 2
        %s501 = smul.addr %s500, 4
        %s502 = scalar_lea.vmem %s8, %s501
        %s503 = smul.u32 2, %s23
        %s504 = sadd.s32 %s23, %s24
        %s505 = smul.u32 2, %s504
        %s506 = sadd.s32 %s23, %s24
        %s507 = smul.u32 2, %s506
        %s508 = smul.u32 2, %s23
        %p509 = scmp.lt.s32.totalorder %s508, 3
        %s510 = scalar_select %p509, %s508, 3
        %s511 = smul.addr %s510, 2
        %s512 = smul.addr %s511, 4
        %s513 = scalar_lea.vmem %s3, %s512
        %s514 = smul.u32 2, %s23
        %s515 = smul.u32 2, %s23
        %p516 = scmp.lt.s32.totalorder %s515, 3
        %s517 = scalar_select %p516, %s515, 3
        %s518 = smul.addr %s517, 2
        %s519 = smul.addr %s518, 4
        %s520 = scalar_lea.vmem %s8, %s519
        %s521 = smul.u32 2, %s23
        %p523 = scmp.eq.s32.totalorder %s24, 0
        // Predicated region
        $region167: #{forward.10} parent=153 // pred_check
          %p524 = pneg %p523
        $region168: #{forward.10} parent=153 // pred_check_branch
          %526 = sbr.rel (%p524) target = $region170
        $region169: #{forward.10} parent=153 // pred_region
          %vm527 = vcmask 7168
          %528 = vst.msk [vmem:[#allocation2] sm:$0xff] %vm527, -inf
          %529 = vst.msk [vmem:[#allocation2 + $0x8] sm:$0xff] %vm527, -inf
          %530 = vst.msk [vmem:[#allocation2 + $0x10] sm:$0xff] %vm527, -inf
          %531 = vst.msk [vmem:[#allocation2 + $0x18] sm:$0xff] %vm527, -inf
          %532 = vst.msk [vmem:[#allocation3] sm:$0xff] %vm527, 0.0
          %533 = vst.msk [vmem:[#allocation3 + $0x8] sm:$0xff] %vm527, 0.0
          %534 = vst.msk [vmem:[#allocation3 + $0x10] sm:$0xff] %vm527, 0.0
          %535 = vst.msk [vmem:[#allocation3 + $0x18] sm:$0xff] %vm527, 0.0
          %536 = vst [vmem:[#allocation4] sm:$0xff] 0.0
          %537 = vst [vmem:[#allocation4 + $0x8] sm:$0xff] 0.0
          %538 = vst [vmem:[#allocation4 + $0x10] sm:$0xff] 0.0
          %539 = vst [vmem:[#allocation4 + $0x18] sm:$0xff] 0.0
        $region170: #{forward.10} parent=153 // pred_fallthru
          _
        %v540 = vld [vmem:[%s443] sm:$0xf]
        %v541 = vld [vmem:[%s443 + $0x8] sm:$0xf]
        %v542 = vld [vmem:[%s450] sm:$0xf]
        %v543 = vld [vmem:[%s450 + $0x8] sm:$0xf]
        %v544 = vld [vmem:[%s457] sm:$0xf]
        %v545 = vld [vmem:[%s457 + $0x8] sm:$0xf]
        %v548 = vunpack.c.l.b16 %v540
        %v549 = vunpack.c.l.b16 %v541
        %v550 = vpack.c.b16 %v549, %v548
        %v554 = vunpack.c.l.b16 %v542
        %v555 = vunpack.c.l.b16 %v543
        %v556 = vpack.c.b16 %v555, %v554
        %558 = vmatpush.bf16.xpose.msra.mxu0 0
        %559 = vmatpush.bf16.xpose.msra.mxu0 0
        %560 = vmatpush.bf16.xpose.msra.mxu0 0
        %561 = vmatpush.bf16.xpose.msra.mxu0 0
        %562 = vmatpush.bf16.xpose.msra.mxu0 0
        %563 = vmatpush.bf16.xpose.msra.mxu0 0
        %564 = vmatpush.bf16.xpose.msra.mxu0 0
        %565 = vmatpush.bf16.xpose.msra.mxu0 %v556
        %566 = vmatmul.bf16.gmra.mxu0 %v550
        %v567 = vpop.f32.mrf.mxu0
        %v568 = vadd.f32 0.0, %v567
        %v569 = vpop.f32.mrf.mxu0
        %v570 = vadd.f32 0.0, %v569
        %571 = vdwg.mxu0
        %v572 = vld [vmem:[#allocation2] sm:$0xff]
        %v573 = vld [vmem:[#allocation2 + $0x8] sm:$0xff]
        %vm574 = vcmask 130048
        %v575 = vsel %vm574, %v568, -inf
        %576 = vmax.xlane.f32.xlu0 %v575
        %v577 = vpop.xlane.xlu0 %576
        %v578 = vsel %vm574, %v570, -inf
        %579 = vmax.xlane.f32.xlu0 %v578
        %v580 = vpop.xlane.xlu0 %579
        %v581 = vmax.f32 %v572, %v577
        %v582 = vmax.f32 %v573, %v580
        %v583 = vsub.f32 %v572, %v581
        %v584 = vsub.f32 %v573, %v582
        %v585 = vmul.f32 %v583, 1.442695
        %v586 = vpow.pop %v585
        %v587 = vmul.f32 %v584, 1.442695
        %v588 = vpow.pop %v587
        %590 = vset.pattern.permute.xlu0 0
        %591 = vperm.xlu0 %590, %v581
        %v592 = vpop.permute.xlu0 %591
        %595 = vset.pattern.permute.xlu0 0
        %596 = vperm.xlu0 %595, %v582
        %v597 = vpop.permute.xlu0 %596
        %v599 = vsub.f32 %v568, %v592
        %v600 = vsub.f32 %v570, %v597
        %v601 = vmul.f32 %v599, 1.442695
        %v602 = vpow.pop %v601
        %v603 = vmul.f32 %v600, 1.442695
        %v604 = vpow.pop %v603
        %v605 = vld [vmem:[#allocation3] sm:$0xff]
        %v606 = vld [vmem:[#allocation3 + $0x8] sm:$0xff]
        %v607 = vmul.f32 %v586, %v605
        %v608 = vmul.f32 %v588, %v606
        %v609 = vsel %vm574, %v602, 0.0
        %610 = vadd.xlane.f32.xlu0 %v609
        %v611 = vpop.xlane.xlu0 %610
        %v612 = vsel %vm574, %v604, 0.0
        %613 = vadd.xlane.f32.xlu0 %v612
        %v614 = vpop.xlane.xlu0 %613
        %v615 = vadd.f32 %v607, %v611
        %v616 = vadd.f32 %v608, %v614
        %vm617 = vcmask 7168
        %618 = vst.msk [vmem:[#allocation3] sm:$0xff] %vm617, %v615
        %619 = vst.msk [vmem:[#allocation3 + $0x8] sm:$0xff] %vm617, %v616
        %v620 = vld [vmem:[#allocation4] sm:$0xff]
        %v621 = vld [vmem:[#allocation4 + $0x8] sm:$0xff]
        %623 = vset.pattern.permute.xlu0 0
        %624 = vperm.xlu0 %623, %v586
        %v625 = vpop.permute.xlu0 %624
        %628 = vset.pattern.permute.xlu0 0
        %629 = vperm.xlu0 %628, %v588
        %v630 = vpop.permute.xlu0 %629
        %v632 = vmul.f32 %v625, %v620
        %v633 = vmul.f32 %v630, %v621
        %v634 = vpack.c.bf16 %v604, %v602
        %v637 = vunpack.c.l.b16 %v544
        %v638 = vunpack.c.l.b16 %v545
        %v639 = vpack.c.b16 %v638, %v637
        %v642 = vsel %vm574, %v634, 0
        %644 = vmatpush.bf16.msra.mxu0 0
        %645 = vmatpush.bf16.msra.mxu0 0
        %646 = vmatpush.bf16.msra.mxu0 0
        %647 = vmatpush.bf16.msra.mxu0 0
        %648 = vmatpush.bf16.msra.mxu0 0
        %649 = vmatpush.bf16.msra.mxu0 0
        %650 = vmatpush.bf16.msra.mxu0 0
        %651 = vmatpush.bf16.msra.mxu0 %v639
        %652 = vmatmul.bf16.gmra.mxu0 %v642
        %v653 = vpop.f32.mrf.mxu0
        %v654 = vadd.f32 0.0, %v653
        %v655 = vpop.f32.mrf.mxu0
        %v656 = vadd.f32 0.0, %v655
        %657 = vdwg.mxu0
        %v658 = vadd.f32 %v632, %v654
        %v659 = vadd.f32 %v633, %v656
        %660 = vst [vmem:[#allocation4] sm:$0xff] %v658
        %661 = vst [vmem:[#allocation4 + $0x8] sm:$0xff] %v659
        %662 = vst.msk [vmem:[#allocation2] sm:$0xff] %vm617, %v581
        %663 = vst.msk [vmem:[#allocation2 + $0x8] sm:$0xff] %vm617, %v582
        %v664 = vld [vmem:[%s443 + $0x4] sm:$0xf]
        %v665 = vld [vmem:[%s443 + $0xc] sm:$0xf]
        %v666 = vld [vmem:[%s450 + $0x4] sm:$0xf]
        %v667 = vld [vmem:[%s450 + $0xc] sm:$0xf]
        %v668 = vld [vmem:[%s457 + $0x4] sm:$0xf]
        %v669 = vld [vmem:[%s457 + $0xc] sm:$0xf]
        %v672 = vunpack.c.l.b16 %v664
        %v673 = vunpack.c.l.b16 %v665
        %v674 = vpack.c.b16 %v673, %v672
        %v678 = vunpack.c.l.b16 %v666
        %v679 = vunpack.c.l.b16 %v667
        %v680 = vpack.c.b16 %v679, %v678
        %682 = vmatpush.bf16.xpose.msra.mxu0 0
        %683 = vmatpush.bf16.xpose.msra.mxu0 0
        %684 = vmatpush.bf16.xpose.msra.mxu0 0
        %685 = vmatpush.bf16.xpose.msra.mxu0 0
        %686 = vmatpush.bf16.xpose.msra.mxu0 0
        %687 = vmatpush.bf16.xpose.msra.mxu0 0
        %688 = vmatpush.bf16.xpose.msra.mxu0 0
        %689 = vmatpush.bf16.xpose.msra.mxu0 %v680
        %690 = vmatmul.bf16.gmra.mxu0 %v674
        %v691 = vpop.f32.mrf.mxu0
        %v692 = vadd.f32 0.0, %v691
        %v693 = vpop.f32.mrf.mxu0
        %v694 = vadd.f32 0.0, %v693
        %695 = vdwg.mxu0
        %s696 = scalar_lea.vmem [#allocation2], 16
        %v697 = vld [vmem:[%s696] sm:$0xff]
        %v698 = vld [vmem:[%s696 + $0x8] sm:$0xff]
        %v699 = vsel %vm574, %v692, -inf
        %700 = vmax.xlane.f32.xlu0 %v699
        %v701 = vpop.xlane.xlu0 %700
        %v702 = vsel %vm574, %v694, -inf
        %703 = vmax.xlane.f32.xlu0 %v702
        %v704 = vpop.xlane.xlu0 %703
        %v705 = vmax.f32 %v697, %v701
        %v706 = vmax.f32 %v698, %v704
        %v707 = vsub.f32 %v697, %v705
        %v708 = vsub.f32 %v698, %v706
        %v709 = vmul.f32 %v707, 1.442695
        %v710 = vpow.pop %v709
        %v711 = vmul.f32 %v708, 1.442695
        %v712 = vpow.pop %v711
        %714 = vset.pattern.permute.xlu0 0
        %715 = vperm.xlu0 %714, %v705
        %v716 = vpop.permute.xlu0 %715
        %719 = vset.pattern.permute.xlu0 0
        %720 = vperm.xlu0 %719, %v706
        %v721 = vpop.permute.xlu0 %720
        %v723 = vsub.f32 %v692, %v716
        %v724 = vsub.f32 %v694, %v721
        %v725 = vmul.f32 %v723, 1.442695
        %v726 = vpow.pop %v725
        %v727 = vmul.f32 %v724, 1.442695
        %v728 = vpow.pop %v727
        %s729 = scalar_lea.vmem [#allocation3], 16
        %v730 = vld [vmem:[%s729] sm:$0xff]
        %v731 = vld [vmem:[%s729 + $0x8] sm:$0xff]
        %v732 = vmul.f32 %v710, %v730
        %v733 = vmul.f32 %v712, %v731
        %v734 = vsel %vm574, %v726, 0.0
        %735 = vadd.xlane.f32.xlu0 %v734
        %v736 = vpop.xlane.xlu0 %735
        %v737 = vsel %vm574, %v728, 0.0
        %738 = vadd.xlane.f32.xlu0 %v737
        %v739 = vpop.xlane.xlu0 %738
        %v740 = vadd.f32 %v732, %v736
        %v741 = vadd.f32 %v733, %v739
        %742 = vst.msk [vmem:[%s729] sm:$0xff] %vm617, %v740
        %743 = vst.msk [vmem:[%s729 + $0x8] sm:$0xff] %vm617, %v741
        %s744 = scalar_lea.vmem [#allocation4], 16
        %v745 = vld [vmem:[%s744] sm:$0xff]
        %v746 = vld [vmem:[%s744 + $0x8] sm:$0xff]
        %748 = vset.pattern.permute.xlu0 0
        %749 = vperm.xlu0 %748, %v710
        %v750 = vpop.permute.xlu0 %749
        %753 = vset.pattern.permute.xlu0 0
        %754 = vperm.xlu0 %753, %v712
        %v755 = vpop.permute.xlu0 %754
        %v757 = vmul.f32 %v750, %v745
        %v758 = vmul.f32 %v755, %v746
        %v759 = vpack.c.bf16 %v728, %v726
        %v762 = vunpack.c.l.b16 %v668
        %v763 = vunpack.c.l.b16 %v669
        %v764 = vpack.c.b16 %v763, %v762
        %v767 = vsel %vm574, %v759, 0
        %769 = vmatpush.bf16.msra.mxu0 0
        %770 = vmatpush.bf16.msra.mxu0 0
        %771 = vmatpush.bf16.msra.mxu0 0
        %772 = vmatpush.bf16.msra.mxu0 0
        %773 = vmatpush.bf16.msra.mxu0 0
        %774 = vmatpush.bf16.msra.mxu0 0
        %775 = vmatpush.bf16.msra.mxu0 0
        %776 = vmatpush.bf16.msra.mxu0 %v764
        %777 = vmatmul.bf16.gmra.mxu0 %v767
        %v778 = vpop.f32.mrf.mxu0
        %v779 = vadd.f32 0.0, %v778
        %v780 = vpop.f32.mrf.mxu0
        %v781 = vadd.f32 0.0, %v780
        %782 = vdwg.mxu0
        %v783 = vadd.f32 %v757, %v779
        %v784 = vadd.f32 %v758, %v781
        %785 = vst [vmem:[%s744] sm:$0xff] %v783
        %786 = vst [vmem:[%s744 + $0x8] sm:$0xff] %v784
        %787 = vst.msk [vmem:[%s696] sm:$0xff] %vm617, %v705
        %788 = vst.msk [vmem:[%s696 + $0x8] sm:$0xff] %vm617, %v706
        // Predicated region
        $region171: #{forward.10} parent=153 // pred_check
          %p789 = pneg %p523
        $region172: #{forward.10} parent=153 // pred_check_branch
          %791 = sbr.rel (%p789) target = $region174
        $region173: #{forward.10} parent=153 // pred_region
          %v792 = vld [vmem:[%s5] sm:$0x3]
          %v793 = vunpack.c.l.bf16 %v792
          %v794 = vld [vmem:[%s513] sm:$0xff]
          %v795 = vld [vmem:[%s513 + $0x8] sm:$0xff]
          %v796 = vunpack.c.l.bf16 %v794
          %v797 = vunpack.c.h.bf16 %v794
          %v798 = vunpack.c.l.bf16 %v795
          %v799 = vunpack.c.h.bf16 %v795
          %v801 = vperm.slane %v793, 0
          %v802 = vperm.slane %v793, 2
          %v805 = vperm.slane %v801, 0
          %v806 = vperm.slane %v802, 0
          %v807 = vadd.f32 %v805, %v796
          %v808 = vadd.f32 %v806, %v797
          %v809 = vadd.f32 %v805, %v798
          %v810 = vadd.f32 %v806, %v799
          %v811 = vld [vmem:[#allocation4] sm:$0xff]
          %v812 = vld [vmem:[#allocation4 + $0x8] sm:$0xff]
          %v813 = vld [vmem:[#allocation3] sm:$0xff]
          %v814 = vld [vmem:[#allocation3 + $0x8] sm:$0xff]
          %v815 = vrcp.pop %v813
          %v816 = vrcp.pop %v814
          %818 = vset.pattern.permute.xlu0 0
          %819 = vperm.xlu0 %818, %v815
          %v820 = vpop.permute.xlu0 %819
          %823 = vset.pattern.permute.xlu0 0
          %824 = vperm.xlu0 %823, %v816
          %v825 = vpop.permute.xlu0 %824
          %v827 = vmul.f32 %v811, %v820
          %v828 = vmul.f32 %v812, %v825
          %v829 = vpack.c.bf16 %v828, %v827
          %v830 = vld [vmem:[%s4] sm:$0xff]
          %v831 = vld [vmem:[%s4 + $0x8] sm:$0xff]
          %v832 = vld [vmem:[%s4 + $0x10] sm:$0xff]
          %v833 = vld [vmem:[%s4 + $0x18] sm:$0xff]
          %v834 = vld [vmem:[%s4 + $0x20] sm:$0xff]
          %v835 = vld [vmem:[%s4 + $0x28] sm:$0xff]
          %v836 = vld [vmem:[%s4 + $0x30] sm:$0xff]
          %v837 = vld [vmem:[%s4 + $0x38] sm:$0xff]
          %v838 = vld [vmem:[%s4 + $0x40] sm:$0xff]
          %v839 = vld [vmem:[%s4 + $0x48] sm:$0xff]
          %v840 = vld [vmem:[%s4 + $0x50] sm:$0xff]
          %v841 = vld [vmem:[%s4 + $0x58] sm:$0xff]
          %v842 = vld [vmem:[%s4 + $0x60] sm:$0xff]
          %v843 = vld [vmem:[%s4 + $0x68] sm:$0xff]
          %v844 = vld [vmem:[%s4 + $0x70] sm:$0xff]
          %v845 = vld [vmem:[%s4 + $0x78] sm:$0xff]
          %v862 = vunpack.c.l.b16 %v830
          %v863 = vunpack.c.h.b16 %v830
          %v864 = vunpack.c.l.b16 %v831
          %v865 = vunpack.c.h.b16 %v831
          %v866 = vunpack.c.l.b16 %v832
          %v867 = vunpack.c.h.b16 %v832
          %v868 = vunpack.c.l.b16 %v833
          %v869 = vunpack.c.h.b16 %v833
          %v870 = vunpack.c.l.b16 %v834
          %v871 = vunpack.c.h.b16 %v834
          %v872 = vunpack.c.l.b16 %v835
          %v873 = vunpack.c.h.b16 %v835
          %v874 = vunpack.c.l.b16 %v836
          %v875 = vunpack.c.h.b16 %v836
          %v876 = vunpack.c.l.b16 %v837
          %v877 = vunpack.c.h.b16 %v837
          %v878 = vunpack.c.l.b16 %v838
          %v879 = vunpack.c.h.b16 %v838
          %v880 = vunpack.c.l.b16 %v839
          %v881 = vunpack.c.h.b16 %v839
          %v882 = vunpack.c.l.b16 %v840
          %v883 = vunpack.c.h.b16 %v840
          %v884 = vunpack.c.l.b16 %v841
          %v885 = vunpack.c.h.b16 %v841
          %v886 = vunpack.c.l.b16 %v842
          %v887 = vunpack.c.h.b16 %v842
          %v888 = vunpack.c.l.b16 %v843
          %v889 = vunpack.c.h.b16 %v843
          %v890 = vunpack.c.l.b16 %v844
          %v891 = vunpack.c.h.b16 %v844
          %v892 = vunpack.c.l.b16 %v845
          %v893 = vunpack.c.h.b16 %v845
          %v894 = vpack.c.b16 %v864, %v862
          %v895 = vpack.c.b16 %v865, %v863
          %v896 = vpack.c.b16 %v868, %v866
          %v897 = vpack.c.b16 %v869, %v867
          %v898 = vpack.c.b16 %v872, %v870
          %v899 = vpack.c.b16 %v873, %v871
          %v900 = vpack.c.b16 %v876, %v874
          %v901 = vpack.c.b16 %v877, %v875
          %v902 = vpack.c.b16 %v880, %v878
          %v903 = vpack.c.b16 %v881, %v879
          %v904 = vpack.c.b16 %v884, %v882
          %v905 = vpack.c.b16 %v885, %v883
          %v906 = vpack.c.b16 %v888, %v886
          %v907 = vpack.c.b16 %v889, %v887
          %v908 = vpack.c.b16 %v892, %v890
          %v909 = vpack.c.b16 %v893, %v891
          %926 = vmatpush.bf16.msra.mxu0 %v908
          %927 = vmatpush.bf16.msra.mxu0 %v906
          %928 = vmatpush.bf16.msra.mxu0 %v904
          %929 = vmatpush.bf16.msra.mxu0 %v902
          %930 = vmatpush.bf16.msra.mxu0 %v900
          %931 = vmatpush.bf16.msra.mxu0 %v898
          %932 = vmatpush.bf16.msra.mxu0 %v896
          %933 = vmatpush.bf16.msra.mxu0 %v894
          %934 = vmatmul.bf16.gmra.mxu0 %v829
          %v935 = vpop.f32.mrf.mxu0
          %v936 = vadd.f32 0.0, %v935
          %v937 = vpop.f32.mrf.mxu0
          %v938 = vadd.f32 0.0, %v937
          %939 = vdwg.mxu0
          %940 = vmatpush.bf16.msra.mxu0 %v909
          %941 = vmatpush.bf16.msra.mxu0 %v907
          %942 = vmatpush.bf16.msra.mxu0 %v905
          %943 = vmatpush.bf16.msra.mxu0 %v903
          %944 = vmatpush.bf16.msra.mxu0 %v901
          %945 = vmatpush.bf16.msra.mxu0 %v899
          %946 = vmatpush.bf16.msra.mxu0 %v897
          %947 = vmatpush.bf16.msra.mxu0 %v895
          %948 = vmatmul.bf16.gmra.mxu0 %v829
          %v949 = vpop.f32.mrf.mxu0
          %v950 = vadd.f32 0.0, %v949
          %v951 = vpop.f32.mrf.mxu0
          %v952 = vadd.f32 0.0, %v951
          %953 = vdwg.mxu0
          %v954 = vadd.f32 %v807, %v936
          %v955 = vadd.f32 %v808, %v950
          %v956 = vadd.f32 %v809, %v938
          %v957 = vadd.f32 %v810, %v952
          %v958 = vld [vmem:[%s744] sm:$0xff]
          %v959 = vld [vmem:[%s744 + $0x8] sm:$0xff]
          %v960 = vld [vmem:[%s729] sm:$0xff]
          %v961 = vld [vmem:[%s729 + $0x8] sm:$0xff]
          %v962 = vrcp.pop %v960
          %v963 = vrcp.pop %v961
          %965 = vset.pattern.permute.xlu0 0
          %966 = vperm.xlu0 %965, %v962
          %v967 = vpop.permute.xlu0 %966
          %970 = vset.pattern.permute.xlu0 0
          %971 = vperm.xlu0 %970, %v963
          %v972 = vpop.permute.xlu0 %971
          %v974 = vmul.f32 %v958, %v967
          %v975 = vmul.f32 %v959, %v972
          %v976 = vpack.c.bf16 %v975, %v974
          %v977 = vld [vmem:[%s4 + $0x80] sm:$0xff]
          %v978 = vld [vmem:[%s4 + $0x88] sm:$0xff]
          %v979 = vld [vmem:[%s4 + $0x90] sm:$0xff]
          %v980 = vld [vmem:[%s4 + $0x98] sm:$0xff]
          %v981 = vld [vmem:[%s4 + $0xa0] sm:$0xff]
          %v982 = vld [vmem:[%s4 + $0xa8] sm:$0xff]
          %v983 = vld [vmem:[%s4 + $0xb0] sm:$0xff]
          %v984 = vld [vmem:[%s4 + $0xb8] sm:$0xff]
          %v985 = vld [vmem:[%s4 + $0xc0] sm:$0xff]
          %v986 = vld [vmem:[%s4 + $0xc8] sm:$0xff]
          %v987 = vld [vmem:[%s4 + $0xd0] sm:$0xff]
          %v988 = vld [vmem:[%s4 + $0xd8] sm:$0xff]
          %v989 = vld [vmem:[%s4 + $0xe0] sm:$0xff]
          %v990 = vld [vmem:[%s4 + $0xe8] sm:$0xff]
          %v991 = vld [vmem:[%s4 + $0xf0] sm:$0xff]
          %v992 = vld [vmem:[%s4 + $0xf8] sm:$0xff]
          %v1009 = vunpack.c.l.b16 %v977
          %v1010 = vunpack.c.h.b16 %v977
          %v1011 = vunpack.c.l.b16 %v978
          %v1012 = vunpack.c.h.b16 %v978
          %v1013 = vunpack.c.l.b16 %v979
          %v1014 = vunpack.c.h.b16 %v979
          %v1015 = vunpack.c.l.b16 %v980
          %v1016 = vunpack.c.h.b16 %v980
          %v1017 = vunpack.c.l.b16 %v981
          %v1018 = vunpack.c.h.b16 %v981
          %v1019 = vunpack.c.l.b16 %v982
          %v1020 = vunpack.c.h.b16 %v982
          %v1021 = vunpack.c.l.b16 %v983
          %v1022 = vunpack.c.h.b16 %v983
          %v1023 = vunpack.c.l.b16 %v984
          %v1024 = vunpack.c.h.b16 %v984
          %v1025 = vunpack.c.l.b16 %v985
          %v1026 = vunpack.c.h.b16 %v985
          %v1027 = vunpack.c.l.b16 %v986
          %v1028 = vunpack.c.h.b16 %v986
          %v1029 = vunpack.c.l.b16 %v987
          %v1030 = vunpack.c.h.b16 %v987
          %v1031 = vunpack.c.l.b16 %v988
          %v1032 = vunpack.c.h.b16 %v988
          %v1033 = vunpack.c.l.b16 %v989
          %v1034 = vunpack.c.h.b16 %v989
          %v1035 = vunpack.c.l.b16 %v990
          %v1036 = vunpack.c.h.b16 %v990
          %v1037 = vunpack.c.l.b16 %v991
          %v1038 = vunpack.c.h.b16 %v991
          %v1039 = vunpack.c.l.b16 %v992
          %v1040 = vunpack.c.h.b16 %v992
          %v1041 = vpack.c.b16 %v1011, %v1009
          %v1042 = vpack.c.b16 %v1012, %v1010
          %v1043 = vpack.c.b16 %v1015, %v1013
          %v1044 = vpack.c.b16 %v1016, %v1014
          %v1045 = vpack.c.b16 %v1019, %v1017
          %v1046 = vpack.c.b16 %v1020, %v1018
          %v1047 = vpack.c.b16 %v1023, %v1021
          %v1048 = vpack.c.b16 %v1024, %v1022
          %v1049 = vpack.c.b16 %v1027, %v1025
          %v1050 = vpack.c.b16 %v1028, %v1026
          %v1051 = vpack.c.b16 %v1031, %v1029
          %v1052 = vpack.c.b16 %v1032, %v1030
          %v1053 = vpack.c.b16 %v1035, %v1033
          %v1054 = vpack.c.b16 %v1036, %v1034
          %v1055 = vpack.c.b16 %v1039, %v1037
          %v1056 = vpack.c.b16 %v1040, %v1038
          %1073 = vmatpush.bf16.msra.mxu0 %v1055
          %1074 = vmatpush.bf16.msra.mxu0 %v1053
          %1075 = vmatpush.bf16.msra.mxu0 %v1051
          %1076 = vmatpush.bf16.msra.mxu0 %v1049
          %1077 = vmatpush.bf16.msra.mxu0 %v1047
          %1078 = vmatpush.bf16.msra.mxu0 %v1045
          %1079 = vmatpush.bf16.msra.mxu0 %v1043
          %1080 = vmatpush.bf16.msra.mxu0 %v1041
          %1081 = vmatmul.bf16.gmra.mxu0 %v976
          %v1082 = vpop.f32.mrf.mxu0
          %v1083 = vadd.f32 0.0, %v1082
          %v1084 = vpop.f32.mrf.mxu0
          %v1085 = vadd.f32 0.0, %v1084
          %1086 = vdwg.mxu0
          %1087 = vmatpush.bf16.msra.mxu0 %v1056
          %1088 = vmatpush.bf16.msra.mxu0 %v1054
          %1089 = vmatpush.bf16.msra.mxu0 %v1052
          %1090 = vmatpush.bf16.msra.mxu0 %v1050
          %1091 = vmatpush.bf16.msra.mxu0 %v1048
          %1092 = vmatpush.bf16.msra.mxu0 %v1046
          %1093 = vmatpush.bf16.msra.mxu0 %v1044
          %1094 = vmatpush.bf16.msra.mxu0 %v1042
          %1095 = vmatmul.bf16.gmra.mxu0 %v976
          %v1096 = vpop.f32.mrf.mxu0
          %v1097 = vadd.f32 0.0, %v1096
          %v1098 = vpop.f32.mrf.mxu0
          %v1099 = vadd.f32 0.0, %v1098
          %1100 = vdwg.mxu0
          %v1101 = vadd.f32 %v954, %v1083
          %v1102 = vadd.f32 %v955, %v1097
          %v1103 = vadd.f32 %v956, %v1085
          %v1104 = vadd.f32 %v957, %v1099
          %v1105 = vld [vmem:[%s6] sm:$0x3]
          %v1106 = vunpack.c.l.bf16 %v1105
          %v1107 = vld [vmem:[%s7] sm:$0x3]
          %v1108 = vunpack.c.l.bf16 %v1107
          %v1109 = vadd.f32 %v1101, %v1102
          %1110 = vadd.xlane.f32.xlu0 %v1109
          %v1111 = vpop.xlane.xlu0 %1110
          %v1112 = vadd.f32 %v1103, %v1104
          %1113 = vadd.xlane.f32.xlu0 %v1112
          %v1114 = vpop.xlane.xlu0 %1113
          %v1115 = vrcp.pop 256.0
          %v1116 = vmul.f32 256.0, %v1115
          %v1117 = vsub.f32 1.0, %v1116
          %v1118 = vmul.f32 %v1115, %v1117
          %v1119 = vadd.f32 %v1115, %v1118
          %vm1120 = vweird.f32 %v1115
          %v1121 = vsel %vm1120, %v1115, %v1119
          %v1122 = vmul.f32 %v1111, %v1121
          %v1123 = vmul.f32 %v1114, %v1121
          %v1124 = vsub.f32 %v1101, %v1122
          %v1125 = vsub.f32 %v1102, %v1122
          %v1126 = vsub.f32 %v1103, %v1123
          %v1127 = vsub.f32 %v1104, %v1123
          %v1128 = vmul.f32 %v1124, %v1124
          %v1129 = vmul.f32 %v1125, %v1125
          %v1130 = vmul.f32 %v1126, %v1126
          %v1131 = vmul.f32 %v1127, %v1127
          %v1132 = vadd.f32 %v1128, %v1129
          %1133 = vadd.xlane.f32.xlu0 %v1132
          %v1134 = vpop.xlane.xlu0 %1133
          %v1135 = vadd.f32 %v1130, %v1131
          %1136 = vadd.xlane.f32.xlu0 %v1135
          %v1137 = vpop.xlane.xlu0 %1136
          %v1138 = vmul.f32 %v1134, %v1121
          %v1139 = vmul.f32 %v1137, %v1121
          %v1140 = vadd.f32 %v1138, 1e-12
          %v1141 = vadd.f32 %v1139, 1e-12
          %v1142 = vrsqrt.pop %v1140
          %v1143 = vmul.f32 %v1142, %v1140
          %v1144 = vmul.f32 %v1143, %v1142
          %v1145 = vmul.f32 0.5, %v1144
          %v1146 = vsub.f32 1.5, %v1145
          %v1147 = vmul.f32 %v1142, %v1146
          %vm1148 = vweird.f32 %v1140
          %vm1149 = vweird.f32 %v1142
          %vm1150 = vmor %vm1148, %vm1149
          %v1151 = vsel %vm1150, %v1142, %v1147
          %v1152 = vrsqrt.pop %v1141
          %v1153 = vmul.f32 %v1152, %v1141
          %v1154 = vmul.f32 %v1153, %v1152
          %v1155 = vmul.f32 0.5, %v1154
          %v1156 = vsub.f32 1.5, %v1155
          %v1157 = vmul.f32 %v1152, %v1156
          %vm1158 = vweird.f32 %v1141
          %vm1159 = vweird.f32 %v1152
          %vm1160 = vmor %vm1158, %vm1159
          %v1161 = vsel %vm1160, %v1152, %v1157
          %v1162 = vmul.f32 %v1124, %v1151
          %v1163 = vmul.f32 %v1125, %v1151
          %v1164 = vmul.f32 %v1126, %v1161
          %v1165 = vmul.f32 %v1127, %v1161
          %v1167 = vperm.slane %v1106, 0
          %v1168 = vperm.slane %v1106, 2
          %v1171 = vperm.slane %v1167, 0
          %v1172 = vperm.slane %v1168, 0
          %v1173 = vmul.f32 %v1162, %v1171
          %v1174 = vmul.f32 %v1163, %v1172
          %v1175 = vmul.f32 %v1164, %v1171
          %v1176 = vmul.f32 %v1165, %v1172
          %v1178 = vperm.slane %v1108, 0
          %v1179 = vperm.slane %v1108, 2
          %v1182 = vperm.slane %v1178, 0
          %v1183 = vperm.slane %v1179, 0
          %v1184 = vadd.f32 %v1173, %v1182
          %v1185 = vadd.f32 %v1174, %v1183
          %v1186 = vadd.f32 %v1175, %v1182
          %v1187 = vadd.f32 %v1176, %v1183
          %v1188 = vpack.c.bf16 %v1185, %v1184
          %v1189 = vpack.c.bf16 %v1187, %v1186
          %1190 = vst [vmem:[%s520] sm:$0xff] %v1188
          %1191 = vst [vmem:[%s520 + $0x8] sm:$0xff] %v1189
        $region174: #{forward.10} parent=153 // pred_fallthru
          _
        %s1192 = smul.u32 2, %s23
        %p1193 = scmp.lt.s32.totalorder %s1192, 3
        %s1194 = scalar_select %p1193, %s1192, 3
        %s1195 = smul.addr %s1194, 2
        %s1196 = smul.addr %s1195, 4
        %s1197 = scalar_lea.vmem %s8, %s1196
        // Predicated region
        $region175: #{forward.10} parent=153 // pred_check
          %p1198 = pneg %p241
        $region176: #{forward.10} parent=153 // pred_check_branch
          %1200 = sbr.rel (%p1198) target = $region178
        $region177: #{forward.10} parent=153 // pred_region
          %s1201 = smul.u32 2, %s23
        $region178: #{forward.10} parent=153 // pred_fallthru
          _
      $region154: #{forward.10} parent=5 // pred_fallthru
        _
      %p1202 = scmp.le.s32.totalorder 2, %s14
      // Predicated region
      $region179: #{forward.10} parent=5 // pred_check
        %p1203 = pneg %p1202
      $region180: #{forward.10} parent=5 // pred_check_branch
        %1205 = sbr.rel (%p1203) target = $region182
      $region181: #{forward.10} parent=5 // pred_region
        %s1206 = ssub.s32 %s14, 2
        // Predicated region
        $region183: #{forward.10} parent=181 // pred_check
          %p1207 = pneg %p247
        $region184: #{forward.10} parent=181 // pred_check_branch
          %1209 = sbr.rel (%p1207) target = $region186
        $region185: #{forward.10} parent=181 // pred_region
          %s1210 = smul.u32 2, %s25
          %p1211 = scmp.lt.s32.totalorder %s1210, 3
          %s1212 = scalar_select %p1211, %s1210, 3
          %s1213 = smul.addr %s1212, 2
          %s1214 = smul.addr %s1213, 4
          %s1215 = scalar_lea.vmem %s8, %s1214
        $region186: #{forward.10} parent=181 // pred_fallthru
          _
      $region182: #{forward.10} parent=5 // pred_fallthru
        _
    $region6: #{forward.10} parent=1 // loop_footer
      %s18 = sadd.s32 1, %s14
    $region7: #{forward.10} parent=1 // loop_footer_branch
      %13 = sbr.rel target = $region3
    $region8: #{forward.10} parent=1 // loop_exit
      _

// kernel: forward.11
$region0: #{forward.11}
  #allocation0 [shape = 'u32[]', space=smem, size = 0x4, offset = 0x4, fixed_abs, tag = 'smem constant byte address 0x4 - core index']
  #allocation1 [shape = 'u32[72,128]{1,0:T(1,128)}', space=vmem, size = 0x9000, scoped, tag = 'internal scratch']
  %s0 = inlined_call_operand.vmem [shape: bf16[32,256], index: 0, kind: input, shape index: {}]
  %s1 = inlined_call_operand.hbm [shape: bf16[256,512], index: 1, kind: input, shape index: {}]
  %s2 = inlined_call_operand.vmem [shape: bf16[1,512], index: 2, kind: input, shape index: {}]
  %s3 = inlined_call_operand.hbm [shape: bf16[512,256], index: 3, kind: input, shape index: {}]
  %s4 = inlined_call_operand.vmem [shape: bf16[1,256], index: 4, kind: input, shape index: {}]
  %s5 = inlined_call_operand.vmem [shape: bf16[1,256], index: 5, kind: input, shape index: {}]
  %s6 = inlined_call_operand.vmem [shape: bf16[1,256], index: 6, kind: input, shape index: {}]
  %s7 = inlined_call_operand.vmem [shape: bf16[32,256], index: 7, kind: output, shape index: {}]
  %s8 = sld [smem:[#allocation0]]
  $region46: #{forward.11} parent=0
    _
  %s10 = ssub.s32 1, %s8
  %s11 = scalar_select 0, %s10, %s8
  $region1: #{forward.11} parent=0
    #allocation2 [shape = 'u8[262144]{0}', space=vmem, size = 0x40000, scoped, tag = 'input window, operand 1, single buffered']
    #allocation3 [shape = 's32[1]{0}', space=sflag, size = 0x4, scoped, tag = 'scoped memory for forward.11']
    #allocation4 [shape = 'u8[262144]{0}', space=vmem, size = 0x40000, scoped, tag = 'input window, operand 3, single buffered']
    #allocation5 [shape = 's32[1]{0}', space=sflag, size = 0x4, scoped, tag = 'scoped memory for forward.11']
    %12 = vsyncpa [#allocation3], 0
    %13 = vsyncpa [#allocation5], 0
    // Predicated region
    $region2: #{forward.11} parent=1 // pred_check
      _
    $region3: #{forward.11} parent=1 // pred_check_branch
      %15 = sbr.rel (0) target = $region5
    $region4: #{forward.11} parent=1 // pred_region
      _
    $region5: #{forward.11} parent=1 // pred_fallthru
      _
    // Predicated region
    $region6: #{forward.11} parent=1 // pred_check
      _
    $region7: #{forward.11} parent=1 // pred_check_branch
      %17 = sbr.rel (0) target = $region9
    $region8: #{forward.11} parent=1 // pred_region
      %19 = vsyncadd [#allocation3], 0
      %s20 = sshll.u32 %s1, 4
      %s21 = int_to_ptr.hbm [resolvable:$true] %s20
      %s22 = sshll.u32 [#allocation2], 4
      %s23 = int_to_ptr.vmem [resolvable:$true] %s22
      %28 = dma.hbm_to_vmem [thread:$0]  %s21, 8192, %s23, [#allocation3], 256, 256, 16
    $region9: #{forward.11} parent=1 // pred_fallthru
      _
    // Predicated region
    $region10: #{forward.11} parent=1 // pred_check
      _
    $region11: #{forward.11} parent=1 // pred_check_branch
      %30 = sbr.rel (0) target = $region13
    $region12: #{forward.11} parent=1 // pred_region
      _
    $region13: #{forward.11} parent=1 // pred_fallthru
      _
    // Predicated region
    $region14: #{forward.11} parent=1 // pred_check
      _
    $region15: #{forward.11} parent=1 // pred_check_branch
      %32 = sbr.rel (0) target = $region17
    $region16: #{forward.11} parent=1 // pred_region
      %34 = vsyncadd [#allocation5], 0
      %s35 = sshll.u32 %s3, 4
      %s36 = int_to_ptr.hbm [resolvable:$true] %s35
      %s37 = sshll.u32 [#allocation4], 4
      %s38 = int_to_ptr.vmem [resolvable:$true] %s37
      %43 = dma.hbm_to_vmem [thread:$0]  %s36, 8192, %s38, [#allocation5], 128, 128, 8
    $region17: #{forward.11} parent=1 // pred_fallthru
      _
    // Predicated region
    $region18: #{forward.11} parent=1 // pred_check
      _
    $region19: #{forward.11} parent=1 // pred_check_branch
      %45 = sbr.rel (0) target = $region21
    $region20: #{forward.11} parent=1 // pred_region
      _
    $region21: #{forward.11} parent=1 // pred_fallthru
      _
    // Predicated region
    $region22: #{forward.11} parent=1 // pred_check
      _
    $region23: #{forward.11} parent=1 // pred_check_branch
      %47 = sbr.rel (0) target = $region25
    $region24: #{forward.11} parent=1 // pred_region
      _
    $region25: #{forward.11} parent=1 // pred_fallthru
      _
    // Predicated region
    $region26: #{forward.11} parent=1 // pred_check
      _
    $region27: #{forward.11} parent=1 // pred_check_branch
      %49 = sbr.rel (0) target = $region29
    $region28: #{forward.11} parent=1 // pred_region
      _
    $region29: #{forward.11} parent=1 // pred_fallthru
      _
    // Predicated region
    $region30: #{forward.11} parent=1 // pred_check
      _
    $region31: #{forward.11} parent=1 // pred_check_branch
      %51 = sbr.rel (0) target = $region33
    $region32: #{forward.11} parent=1 // pred_region
      %53 = dma.done [#allocation3], 8192
    $region33: #{forward.11} parent=1 // pred_fallthru
      _
    // Predicated region
    $region34: #{forward.11} parent=1 // pred_check
      _
    $region35: #{forward.11} parent=1 // pred_check_branch
      %55 = sbr.rel (0) target = $region37
    $region36: #{forward.11} parent=1 // pred_region
      %57 = dma.done [#allocation5], 8192
    $region37: #{forward.11} parent=1 // pred_fallthru
      _
    %v58 = vld [vmem:[%s0] sm:$0xff]
    %v59 = vld [vmem:[%s0 + $0x8] sm:$0xff]
    %v60 = vld [vmem:[%s0 + $0x10] sm:$0xff]
    %v61 = vld [vmem:[%s0 + $0x18] sm:$0xff]
    %v62 = vld [vmem:[#allocation2] sm:$0xff]
    %v63 = vld [vmem:[#allocation2 + $0x8] sm:$0xff]
    %v64 = vld [vmem:[#allocation2 + $0x10] sm:$0xff]
    %v65 = vld [vmem:[#allocation2 + $0x18] sm:$0xff]
    %v66 = vld [vmem:[#allocation2 + $0x20] sm:$0xff]
    %v67 = vld [vmem:[#allocation2 + $0x28] sm:$0xff]
    %v68 = vld [vmem:[#allocation2 + $0x30] sm:$0xff]
    %v69 = vld [vmem:[#allocation2 + $0x38] sm:$0xff]
    %v70 = vld [vmem:[#allocation2 + $0x40] sm:$0xff]
    %v71 = vld [vmem:[#allocation2 + $0x48] sm:$0xff]
    %v72 = vld [vmem:[#allocation2 + $0x50] sm:$0xff]
    %v73 = vld [vmem:[#allocation2 + $0x58] sm:$0xff]
    %v74 = vld [vmem:[#allocation2 + $0x60] sm:$0xff]
    %v75 = vld [vmem:[#allocation2 + $0x68] sm:$0xff]
    %v76 = vld [vmem:[#allocation2 + $0x70] sm:$0xff]
    %v77 = vld [vmem:[#allocation2 + $0x78] sm:$0xff]
    %v78 = vld [vmem:[#allocation2 + $0x80] sm:$0xff]
    %v79 = vld [vmem:[#allocation2 + $0x88] sm:$0xff]
    %v80 = vld [vmem:[#allocation2 + $0x90] sm:$0xff]
    %v81 = vld [vmem:[#allocation2 + $0x98] sm:$0xff]
    %v82 = vld [vmem:[#allocation2 + $0xa0] sm:$0xff]
    %v83 = vld [vmem:[#allocation2 + $0xa8] sm:$0xff]
    %v84 = vld [vmem:[#allocation2 + $0xb0] sm:$0xff]
    %v85 = vld [vmem:[#allocation2 + $0xb8] sm:$0xff]
    %v86 = vld [vmem:[#allocation2 + $0xc0] sm:$0xff]
    %v87 = vld [vmem:[#allocation2 + $0xc8] sm:$0xff]
    %v88 = vld [vmem:[#allocation2 + $0xd0] sm:$0xff]
    %v89 = vld [vmem:[#allocation2 + $0xd8] sm:$0xff]
    %v90 = vld [vmem:[#allocation2 + $0xe0] sm:$0xff]
    %v91 = vld [vmem:[#allocation2 + $0xe8] sm:$0xff]
    %v92 = vld [vmem:[#allocation2 + $0xf0] sm:$0xff]
    %v93 = vld [vmem:[#allocation2 + $0xf8] sm:$0xff]
    %v94 = vld [vmem:[#allocation2 + $0x100] sm:$0xff]
    %v95 = vld [vmem:[#allocation2 + $0x108] sm:$0xff]
    %v96 = vld [vmem:[#allocation2 + $0x110] sm:$0xff]
    %v97 = vld [vmem:[#allocation2 + $0x118] sm:$0xff]
    %v98 = vld [vmem:[#allocation2 + $0x120] sm:$0xff]
    %v99 = vld [vmem:[#allocation2 + $0x128] sm:$0xff]
    %v100 = vld [vmem:[#allocation2 + $0x130] sm:$0xff]
    %v101 = vld [vmem:[#allocation2 + $0x138] sm:$0xff]
    %v102 = vld [vmem:[#allocation2 + $0x140] sm:$0xff]
    %v103 = vld [vmem:[#allocation2 + $0x148] sm:$0xff]
    %v104 = vld [vmem:[#allocation2 + $0x150] sm:$0xff]
    %v105 = vld [vmem:[#allocation2 + $0x158] sm:$0xff]
    %v106 = vld [vmem:[#allocation2 + $0x160] sm:$0xff]
    %v107 = vld [vmem:[#allocation2 + $0x168] sm:$0xff]
    %v108 = vld [vmem:[#allocation2 + $0x170] sm:$0xff]
    %v109 = vld [vmem:[#allocation2 + $0x178] sm:$0xff]
    %v110 = vld [vmem:[#allocation2 + $0x180] sm:$0xff]
    %v111 = vld [vmem:[#allocation2 + $0x188] sm:$0xff]
    %v112 = vld [vmem:[#allocation2 + $0x190] sm:$0xff]
    %v113 = vld [vmem:[#allocation2 + $0x198] sm:$0xff]
    %v114 = vld [vmem:[#allocation2 + $0x1a0] sm:$0xff]
    %v115 = vld [vmem:[#allocation2 + $0x1a8] sm:$0xff]
    %v116 = vld [vmem:[#allocation2 + $0x1b0] sm:$0xff]
    %v117 = vld [vmem:[#allocation2 + $0x1b8] sm:$0xff]
    %v118 = vld [vmem:[#allocation2 + $0x1c0] sm:$0xff]
    %v119 = vld [vmem:[#allocation2 + $0x1c8] sm:$0xff]
    %v120 = vld [vmem:[#allocation2 + $0x1d0] sm:$0xff]
    %v121 = vld [vmem:[#allocation2 + $0x1d8] sm:$0xff]
    %v122 = vld [vmem:[#allocation2 + $0x1e0] sm:$0xff]
    %v123 = vld [vmem:[#allocation2 + $0x1e8] sm:$0xff]
    %v124 = vld [vmem:[#allocation2 + $0x1f0] sm:$0xff]
    %v125 = vld [vmem:[#allocation2 + $0x1f8] sm:$0xff]
    %v126 = vld [vmem:[%s2] sm:$0xf]
    %v127 = vunpack.c.l.bf16 %v126
    %v129 = vperm.slane %v127, 0
    %v130 = vperm.slane %v127, 2
    %v131 = vperm.slane %v127, 4
    %v132 = vperm.slane %v127, 6
    %v137 = vperm.slane %v129, 0
    %v138 = vperm.slane %v130, 0
    %v139 = vperm.slane %v131, 0
    %v140 = vperm.slane %v132, 0
    %v145 = vunpack.c.l.b16 %v58
    %v146 = vunpack.c.h.b16 %v58
    %v147 = vunpack.c.l.b16 %v59
    %v148 = vunpack.c.h.b16 %v59
    %v149 = vunpack.c.l.b16 %v60
    %v150 = vunpack.c.h.b16 %v60
    %v151 = vunpack.c.l.b16 %v61
    %v152 = vunpack.c.h.b16 %v61
    %v153 = vpack.c.b16 %v147, %v145
    %v154 = vpack.c.b16 %v148, %v146
    %v155 = vpack.c.b16 %v151, %v149
    %v156 = vpack.c.b16 %v152, %v150
    %v225 = vunpack.c.l.b16 %v62
    %v226 = vunpack.c.h.b16 %v62
    %v227 = vunpack.c.l.b16 %v63
    %v228 = vunpack.c.h.b16 %v63
    %v229 = vunpack.c.l.b16 %v64
    %v230 = vunpack.c.h.b16 %v64
    %v231 = vunpack.c.l.b16 %v65
    %v232 = vunpack.c.h.b16 %v65
    %v233 = vunpack.c.l.b16 %v66
    %v234 = vunpack.c.h.b16 %v66
    %v235 = vunpack.c.l.b16 %v67
    %v236 = vunpack.c.h.b16 %v67
    %v237 = vunpack.c.l.b16 %v68
    %v238 = vunpack.c.h.b16 %v68
    %v239 = vunpack.c.l.b16 %v69
    %v240 = vunpack.c.h.b16 %v69
    %v241 = vunpack.c.l.b16 %v70
    %v242 = vunpack.c.h.b16 %v70
    %v243 = vunpack.c.l.b16 %v71
    %v244 = vunpack.c.h.b16 %v71
    %v245 = vunpack.c.l.b16 %v72
    %v246 = vunpack.c.h.b16 %v72
    %v247 = vunpack.c.l.b16 %v73
    %v248 = vunpack.c.h.b16 %v73
    %v249 = vunpack.c.l.b16 %v74
    %v250 = vunpack.c.h.b16 %v74
    %v251 = vunpack.c.l.b16 %v75
    %v252 = vunpack.c.h.b16 %v75
    %v253 = vunpack.c.l.b16 %v76
    %v254 = vunpack.c.h.b16 %v76
    %v255 = vunpack.c.l.b16 %v77
    %v256 = vunpack.c.h.b16 %v77
    %v257 = vunpack.c.l.b16 %v78
    %v258 = vunpack.c.h.b16 %v78
    %v259 = vunpack.c.l.b16 %v79
    %v260 = vunpack.c.h.b16 %v79
    %v261 = vunpack.c.l.b16 %v80
    %v262 = vunpack.c.h.b16 %v80
    %v263 = vunpack.c.l.b16 %v81
    %v264 = vunpack.c.h.b16 %v81
    %v265 = vunpack.c.l.b16 %v82
    %v266 = vunpack.c.h.b16 %v82
    %v267 = vunpack.c.l.b16 %v83
    %v268 = vunpack.c.h.b16 %v83
    %v269 = vunpack.c.l.b16 %v84
    %v270 = vunpack.c.h.b16 %v84
    %v271 = vunpack.c.l.b16 %v85
    %v272 = vunpack.c.h.b16 %v85
    %v273 = vunpack.c.l.b16 %v86
    %v274 = vunpack.c.h.b16 %v86
    %v275 = vunpack.c.l.b16 %v87
    %v276 = vunpack.c.h.b16 %v87
    %v277 = vunpack.c.l.b16 %v88
    %v278 = vunpack.c.h.b16 %v88
    %v279 = vunpack.c.l.b16 %v89
    %v280 = vunpack.c.h.b16 %v89
    %v281 = vunpack.c.l.b16 %v90
    %v282 = vunpack.c.h.b16 %v90
    %v283 = vunpack.c.l.b16 %v91
    %v284 = vunpack.c.h.b16 %v91
    %v285 = vunpack.c.l.b16 %v92
    %v286 = vunpack.c.h.b16 %v92
    %v287 = vunpack.c.l.b16 %v93
    %v288 = vunpack.c.h.b16 %v93
    %v289 = vunpack.c.l.b16 %v94
    %v290 = vunpack.c.h.b16 %v94
    %v291 = vunpack.c.l.b16 %v95
    %v292 = vunpack.c.h.b16 %v95
    %v293 = vunpack.c.l.b16 %v96
    %v294 = vunpack.c.h.b16 %v96
    %v295 = vunpack.c.l.b16 %v97
    %v296 = vunpack.c.h.b16 %v97
    %v297 = vunpack.c.l.b16 %v98
    %v298 = vunpack.c.h.b16 %v98
    %v299 = vunpack.c.l.b16 %v99
    %v300 = vunpack.c.h.b16 %v99
    %v301 = vunpack.c.l.b16 %v100
    %v302 = vunpack.c.h.b16 %v100
    %v303 = vunpack.c.l.b16 %v101
    %v304 = vunpack.c.h.b16 %v101
    %v305 = vunpack.c.l.b16 %v102
    %v306 = vunpack.c.h.b16 %v102
    %v307 = vunpack.c.l.b16 %v103
    %v308 = vunpack.c.h.b16 %v103
    %v309 = vunpack.c.l.b16 %v104
    %v310 = vunpack.c.h.b16 %v104
    %v311 = vunpack.c.l.b16 %v105
    %v312 = vunpack.c.h.b16 %v105
    %v313 = vunpack.c.l.b16 %v106
    %v314 = vunpack.c.h.b16 %v106
    %v315 = vunpack.c.l.b16 %v107
    %v316 = vunpack.c.h.b16 %v107
    %v317 = vunpack.c.l.b16 %v108
    %v318 = vunpack.c.h.b16 %v108
    %v319 = vunpack.c.l.b16 %v109
    %v320 = vunpack.c.h.b16 %v109
    %v321 = vunpack.c.l.b16 %v110
    %v322 = vunpack.c.h.b16 %v110
    %v323 = vunpack.c.l.b16 %v111
    %v324 = vunpack.c.h.b16 %v111
    %v325 = vunpack.c.l.b16 %v112
    %v326 = vunpack.c.h.b16 %v112
    %v327 = vunpack.c.l.b16 %v113
    %v328 = vunpack.c.h.b16 %v113
    %v329 = vunpack.c.l.b16 %v114
    %v330 = vunpack.c.h.b16 %v114
    %v331 = vunpack.c.l.b16 %v115
    %v332 = vunpack.c.h.b16 %v115
    %v333 = vunpack.c.l.b16 %v116
    %v334 = vunpack.c.h.b16 %v116
    %v335 = vunpack.c.l.b16 %v117
    %v336 = vunpack.c.h.b16 %v117
    %v337 = vunpack.c.l.b16 %v118
    %v338 = vunpack.c.h.b16 %v118
    %v339 = vunpack.c.l.b16 %v119
    %v340 = vunpack.c.h.b16 %v119
    %v341 = vunpack.c.l.b16 %v120
    %v342 = vunpack.c.h.b16 %v120
    %v343 = vunpack.c.l.b16 %v121
    %v344 = vunpack.c.h.b16 %v121
    %v345 = vunpack.c.l.b16 %v122
    %v346 = vunpack.c.h.b16 %v122
    %v347 = vunpack.c.l.b16 %v123
    %v348 = vunpack.c.h.b16 %v123
    %v349 = vunpack.c.l.b16 %v124
    %v350 = vunpack.c.h.b16 %v124
    %v351 = vunpack.c.l.b16 %v125
    %v352 = vunpack.c.h.b16 %v125
    %v353 = vpack.c.b16 %v229, %v225
    %v354 = vpack.c.b16 %v230, %v226
    %v355 = vpack.c.b16 %v231, %v227
    %v356 = vpack.c.b16 %v232, %v228
    %v357 = vpack.c.b16 %v237, %v233
    %v358 = vpack.c.b16 %v238, %v234
    %v359 = vpack.c.b16 %v239, %v235
    %v360 = vpack.c.b16 %v240, %v236
    %v361 = vpack.c.b16 %v245, %v241
    %v362 = vpack.c.b16 %v246, %v242
    %v363 = vpack.c.b16 %v247, %v243
    %v364 = vpack.c.b16 %v248, %v244
    %v365 = vpack.c.b16 %v253, %v249
    %v366 = vpack.c.b16 %v254, %v250
    %v367 = vpack.c.b16 %v255, %v251
    %v368 = vpack.c.b16 %v256, %v252
    %v369 = vpack.c.b16 %v261, %v257
    %v370 = vpack.c.b16 %v262, %v258
    %v371 = vpack.c.b16 %v263, %v259
    %v372 = vpack.c.b16 %v264, %v260
    %v373 = vpack.c.b16 %v269, %v265
    %v374 = vpack.c.b16 %v270, %v266
    %v375 = vpack.c.b16 %v271, %v267
    %v376 = vpack.c.b16 %v272, %v268
    %v377 = vpack.c.b16 %v277, %v273
    %v378 = vpack.c.b16 %v278, %v274
    %v379 = vpack.c.b16 %v279, %v275
    %v380 = vpack.c.b16 %v280, %v276
    %v381 = vpack.c.b16 %v285, %v281
    %v382 = vpack.c.b16 %v286, %v282
    %v383 = vpack.c.b16 %v287, %v283
    %v384 = vpack.c.b16 %v288, %v284
    %v385 = vpack.c.b16 %v293, %v289
    %v386 = vpack.c.b16 %v294, %v290
    %v387 = vpack.c.b16 %v295, %v291
    %v388 = vpack.c.b16 %v296, %v292
    %v389 = vpack.c.b16 %v301, %v297
    %v390 = vpack.c.b16 %v302, %v298
    %v391 = vpack.c.b16 %v303, %v299
    %v392 = vpack.c.b16 %v304, %v300
    %v393 = vpack.c.b16 %v309, %v305
    %v394 = vpack.c.b16 %v310, %v306
    %v395 = vpack.c.b16 %v311, %v307
    %v396 = vpack.c.b16 %v312, %v308
    %v397 = vpack.c.b16 %v317, %v313
    %v398 = vpack.c.b16 %v318, %v314
    %v399 = vpack.c.b16 %v319, %v315
    %v400 = vpack.c.b16 %v320, %v316
    %v401 = vpack.c.b16 %v325, %v321
    %v402 = vpack.c.b16 %v326, %v322
    %v403 = vpack.c.b16 %v327, %v323
    %v404 = vpack.c.b16 %v328, %v324
    %v405 = vpack.c.b16 %v333, %v329
    %v406 = vpack.c.b16 %v334, %v330
    %v407 = vpack.c.b16 %v335, %v331
    %v408 = vpack.c.b16 %v336, %v332
    %v409 = vpack.c.b16 %v341, %v337
    %v410 = vpack.c.b16 %v342, %v338
    %v411 = vpack.c.b16 %v343, %v339
    %v412 = vpack.c.b16 %v344, %v340
    %v413 = vpack.c.b16 %v349, %v345
    %v414 = vpack.c.b16 %v350, %v346
    %v415 = vpack.c.b16 %v351, %v347
    %v416 = vpack.c.b16 %v352, %v348
    %481 = vmatpush.bf16.msra.mxu0 %v381
    %482 = vmatpush.bf16.msra.mxu0 %v377
    %483 = vmatpush.bf16.msra.mxu0 %v373
    %484 = vmatpush.bf16.msra.mxu0 %v369
    %485 = vmatpush.bf16.msra.mxu0 %v365
    %486 = vmatpush.bf16.msra.mxu0 %v361
    %487 = vmatpush.bf16.msra.mxu0 %v357
    %488 = vmatpush.bf16.msra.mxu0 %v353
    %489 = vmatmul.bf16.gmra.mxu0 %v153
    %v490 = vpop.f32.mrf.mxu0
    %v491 = vadd.f32 %v137, %v490
    %v492 = vpop.f32.mrf.mxu0
    %v493 = vadd.f32 %v137, %v492
    %494 = vmatmul.bf16.gmra.mxu0 %v155
    %v495 = vpop.f32.mrf.mxu0
    %v496 = vadd.f32 %v137, %v495
    %v497 = vpop.f32.mrf.mxu0
    %v498 = vadd.f32 %v137, %v497
    %499 = vdwg.mxu0
    %500 = vmatpush.bf16.msra.mxu0 %v413
    %501 = vmatpush.bf16.msra.mxu0 %v409
    %502 = vmatpush.bf16.msra.mxu0 %v405
    %503 = vmatpush.bf16.msra.mxu0 %v401
    %504 = vmatpush.bf16.msra.mxu0 %v397
    %505 = vmatpush.bf16.msra.mxu0 %v393
    %506 = vmatpush.bf16.msra.mxu0 %v389
    %507 = vmatpush.bf16.msra.mxu0 %v385
    %508 = vmatmul.bf16.gmra.mxu0 %v154
    %v509 = vpop.f32.mrf.mxu0
    %v510 = vadd.f32 %v491, %v509
    %v511 = vpop.f32.mrf.mxu0
    %v512 = vadd.f32 %v493, %v511
    %513 = vmatmul.bf16.gmra.mxu0 %v156
    %v514 = vpop.f32.mrf.mxu0
    %v515 = vadd.f32 %v496, %v514
    %v516 = vpop.f32.mrf.mxu0
    %v517 = vadd.f32 %v498, %v516
    %518 = vdwg.mxu0
    %519 = vmatpush.bf16.msra.mxu0 %v382
    %520 = vmatpush.bf16.msra.mxu0 %v378
    %521 = vmatpush.bf16.msra.mxu0 %v374
    %522 = vmatpush.bf16.msra.mxu0 %v370
    %523 = vmatpush.bf16.msra.mxu0 %v366
    %524 = vmatpush.bf16.msra.mxu0 %v362
    %525 = vmatpush.bf16.msra.mxu0 %v358
    %526 = vmatpush.bf16.msra.mxu0 %v354
    %527 = vmatmul.bf16.gmra.mxu0 %v153
    %v528 = vpop.f32.mrf.mxu0
    %v529 = vadd.f32 %v138, %v528
    %v530 = vpop.f32.mrf.mxu0
    %v531 = vadd.f32 %v138, %v530
    %532 = vmatmul.bf16.gmra.mxu0 %v155
    %v533 = vpop.f32.mrf.mxu0
    %v534 = vadd.f32 %v138, %v533
    %v535 = vpop.f32.mrf.mxu0
    %v536 = vadd.f32 %v138, %v535
    %537 = vdwg.mxu0
    %538 = vmatpush.bf16.msra.mxu0 %v414
    %539 = vmatpush.bf16.msra.mxu0 %v410
    %540 = vmatpush.bf16.msra.mxu0 %v406
    %541 = vmatpush.bf16.msra.mxu0 %v402
    %542 = vmatpush.bf16.msra.mxu0 %v398
    %543 = vmatpush.bf16.msra.mxu0 %v394
    %544 = vmatpush.bf16.msra.mxu0 %v390
    %545 = vmatpush.bf16.msra.mxu0 %v386
    %546 = vmatmul.bf16.gmra.mxu0 %v154
    %v547 = vpop.f32.mrf.mxu0
    %v548 = vadd.f32 %v529, %v547
    %v549 = vpop.f32.mrf.mxu0
    %v550 = vadd.f32 %v531, %v549
    %551 = vmatmul.bf16.gmra.mxu0 %v156
    %v552 = vpop.f32.mrf.mxu0
    %v553 = vadd.f32 %v534, %v552
    %v554 = vpop.f32.mrf.mxu0
    %v555 = vadd.f32 %v536, %v554
    %556 = vdwg.mxu0
    %557 = vmatpush.bf16.msra.mxu0 %v383
    %558 = vmatpush.bf16.msra.mxu0 %v379
    %559 = vmatpush.bf16.msra.mxu0 %v375
    %560 = vmatpush.bf16.msra.mxu0 %v371
    %561 = vmatpush.bf16.msra.mxu0 %v367
    %562 = vmatpush.bf16.msra.mxu0 %v363
    %563 = vmatpush.bf16.msra.mxu0 %v359
    %564 = vmatpush.bf16.msra.mxu0 %v355
    %565 = vmatmul.bf16.gmra.mxu0 %v153
    %v566 = vpop.f32.mrf.mxu0
    %v567 = vadd.f32 %v139, %v566
    %v568 = vpop.f32.mrf.mxu0
    %v569 = vadd.f32 %v139, %v568
    %570 = vmatmul.bf16.gmra.mxu0 %v155
    %v571 = vpop.f32.mrf.mxu0
    %v572 = vadd.f32 %v139, %v571
    %v573 = vpop.f32.mrf.mxu0
    %v574 = vadd.f32 %v139, %v573
    %575 = vdwg.mxu0
    %576 = vmatpush.bf16.msra.mxu0 %v415
    %577 = vmatpush.bf16.msra.mxu0 %v411
    %578 = vmatpush.bf16.msra.mxu0 %v407
    %579 = vmatpush.bf16.msra.mxu0 %v403
    %580 = vmatpush.bf16.msra.mxu0 %v399
    %581 = vmatpush.bf16.msra.mxu0 %v395
    %582 = vmatpush.bf16.msra.mxu0 %v391
    %583 = vmatpush.bf16.msra.mxu0 %v387
    %584 = vmatmul.bf16.gmra.mxu0 %v154
    %v585 = vpop.f32.mrf.mxu0
    %v586 = vadd.f32 %v567, %v585
    %v587 = vpop.f32.mrf.mxu0
    %v588 = vadd.f32 %v569, %v587
    %589 = vmatmul.bf16.gmra.mxu0 %v156
    %v590 = vpop.f32.mrf.mxu0
    %v591 = vadd.f32 %v572, %v590
    %v592 = vpop.f32.mrf.mxu0
    %v593 = vadd.f32 %v574, %v592
    %594 = vdwg.mxu0
    %595 = vmatpush.bf16.msra.mxu0 %v384
    %596 = vmatpush.bf16.msra.mxu0 %v380
    %597 = vmatpush.bf16.msra.mxu0 %v376
    %598 = vmatpush.bf16.msra.mxu0 %v372
    %599 = vmatpush.bf16.msra.mxu0 %v368
    %600 = vmatpush.bf16.msra.mxu0 %v364
    %601 = vmatpush.bf16.msra.mxu0 %v360
    %602 = vmatpush.bf16.msra.mxu0 %v356
    %603 = vmatmul.bf16.gmra.mxu0 %v153
    %v604 = vpop.f32.mrf.mxu0
    %v605 = vadd.f32 %v140, %v604
    %v606 = vpop.f32.mrf.mxu0
    %v607 = vadd.f32 %v140, %v606
    %608 = vmatmul.bf16.gmra.mxu0 %v155
    %v609 = vpop.f32.mrf.mxu0
    %v610 = vadd.f32 %v140, %v609
    %v611 = vpop.f32.mrf.mxu0
    %v612 = vadd.f32 %v140, %v611
    %613 = vdwg.mxu0
    %614 = vmatpush.bf16.msra.mxu0 %v416
    %615 = vmatpush.bf16.msra.mxu0 %v412
    %616 = vmatpush.bf16.msra.mxu0 %v408
    %617 = vmatpush.bf16.msra.mxu0 %v404
    %618 = vmatpush.bf16.msra.mxu0 %v400
    %619 = vmatpush.bf16.msra.mxu0 %v396
    %620 = vmatpush.bf16.msra.mxu0 %v392
    %621 = vmatpush.bf16.msra.mxu0 %v388
    %622 = vmatmul.bf16.gmra.mxu0 %v154
    %v623 = vpop.f32.mrf.mxu0
    %v624 = vadd.f32 %v605, %v623
    %v625 = vpop.f32.mrf.mxu0
    %v626 = vadd.f32 %v607, %v625
    %627 = vmatmul.bf16.gmra.mxu0 %v156
    %v628 = vpop.f32.mrf.mxu0
    %v629 = vadd.f32 %v610, %v628
    %v630 = vpop.f32.mrf.mxu0
    %v631 = vadd.f32 %v612, %v630
    %632 = vdwg.mxu0
    %v633 = vmul.f32 %v510, %v510
    %v634 = vmul.f32 %v548, %v548
    %v635 = vmul.f32 %v586, %v586
    %v636 = vmul.f32 %v624, %v624
    %v637 = vmul.f32 %v512, %v512
    %v638 = vmul.f32 %v550, %v550
    %v639 = vmul.f32 %v588, %v588
    %v640 = vmul.f32 %v626, %v626
    %v641 = vmul.f32 %v515, %v515
    %v642 = vmul.f32 %v553, %v553
    %v643 = vmul.f32 %v591, %v591
    %v644 = vmul.f32 %v629, %v629
    %v645 = vmul.f32 %v517, %v517
    %v646 = vmul.f32 %v555, %v555
    %v647 = vmul.f32 %v593, %v593
    %v648 = vmul.f32 %v631, %v631
    %v649 = vmul.f32 %v510, %v633
    %v650 = vmul.f32 %v548, %v634
    %v651 = vmul.f32 %v586, %v635
    %v652 = vmul.f32 %v624, %v636
    %v653 = vmul.f32 %v512, %v637
    %v654 = vmul.f32 %v550, %v638
    %v655 = vmul.f32 %v588, %v639
    %v656 = vmul.f32 %v626, %v640
    %v657 = vmul.f32 %v515, %v641
    %v658 = vmul.f32 %v553, %v642
    %v659 = vmul.f32 %v591, %v643
    %v660 = vmul.f32 %v629, %v644
    %v661 = vmul.f32 %v517, %v645
    %v662 = vmul.f32 %v555, %v646
    %v663 = vmul.f32 %v593, %v647
    %v664 = vmul.f32 %v631, %v648
    %v665 = vmul.f32 %v649, 0.044715
    %v666 = vmul.f32 %v650, 0.044715
    %v667 = vmul.f32 %v651, 0.044715
    %v668 = vmul.f32 %v652, 0.044715
    %v669 = vmul.f32 %v653, 0.044715
    %v670 = vmul.f32 %v654, 0.044715
    %v671 = vmul.f32 %v655, 0.044715
    %v672 = vmul.f32 %v656, 0.044715
    %v673 = vmul.f32 %v657, 0.044715
    %v674 = vmul.f32 %v658, 0.044715
    %v675 = vmul.f32 %v659, 0.044715
    %v676 = vmul.f32 %v660, 0.044715
    %v677 = vmul.f32 %v661, 0.044715
    %v678 = vmul.f32 %v662, 0.044715
    %v679 = vmul.f32 %v663, 0.044715
    %v680 = vmul.f32 %v664, 0.044715
    %v681 = vadd.f32 %v510, %v665
    %v682 = vadd.f32 %v548, %v666
    %v683 = vadd.f32 %v586, %v667
    %v684 = vadd.f32 %v624, %v668
    %v685 = vadd.f32 %v512, %v669
    %v686 = vadd.f32 %v550, %v670
    %v687 = vadd.f32 %v588, %v671
    %v688 = vadd.f32 %v626, %v672
    %v689 = vadd.f32 %v515, %v673
    %v690 = vadd.f32 %v553, %v674
    %v691 = vadd.f32 %v591, %v675
    %v692 = vadd.f32 %v629, %v676
    %v693 = vadd.f32 %v517, %v677
    %v694 = vadd.f32 %v555, %v678
    %v695 = vadd.f32 %v593, %v679
    %v696 = vadd.f32 %v631, %v680
    %v697 = vmul.f32 %v681, 0.7978846
    %v698 = vmul.f32 %v682, 0.7978846
    %v699 = vmul.f32 %v683, 0.7978846
    %v700 = vmul.f32 %v684, 0.7978846
    %v701 = vmul.f32 %v685, 0.7978846
    %v702 = vmul.f32 %v686, 0.7978846
    %v703 = vmul.f32 %v687, 0.7978846
    %v704 = vmul.f32 %v688, 0.7978846
    %v705 = vmul.f32 %v689, 0.7978846
    %v706 = vmul.f32 %v690, 0.7978846
    %v707 = vmul.f32 %v691, 0.7978846
    %v708 = vmul.f32 %v692, 0.7978846
    %v709 = vmul.f32 %v693, 0.7978846
    %v710 = vmul.f32 %v694, 0.7978846
    %v711 = vmul.f32 %v695, 0.7978846
    %v712 = vmul.f32 %v696, 0.7978846
    %v713 = vtanh.pop %v697
    %v714 = vtanh.pop %v698
    %v715 = vtanh.pop %v699
    %v716 = vtanh.pop %v700
    %v717 = vtanh.pop %v701
    %v718 = vtanh.pop %v702
    %v719 = vtanh.pop %v703
    %v720 = vtanh.pop %v704
    %v721 = vtanh.pop %v705
    %v722 = vtanh.pop %v706
    %v723 = vtanh.pop %v707
    %v724 = vtanh.pop %v708
    %v725 = vtanh.pop %v709
    %v726 = vtanh.pop %v710
    %v727 = vtanh.pop %v711
    %v728 = vtanh.pop %v712
    %v729 = vadd.f32 %v713, 1.0
    %v730 = vadd.f32 %v714, 1.0
    %v731 = vadd.f32 %v715, 1.0
    %v732 = vadd.f32 %v716, 1.0
    %v733 = vadd.f32 %v717, 1.0
    %v734 = vadd.f32 %v718, 1.0
    %v735 = vadd.f32 %v719, 1.0
    %v736 = vadd.f32 %v720, 1.0
    %v737 = vadd.f32 %v721, 1.0
    %v738 = vadd.f32 %v722, 1.0
    %v739 = vadd.f32 %v723, 1.0
    %v740 = vadd.f32 %v724, 1.0
    %v741 = vadd.f32 %v725, 1.0
    %v742 = vadd.f32 %v726, 1.0
    %v743 = vadd.f32 %v727, 1.0
    %v744 = vadd.f32 %v728, 1.0
    %v745 = vmul.f32 %v729, 0.5
    %v746 = vmul.f32 %v730, 0.5
    %v747 = vmul.f32 %v731, 0.5
    %v748 = vmul.f32 %v732, 0.5
    %v749 = vmul.f32 %v733, 0.5
    %v750 = vmul.f32 %v734, 0.5
    %v751 = vmul.f32 %v735, 0.5
    %v752 = vmul.f32 %v736, 0.5
    %v753 = vmul.f32 %v737, 0.5
    %v754 = vmul.f32 %v738, 0.5
    %v755 = vmul.f32 %v739, 0.5
    %v756 = vmul.f32 %v740, 0.5
    %v757 = vmul.f32 %v741, 0.5
    %v758 = vmul.f32 %v742, 0.5
    %v759 = vmul.f32 %v743, 0.5
    %v760 = vmul.f32 %v744, 0.5
    %v761 = vmul.f32 %v510, %v745
    %v762 = vmul.f32 %v548, %v746
    %v763 = vmul.f32 %v586, %v747
    %v764 = vmul.f32 %v624, %v748
    %v765 = vmul.f32 %v512, %v749
    %v766 = vmul.f32 %v550, %v750
    %v767 = vmul.f32 %v588, %v751
    %v768 = vmul.f32 %v626, %v752
    %v769 = vmul.f32 %v515, %v753
    %v770 = vmul.f32 %v553, %v754
    %v771 = vmul.f32 %v591, %v755
    %v772 = vmul.f32 %v629, %v756
    %v773 = vmul.f32 %v517, %v757
    %v774 = vmul.f32 %v555, %v758
    %v775 = vmul.f32 %v593, %v759
    %v776 = vmul.f32 %v631, %v760
    %v777 = vpack.c.bf16 %v765, %v761
    %v778 = vpack.c.bf16 %v766, %v762
    %v779 = vpack.c.bf16 %v767, %v763
    %v780 = vpack.c.bf16 %v768, %v764
    %v781 = vpack.c.bf16 %v773, %v769
    %v782 = vpack.c.bf16 %v774, %v770
    %v783 = vpack.c.bf16 %v775, %v771
    %v784 = vpack.c.bf16 %v776, %v772
    %v785 = vld [vmem:[#allocation4] sm:$0xff]
    %v786 = vld [vmem:[#allocation4 + $0x8] sm:$0xff]
    %v787 = vld [vmem:[#allocation4 + $0x10] sm:$0xff]
    %v788 = vld [vmem:[#allocation4 + $0x18] sm:$0xff]
    %v789 = vld [vmem:[#allocation4 + $0x20] sm:$0xff]
    %v790 = vld [vmem:[#allocation4 + $0x28] sm:$0xff]
    %v791 = vld [vmem:[#allocation4 + $0x30] sm:$0xff]
    %v792 = vld [vmem:[#allocation4 + $0x38] sm:$0xff]
    %v793 = vld [vmem:[#allocation4 + $0x40] sm:$0xff]
    %v794 = vld [vmem:[#allocation4 + $0x48] sm:$0xff]
    %v795 = vld [vmem:[#allocation4 + $0x50] sm:$0xff]
    %v796 = vld [vmem:[#allocation4 + $0x58] sm:$0xff]
    %v797 = vld [vmem:[#allocation4 + $0x60] sm:$0xff]
    %v798 = vld [vmem:[#allocation4 + $0x68] sm:$0xff]
    %v799 = vld [vmem:[#allocation4 + $0x70] sm:$0xff]
    %v800 = vld [vmem:[#allocation4 + $0x78] sm:$0xff]
    %v801 = vld [vmem:[#allocation4 + $0x80] sm:$0xff]
    %v802 = vld [vmem:[#allocation4 + $0x88] sm:$0xff]
    %v803 = vld [vmem:[#allocation4 + $0x90] sm:$0xff]
    %v804 = vld [vmem:[#allocation4 + $0x98] sm:$0xff]
    %v805 = vld [vmem:[#allocation4 + $0xa0] sm:$0xff]
    %v806 = vld [vmem:[#allocation4 + $0xa8] sm:$0xff]
    %v807 = vld [vmem:[#allocation4 + $0xb0] sm:$0xff]
    %v808 = vld [vmem:[#allocation4 + $0xb8] sm:$0xff]
    %v809 = vld [vmem:[#allocation4 + $0xc0] sm:$0xff]
    %v810 = vld [vmem:[#allocation4 + $0xc8] sm:$0xff]
    %v811 = vld [vmem:[#allocation4 + $0xd0] sm:$0xff]
    %v812 = vld [vmem:[#allocation4 + $0xd8] sm:$0xff]
    %v813 = vld [vmem:[#allocation4 + $0xe0] sm:$0xff]
    %v814 = vld [vmem:[#allocation4 + $0xe8] sm:$0xff]
    %v815 = vld [vmem:[#allocation4 + $0xf0] sm:$0xff]
    %v816 = vld [vmem:[#allocation4 + $0xf8] sm:$0xff]
    %v817 = vld [vmem:[#allocation4 + $0x100] sm:$0xff]
    %v818 = vld [vmem:[#allocation4 + $0x108] sm:$0xff]
    %v819 = vld [vmem:[#allocation4 + $0x110] sm:$0xff]
    %v820 = vld [vmem:[#allocation4 + $0x118] sm:$0xff]
    %v821 = vld [vmem:[#allocation4 + $0x120] sm:$0xff]
    %v822 = vld [vmem:[#allocation4 + $0x128] sm:$0xff]
    %v823 = vld [vmem:[#allocation4 + $0x130] sm:$0xff]
    %v824 = vld [vmem:[#allocation4 + $0x138] sm:$0xff]
    %v825 = vld [vmem:[#allocation4 + $0x140] sm:$0xff]
    %v826 = vld [vmem:[#allocation4 + $0x148] sm:$0xff]
    %v827 = vld [vmem:[#allocation4 + $0x150] sm:$0xff]
    %v828 = vld [vmem:[#allocation4 + $0x158] sm:$0xff]
    %v829 = vld [vmem:[#allocation4 + $0x160] sm:$0xff]
    %v830 = vld [vmem:[#allocation4 + $0x168] sm:$0xff]
    %v831 = vld [vmem:[#allocation4 + $0x170] sm:$0xff]
    %v832 = vld [vmem:[#allocation4 + $0x178] sm:$0xff]
    %v833 = vld [vmem:[#allocation4 + $0x180] sm:$0xff]
    %v834 = vld [vmem:[#allocation4 + $0x188] sm:$0xff]
    %v835 = vld [vmem:[#allocation4 + $0x190] sm:$0xff]
    %v836 = vld [vmem:[#allocation4 + $0x198] sm:$0xff]
    %v837 = vld [vmem:[#allocation4 + $0x1a0] sm:$0xff]
    %v838 = vld [vmem:[#allocation4 + $0x1a8] sm:$0xff]
    %v839 = vld [vmem:[#allocation4 + $0x1b0] sm:$0xff]
    %v840 = vld [vmem:[#allocation4 + $0x1b8] sm:$0xff]
    %v841 = vld [vmem:[#allocation4 + $0x1c0] sm:$0xff]
    %v842 = vld [vmem:[#allocation4 + $0x1c8] sm:$0xff]
    %v843 = vld [vmem:[#allocation4 + $0x1d0] sm:$0xff]
    %v844 = vld [vmem:[#allocation4 + $0x1d8] sm:$0xff]
    %v845 = vld [vmem:[#allocation4 + $0x1e0] sm:$0xff]
    %v846 = vld [vmem:[#allocation4 + $0x1e8] sm:$0xff]
    %v847 = vld [vmem:[#allocation4 + $0x1f0] sm:$0xff]
    %v848 = vld [vmem:[#allocation4 + $0x1f8] sm:$0xff]
    %v849 = vld [vmem:[%s4] sm:$0x3]
    %v850 = vunpack.c.l.bf16 %v849
    %v852 = vperm.slane %v850, 0
    %v853 = vperm.slane %v850, 2
    %v856 = vperm.slane %v852, 0
    %v857 = vperm.slane %v853, 0
    %v922 = vunpack.c.l.b16 %v785
    %v923 = vunpack.c.h.b16 %v785
    %v924 = vunpack.c.l.b16 %v786
    %v925 = vunpack.c.h.b16 %v786
    %v926 = vunpack.c.l.b16 %v787
    %v927 = vunpack.c.h.b16 %v787
    %v928 = vunpack.c.l.b16 %v788
    %v929 = vunpack.c.h.b16 %v788
    %v930 = vunpack.c.l.b16 %v789
    %v931 = vunpack.c.h.b16 %v789
    %v932 = vunpack.c.l.b16 %v790
    %v933 = vunpack.c.h.b16 %v790
    %v934 = vunpack.c.l.b16 %v791
    %v935 = vunpack.c.h.b16 %v791
    %v936 = vunpack.c.l.b16 %v792
    %v937 = vunpack.c.h.b16 %v792
    %v938 = vunpack.c.l.b16 %v793
    %v939 = vunpack.c.h.b16 %v793
    %v940 = vunpack.c.l.b16 %v794
    %v941 = vunpack.c.h.b16 %v794
    %v942 = vunpack.c.l.b16 %v795
    %v943 = vunpack.c.h.b16 %v795
    %v944 = vunpack.c.l.b16 %v796
    %v945 = vunpack.c.h.b16 %v796
    %v946 = vunpack.c.l.b16 %v797
    %v947 = vunpack.c.h.b16 %v797
    %v948 = vunpack.c.l.b16 %v798
    %v949 = vunpack.c.h.b16 %v798
    %v950 = vunpack.c.l.b16 %v799
    %v951 = vunpack.c.h.b16 %v799
    %v952 = vunpack.c.l.b16 %v800
    %v953 = vunpack.c.h.b16 %v800
    %v954 = vunpack.c.l.b16 %v801
    %v955 = vunpack.c.h.b16 %v801
    %v956 = vunpack.c.l.b16 %v802
    %v957 = vunpack.c.h.b16 %v802
    %v958 = vunpack.c.l.b16 %v803
    %v959 = vunpack.c.h.b16 %v803
    %v960 = vunpack.c.l.b16 %v804
    %v961 = vunpack.c.h.b16 %v804
    %v962 = vunpack.c.l.b16 %v805
    %v963 = vunpack.c.h.b16 %v805
    %v964 = vunpack.c.l.b16 %v806
    %v965 = vunpack.c.h.b16 %v806
    %v966 = vunpack.c.l.b16 %v807
    %v967 = vunpack.c.h.b16 %v807
    %v968 = vunpack.c.l.b16 %v808
    %v969 = vunpack.c.h.b16 %v808
    %v970 = vunpack.c.l.b16 %v809
    %v971 = vunpack.c.h.b16 %v809
    %v972 = vunpack.c.l.b16 %v810
    %v973 = vunpack.c.h.b16 %v810
    %v974 = vunpack.c.l.b16 %v811
    %v975 = vunpack.c.h.b16 %v811
    %v976 = vunpack.c.l.b16 %v812
    %v977 = vunpack.c.h.b16 %v812
    %v978 = vunpack.c.l.b16 %v813
    %v979 = vunpack.c.h.b16 %v813
    %v980 = vunpack.c.l.b16 %v814
    %v981 = vunpack.c.h.b16 %v814
    %v982 = vunpack.c.l.b16 %v815
    %v983 = vunpack.c.h.b16 %v815
    %v984 = vunpack.c.l.b16 %v816
    %v985 = vunpack.c.h.b16 %v816
    %v986 = vunpack.c.l.b16 %v817
    %v987 = vunpack.c.h.b16 %v817
    %v988 = vunpack.c.l.b16 %v818
    %v989 = vunpack.c.h.b16 %v818
    %v990 = vunpack.c.l.b16 %v819
    %v991 = vunpack.c.h.b16 %v819
    %v992 = vunpack.c.l.b16 %v820
    %v993 = vunpack.c.h.b16 %v820
    %v994 = vunpack.c.l.b16 %v821
    %v995 = vunpack.c.h.b16 %v821
    %v996 = vunpack.c.l.b16 %v822
    %v997 = vunpack.c.h.b16 %v822
    %v998 = vunpack.c.l.b16 %v823
    %v999 = vunpack.c.h.b16 %v823
    %v1000 = vunpack.c.l.b16 %v824
    %v1001 = vunpack.c.h.b16 %v824
    %v1002 = vunpack.c.l.b16 %v825
    %v1003 = vunpack.c.h.b16 %v825
    %v1004 = vunpack.c.l.b16 %v826
    %v1005 = vunpack.c.h.b16 %v826
    %v1006 = vunpack.c.l.b16 %v827
    %v1007 = vunpack.c.h.b16 %v827
    %v1008 = vunpack.c.l.b16 %v828
    %v1009 = vunpack.c.h.b16 %v828
    %v1010 = vunpack.c.l.b16 %v829
    %v1011 = vunpack.c.h.b16 %v829
    %v1012 = vunpack.c.l.b16 %v830
    %v1013 = vunpack.c.h.b16 %v830
    %v1014 = vunpack.c.l.b16 %v831
    %v1015 = vunpack.c.h.b16 %v831
    %v1016 = vunpack.c.l.b16 %v832
    %v1017 = vunpack.c.h.b16 %v832
    %v1018 = vunpack.c.l.b16 %v833
    %v1019 = vunpack.c.h.b16 %v833
    %v1020 = vunpack.c.l.b16 %v834
    %v1021 = vunpack.c.h.b16 %v834
    %v1022 = vunpack.c.l.b16 %v835
    %v1023 = vunpack.c.h.b16 %v835
    %v1024 = vunpack.c.l.b16 %v836
    %v1025 = vunpack.c.h.b16 %v836
    %v1026 = vunpack.c.l.b16 %v837
    %v1027 = vunpack.c.h.b16 %v837
    %v1028 = vunpack.c.l.b16 %v838
    %v1029 = vunpack.c.h.b16 %v838
    %v1030 = vunpack.c.l.b16 %v839
    %v1031 = vunpack.c.h.b16 %v839
    %v1032 = vunpack.c.l.b16 %v840
    %v1033 = vunpack.c.h.b16 %v840
    %v1034 = vunpack.c.l.b16 %v841
    %v1035 = vunpack.c.h.b16 %v841
    %v1036 = vunpack.c.l.b16 %v842
    %v1037 = vunpack.c.h.b16 %v842
    %v1038 = vunpack.c.l.b16 %v843
    %v1039 = vunpack.c.h.b16 %v843
    %v1040 = vunpack.c.l.b16 %v844
    %v1041 = vunpack.c.h.b16 %v844
    %v1042 = vunpack.c.l.b16 %v845
    %v1043 = vunpack.c.h.b16 %v845
    %v1044 = vunpack.c.l.b16 %v846
    %v1045 = vunpack.c.h.b16 %v846
    %v1046 = vunpack.c.l.b16 %v847
    %v1047 = vunpack.c.h.b16 %v847
    %v1048 = vunpack.c.l.b16 %v848
    %v1049 = vunpack.c.h.b16 %v848
    %v1050 = vpack.c.b16 %v924, %v922
    %v1051 = vpack.c.b16 %v925, %v923
    %v1052 = vpack.c.b16 %v928, %v926
    %v1053 = vpack.c.b16 %v929, %v927
    %v1054 = vpack.c.b16 %v932, %v930
    %v1055 = vpack.c.b16 %v933, %v931
    %v1056 = vpack.c.b16 %v936, %v934
    %v1057 = vpack.c.b16 %v937, %v935
    %v1058 = vpack.c.b16 %v940, %v938
    %v1059 = vpack.c.b16 %v941, %v939
    %v1060 = vpack.c.b16 %v944, %v942
    %v1061 = vpack.c.b16 %v945, %v943
    %v1062 = vpack.c.b16 %v948, %v946
    %v1063 = vpack.c.b16 %v949, %v947
    %v1064 = vpack.c.b16 %v952, %v950
    %v1065 = vpack.c.b16 %v953, %v951
    %v1066 = vpack.c.b16 %v956, %v954
    %v1067 = vpack.c.b16 %v957, %v955
    %v1068 = vpack.c.b16 %v960, %v958
    %v1069 = vpack.c.b16 %v961, %v959
    %v1070 = vpack.c.b16 %v964, %v962
    %v1071 = vpack.c.b16 %v965, %v963
    %v1072 = vpack.c.b16 %v968, %v966
    %v1073 = vpack.c.b16 %v969, %v967
    %v1074 = vpack.c.b16 %v972, %v970
    %v1075 = vpack.c.b16 %v973, %v971
    %v1076 = vpack.c.b16 %v976, %v974
    %v1077 = vpack.c.b16 %v977, %v975
    %v1078 = vpack.c.b16 %v980, %v978
    %v1079 = vpack.c.b16 %v981, %v979
    %v1080 = vpack.c.b16 %v984, %v982
    %v1081 = vpack.c.b16 %v985, %v983
    %v1082 = vpack.c.b16 %v988, %v986
    %v1083 = vpack.c.b16 %v989, %v987
    %v1084 = vpack.c.b16 %v992, %v990
    %v1085 = vpack.c.b16 %v993, %v991
    %v1086 = vpack.c.b16 %v996, %v994
    %v1087 = vpack.c.b16 %v997, %v995
    %v1088 = vpack.c.b16 %v1000, %v998
    %v1089 = vpack.c.b16 %v1001, %v999
    %v1090 = vpack.c.b16 %v1004, %v1002
    %v1091 = vpack.c.b16 %v1005, %v1003
    %v1092 = vpack.c.b16 %v1008, %v1006
    %v1093 = vpack.c.b16 %v1009, %v1007
    %v1094 = vpack.c.b16 %v1012, %v1010
    %v1095 = vpack.c.b16 %v1013, %v1011
    %v1096 = vpack.c.b16 %v1016, %v1014
    %v1097 = vpack.c.b16 %v1017, %v1015
    %v1098 = vpack.c.b16 %v1020, %v1018
    %v1099 = vpack.c.b16 %v1021, %v1019
    %v1100 = vpack.c.b16 %v1024, %v1022
    %v1101 = vpack.c.b16 %v1025, %v1023
    %v1102 = vpack.c.b16 %v1028, %v1026
    %v1103 = vpack.c.b16 %v1029, %v1027
    %v1104 = vpack.c.b16 %v1032, %v1030
    %v1105 = vpack.c.b16 %v1033, %v1031
    %v1106 = vpack.c.b16 %v1036, %v1034
    %v1107 = vpack.c.b16 %v1037, %v1035
    %v1108 = vpack.c.b16 %v1040, %v1038
    %v1109 = vpack.c.b16 %v1041, %v1039
    %v1110 = vpack.c.b16 %v1044, %v1042
    %v1111 = vpack.c.b16 %v1045, %v1043
    %v1112 = vpack.c.b16 %v1048, %v1046
    %v1113 = vpack.c.b16 %v1049, %v1047
    %1178 = vmatpush.bf16.msra.mxu0 %v1064
    %1179 = vmatpush.bf16.msra.mxu0 %v1062
    %1180 = vmatpush.bf16.msra.mxu0 %v1060
    %1181 = vmatpush.bf16.msra.mxu0 %v1058
    %1182 = vmatpush.bf16.msra.mxu0 %v1056
    %1183 = vmatpush.bf16.msra.mxu0 %v1054
    %1184 = vmatpush.bf16.msra.mxu0 %v1052
    %1185 = vmatpush.bf16.msra.mxu0 %v1050
    %1186 = vmatmul.bf16.gmra.mxu0 %v777
    %v1187 = vpop.f32.mrf.mxu0
    %v1188 = vadd.f32 %v856, %v1187
    %v1189 = vpop.f32.mrf.mxu0
    %v1190 = vadd.f32 %v856, %v1189
    %1191 = vmatmul.bf16.gmra.mxu0 %v781
    %v1192 = vpop.f32.mrf.mxu0
    %v1193 = vadd.f32 %v856, %v1192
    %v1194 = vpop.f32.mrf.mxu0
    %v1195 = vadd.f32 %v856, %v1194
    %1196 = vdwg.mxu0
    %1197 = vmatpush.bf16.msra.mxu0 %v1080
    %1198 = vmatpush.bf16.msra.mxu0 %v1078
    %1199 = vmatpush.bf16.msra.mxu0 %v1076
    %1200 = vmatpush.bf16.msra.mxu0 %v1074
    %1201 = vmatpush.bf16.msra.mxu0 %v1072
    %1202 = vmatpush.bf16.msra.mxu0 %v1070
    %1203 = vmatpush.bf16.msra.mxu0 %v1068
    %1204 = vmatpush.bf16.msra.mxu0 %v1066
    %1205 = vmatmul.bf16.gmra.mxu0 %v778
    %v1206 = vpop.f32.mrf.mxu0
    %v1207 = vadd.f32 %v1188, %v1206
    %v1208 = vpop.f32.mrf.mxu0
    %v1209 = vadd.f32 %v1190, %v1208
    %1210 = vmatmul.bf16.gmra.mxu0 %v782
    %v1211 = vpop.f32.mrf.mxu0
    %v1212 = vadd.f32 %v1193, %v1211
    %v1213 = vpop.f32.mrf.mxu0
    %v1214 = vadd.f32 %v1195, %v1213
    %1215 = vdwg.mxu0
    %1216 = vmatpush.bf16.msra.mxu0 %v1096
    %1217 = vmatpush.bf16.msra.mxu0 %v1094
    %1218 = vmatpush.bf16.msra.mxu0 %v1092
    %1219 = vmatpush.bf16.msra.mxu0 %v1090
    %1220 = vmatpush.bf16.msra.mxu0 %v1088
    %1221 = vmatpush.bf16.msra.mxu0 %v1086
    %1222 = vmatpush.bf16.msra.mxu0 %v1084
    %1223 = vmatpush.bf16.msra.mxu0 %v1082
    %1224 = vmatmul.bf16.gmra.mxu0 %v779
    %v1225 = vpop.f32.mrf.mxu0
    %v1226 = vadd.f32 %v1207, %v1225
    %v1227 = vpop.f32.mrf.mxu0
    %v1228 = vadd.f32 %v1209, %v1227
    %1229 = vmatmul.bf16.gmra.mxu0 %v783
    %v1230 = vpop.f32.mrf.mxu0
    %v1231 = vadd.f32 %v1212, %v1230
    %v1232 = vpop.f32.mrf.mxu0
    %v1233 = vadd.f32 %v1214, %v1232
    %1234 = vdwg.mxu0
    %1235 = vmatpush.bf16.msra.mxu0 %v1112
    %1236 = vmatpush.bf16.msra.mxu0 %v1110
    %1237 = vmatpush.bf16.msra.mxu0 %v1108
    %1238 = vmatpush.bf16.msra.mxu0 %v1106
    %1239 = vmatpush.bf16.msra.mxu0 %v1104
    %1240 = vmatpush.bf16.msra.mxu0 %v1102
    %1241 = vmatpush.bf16.msra.mxu0 %v1100
    %1242 = vmatpush.bf16.msra.mxu0 %v1098
    %1243 = vmatmul.bf16.gmra.mxu0 %v780
    %v1244 = vpop.f32.mrf.mxu0
    %v1245 = vadd.f32 %v1226, %v1244
    %v1246 = vpop.f32.mrf.mxu0
    %v1247 = vadd.f32 %v1228, %v1246
    %1248 = vmatmul.bf16.gmra.mxu0 %v784
    %v1249 = vpop.f32.mrf.mxu0
    %v1250 = vadd.f32 %v1231, %v1249
    %v1251 = vpop.f32.mrf.mxu0
    %v1252 = vadd.f32 %v1233, %v1251
    %1253 = vdwg.mxu0
    %1254 = vmatpush.bf16.msra.mxu0 %v1065
    %1255 = vmatpush.bf16.msra.mxu0 %v1063
    %1256 = vmatpush.bf16.msra.mxu0 %v1061
    %1257 = vmatpush.bf16.msra.mxu0 %v1059
    %1258 = vmatpush.bf16.msra.mxu0 %v1057
    %1259 = vmatpush.bf16.msra.mxu0 %v1055
    %1260 = vmatpush.bf16.msra.mxu0 %v1053
    %1261 = vmatpush.bf16.msra.mxu0 %v1051
    %1262 = vmatmul.bf16.gmra.mxu0 %v777
    %v1263 = vpop.f32.mrf.mxu0
    %v1264 = vadd.f32 %v857, %v1263
    %v1265 = vpop.f32.mrf.mxu0
    %v1266 = vadd.f32 %v857, %v1265
    %1267 = vmatmul.bf16.gmra.mxu0 %v781
    %v1268 = vpop.f32.mrf.mxu0
    %v1269 = vadd.f32 %v857, %v1268
    %v1270 = vpop.f32.mrf.mxu0
    %v1271 = vadd.f32 %v857, %v1270
    %1272 = vdwg.mxu0
    %1273 = vmatpush.bf16.msra.mxu0 %v1081
    %1274 = vmatpush.bf16.msra.mxu0 %v1079
    %1275 = vmatpush.bf16.msra.mxu0 %v1077
    %1276 = vmatpush.bf16.msra.mxu0 %v1075
    %1277 = vmatpush.bf16.msra.mxu0 %v1073
    %1278 = vmatpush.bf16.msra.mxu0 %v1071
    %1279 = vmatpush.bf16.msra.mxu0 %v1069
    %1280 = vmatpush.bf16.msra.mxu0 %v1067
    %1281 = vmatmul.bf16.gmra.mxu0 %v778
    %v1282 = vpop.f32.mrf.mxu0
    %v1283 = vadd.f32 %v1264, %v1282
    %v1284 = vpop.f32.mrf.mxu0
    %v1285 = vadd.f32 %v1266, %v1284
    %1286 = vmatmul.bf16.gmra.mxu0 %v782
    %v1287 = vpop.f32.mrf.mxu0
    %v1288 = vadd.f32 %v1269, %v1287
    %v1289 = vpop.f32.mrf.mxu0
    %v1290 = vadd.f32 %v1271, %v1289
    %1291 = vdwg.mxu0
    %1292 = vmatpush.bf16.msra.mxu0 %v1097
    %1293 = vmatpush.bf16.msra.mxu0 %v1095
    %1294 = vmatpush.bf16.msra.mxu0 %v1093
    %1295 = vmatpush.bf16.msra.mxu0 %v1091
    %1296 = vmatpush.bf16.msra.mxu0 %v1089
    %1297 = vmatpush.bf16.msra.mxu0 %v1087
    %1298 = vmatpush.bf16.msra.mxu0 %v1085
    %1299 = vmatpush.bf16.msra.mxu0 %v1083
    %1300 = vmatmul.bf16.gmra.mxu0 %v779
    %v1301 = vpop.f32.mrf.mxu0
    %v1302 = vadd.f32 %v1283, %v1301
    %v1303 = vpop.f32.mrf.mxu0
    %v1304 = vadd.f32 %v1285, %v1303
    %1305 = vmatmul.bf16.gmra.mxu0 %v783
    %v1306 = vpop.f32.mrf.mxu0
    %v1307 = vadd.f32 %v1288, %v1306
    %v1308 = vpop.f32.mrf.mxu0
    %v1309 = vadd.f32 %v1290, %v1308
    %1310 = vdwg.mxu0
    %1311 = vmatpush.bf16.msra.mxu0 %v1113
    %1312 = vmatpush.bf16.msra.mxu0 %v1111
    %1313 = vmatpush.bf16.msra.mxu0 %v1109
    %1314 = vmatpush.bf16.msra.mxu0 %v1107
    %1315 = vmatpush.bf16.msra.mxu0 %v1105
    %1316 = vmatpush.bf16.msra.mxu0 %v1103
    %1317 = vmatpush.bf16.msra.mxu0 %v1101
    %1318 = vmatpush.bf16.msra.mxu0 %v1099
    %1319 = vmatmul.bf16.gmra.mxu0 %v780
    %v1320 = vpop.f32.mrf.mxu0
    %v1321 = vadd.f32 %v1302, %v1320
    %v1322 = vpop.f32.mrf.mxu0
    %v1323 = vadd.f32 %v1304, %v1322
    %1324 = vmatmul.bf16.gmra.mxu0 %v784
    %v1325 = vpop.f32.mrf.mxu0
    %v1326 = vadd.f32 %v1307, %v1325
    %v1327 = vpop.f32.mrf.mxu0
    %v1328 = vadd.f32 %v1309, %v1327
    %1329 = vdwg.mxu0
    %v1330 = vunpack.c.l.bf16 %v58
    %v1331 = vunpack.c.h.bf16 %v58
    %v1332 = vunpack.c.l.bf16 %v59
    %v1333 = vunpack.c.h.bf16 %v59
    %v1334 = vunpack.c.l.bf16 %v60
    %v1335 = vunpack.c.h.bf16 %v60
    %v1336 = vunpack.c.l.bf16 %v61
    %v1337 = vunpack.c.h.bf16 %v61
    %v1338 = vadd.f32 %v1245, %v1330
    %v1339 = vadd.f32 %v1321, %v1331
    %v1340 = vadd.f32 %v1247, %v1332
    %v1341 = vadd.f32 %v1323, %v1333
    %v1342 = vadd.f32 %v1250, %v1334
    %v1343 = vadd.f32 %v1326, %v1335
    %v1344 = vadd.f32 %v1252, %v1336
    %v1345 = vadd.f32 %v1328, %v1337
    %v1346 = vld [vmem:[%s5] sm:$0x3]
    %v1347 = vunpack.c.l.bf16 %v1346
    %v1348 = vld [vmem:[%s6] sm:$0x3]
    %v1349 = vunpack.c.l.bf16 %v1348
    %v1350 = vadd.f32 %v1338, %v1339
    %1351 = vadd.xlane.f32.xlu0 %v1350
    %v1352 = vpop.xlane.xlu0 %1351
    %v1353 = vadd.f32 %v1340, %v1341
    %1354 = vadd.xlane.f32.xlu0 %v1353
    %v1355 = vpop.xlane.xlu0 %1354
    %v1356 = vadd.f32 %v1342, %v1343
    %1357 = vadd.xlane.f32.xlu0 %v1356
    %v1358 = vpop.xlane.xlu0 %1357
    %v1359 = vadd.f32 %v1344, %v1345
    %1360 = vadd.xlane.f32.xlu0 %v1359
    %v1361 = vpop.xlane.xlu0 %1360
    %v1362 = vrcp.pop 256.0
    %v1363 = vmul.f32 256.0, %v1362
    %v1364 = vsub.f32 1.0, %v1363
    %v1365 = vmul.f32 %v1362, %v1364
    %v1366 = vadd.f32 %v1362, %v1365
    %vm1367 = vweird.f32 %v1362
    %v1368 = vsel %vm1367, %v1362, %v1366
    %v1369 = vmul.f32 %v1352, %v1368
    %v1370 = vmul.f32 %v1355, %v1368
    %v1371 = vmul.f32 %v1358, %v1368
    %v1372 = vmul.f32 %v1361, %v1368
    %v1373 = vsub.f32 %v1338, %v1369
    %v1374 = vsub.f32 %v1339, %v1369
    %v1375 = vsub.f32 %v1340, %v1370
    %v1376 = vsub.f32 %v1341, %v1370
    %v1377 = vsub.f32 %v1342, %v1371
    %v1378 = vsub.f32 %v1343, %v1371
    %v1379 = vsub.f32 %v1344, %v1372
    %v1380 = vsub.f32 %v1345, %v1372
    %v1381 = vmul.f32 %v1373, %v1373
    %v1382 = vmul.f32 %v1374, %v1374
    %v1383 = vmul.f32 %v1375, %v1375
    %v1384 = vmul.f32 %v1376, %v1376
    %v1385 = vmul.f32 %v1377, %v1377
    %v1386 = vmul.f32 %v1378, %v1378
    %v1387 = vmul.f32 %v1379, %v1379
    %v1388 = vmul.f32 %v1380, %v1380
    %v1389 = vadd.f32 %v1381, %v1382
    %1390 = vadd.xlane.f32.xlu0 %v1389
    %v1391 = vpop.xlane.xlu0 %1390
    %v1392 = vadd.f32 %v1383, %v1384
    %1393 = vadd.xlane.f32.xlu0 %v1392
    %v1394 = vpop.xlane.xlu0 %1393
    %v1395 = vadd.f32 %v1385, %v1386
    %1396 = vadd.xlane.f32.xlu0 %v1395
    %v1397 = vpop.xlane.xlu0 %1396
    %v1398 = vadd.f32 %v1387, %v1388
    %1399 = vadd.xlane.f32.xlu0 %v1398
    %v1400 = vpop.xlane.xlu0 %1399
    %v1401 = vmul.f32 %v1391, %v1368
    %v1402 = vmul.f32 %v1394, %v1368
    %v1403 = vmul.f32 %v1397, %v1368
    %v1404 = vmul.f32 %v1400, %v1368
    %v1405 = vadd.f32 %v1401, 1e-12
    %v1406 = vadd.f32 %v1402, 1e-12
    %v1407 = vadd.f32 %v1403, 1e-12
    %v1408 = vadd.f32 %v1404, 1e-12
    %v1409 = vrsqrt.pop %v1405
    %v1410 = vmul.f32 %v1409, %v1405
    %v1411 = vmul.f32 %v1410, %v1409
    %v1412 = vmul.f32 0.5, %v1411
    %v1413 = vsub.f32 1.5, %v1412
    %v1414 = vmul.f32 %v1409, %v1413
    %vm1415 = vweird.f32 %v1405
    %vm1416 = vweird.f32 %v1409
    %vm1417 = vmor %vm1415, %vm1416
    %v1418 = vsel %vm1417, %v1409, %v1414
    %v1419 = vrsqrt.pop %v1406
    %v1420 = vmul.f32 %v1419, %v1406
    %v1421 = vmul.f32 %v1420, %v1419
    %v1422 = vmul.f32 0.5, %v1421
    %v1423 = vsub.f32 1.5, %v1422
    %v1424 = vmul.f32 %v1419, %v1423
    %vm1425 = vweird.f32 %v1406
    %vm1426 = vweird.f32 %v1419
    %vm1427 = vmor %vm1425, %vm1426
    %v1428 = vsel %vm1427, %v1419, %v1424
    %v1429 = vrsqrt.pop %v1407
    %v1430 = vmul.f32 %v1429, %v1407
    %v1431 = vmul.f32 %v1430, %v1429
    %v1432 = vmul.f32 0.5, %v1431
    %v1433 = vsub.f32 1.5, %v1432
    %v1434 = vmul.f32 %v1429, %v1433
    %vm1435 = vweird.f32 %v1407
    %vm1436 = vweird.f32 %v1429
    %vm1437 = vmor %vm1435, %vm1436
    %v1438 = vsel %vm1437, %v1429, %v1434
    %v1439 = vrsqrt.pop %v1408
    %v1440 = vmul.f32 %v1439, %v1408
    %v1441 = vmul.f32 %v1440, %v1439
    %v1442 = vmul.f32 0.5, %v1441
    %v1443 = vsub.f32 1.5, %v1442
    %v1444 = vmul.f32 %v1439, %v1443
    %vm1445 = vweird.f32 %v1408
    %vm1446 = vweird.f32 %v1439
    %vm1447 = vmor %vm1445, %vm1446
    %v1448 = vsel %vm1447, %v1439, %v1444
    %v1449 = vmul.f32 %v1373, %v1418
    %v1450 = vmul.f32 %v1374, %v1418
    %v1451 = vmul.f32 %v1375, %v1428
    %v1452 = vmul.f32 %v1376, %v1428
    %v1453 = vmul.f32 %v1377, %v1438
    %v1454 = vmul.f32 %v1378, %v1438
    %v1455 = vmul.f32 %v1379, %v1448
    %v1456 = vmul.f32 %v1380, %v1448
    %v1458 = vperm.slane %v1347, 0
    %v1459 = vperm.slane %v1347, 2
    %v1462 = vperm.slane %v1458, 0
    %v1463 = vperm.slane %v1459, 0
    %v1464 = vmul.f32 %v1449, %v1462
    %v1465 = vmul.f32 %v1450, %v1463
    %v1466 = vmul.f32 %v1451, %v1462
    %v1467 = vmul.f32 %v1452, %v1463
    %v1468 = vmul.f32 %v1453, %v1462
    %v1469 = vmul.f32 %v1454, %v1463
    %v1470 = vmul.f32 %v1455, %v1462
    %v1471 = vmul.f32 %v1456, %v1463
    %v1473 = vperm.slane %v1349, 0
    %v1474 = vperm.slane %v1349, 2
    %v1477 = vperm.slane %v1473, 0
    %v1478 = vperm.slane %v1474, 0
    %v1479 = vadd.f32 %v1464, %v1477
    %v1480 = vadd.f32 %v1465, %v1478
    %v1481 = vadd.f32 %v1466, %v1477
    %v1482 = vadd.f32 %v1467, %v1478
    %v1483 = vadd.f32 %v1468, %v1477
    %v1484 = vadd.f32 %v1469, %v1478
    %v1485 = vadd.f32 %v1470, %v1477
    %v1486 = vadd.f32 %v1471, %v1478
    %v1487 = vpack.c.bf16 %v1480, %v1479
    %v1488 = vpack.c.bf16 %v1482, %v1481
    %v1489 = vpack.c.bf16 %v1484, %v1483
    %v1490 = vpack.c.bf16 %v1486, %v1485
    %1491 = vst [vmem:[%s7] sm:$0xff] %v1487
    %1492 = vst [vmem:[%s7 + $0x8] sm:$0xff] %v1488
    %1493 = vst [vmem:[%s7 + $0x10] sm:$0xff] %v1489
    %1494 = vst [vmem:[%s7 + $0x18] sm:$0xff] %v1490
    // Predicated region
    $region38: #{forward.11} parent=1 // pred_check
      _
    $region39: #{forward.11} parent=1 // pred_check_branch
      %1496 = sbr.rel (0) target = $region41
    $region40: #{forward.11} parent=1 // pred_region
      _
    $region41: #{forward.11} parent=1 // pred_fallthru
      _
    // Predicated region
    $region42: #{forward.11} parent=1 // pred_check
      _
    $region43: #{forward.11} parent=1 // pred_check_branch
      %1498 = sbr.rel (0) target = $region45
    $region44: #{forward.11} parent=1 // pred_region
      _
    $region45: #{forward.11} parent=1 // pred_fallthru
      _
    %1499 = vsyncpa [#allocation3], 1
    %1500 = vsyncpa [#allocation5], 1

// kernel: forward.15
$region0: #{forward.15}
  #allocation0 [shape = 'u32[]', space=smem, size = 0x4, offset = 0x4, fixed_abs, tag = 'smem constant byte address 0x4 - core index']
  #allocation1 [shape = 'u32[72,128]{1,0:T(1,128)}', space=vmem, size = 0x9000, scoped, tag = 'internal scratch']
  %s0 = inlined_call_operand.vmem [shape: bf16[32,256], index: 0, kind: input, shape index: {}]
  %s1 = inlined_call_operand.vmem [shape: bf16[256,128], index: 1, kind: input, shape index: {}]
  %s2 = inlined_call_operand.vmem [shape: bf16[1,128], index: 2, kind: input, shape index: {}]
  %s3 = inlined_call_operand.vmem [shape: f32[32,128], index: 3, kind: output, shape index: {}]
  %s4 = sld [smem:[#allocation0]]
  $region22: #{forward.15} parent=0
    _
  %s6 = ssub.s32 1, %s4
  %s7 = scalar_select 0, %s6, %s4
  // Predicated region
  $region2: #{forward.15} parent=0 // pred_check
    _
  $region3: #{forward.15} parent=0 // pred_check_branch
    %9 = sbr.rel (0) target = $region5
  $region4: #{forward.15} parent=0 // pred_region
    _
  $region5: #{forward.15} parent=0 // pred_fallthru
    _
  // Predicated region
  $region6: #{forward.15} parent=0 // pred_check
    _
  $region7: #{forward.15} parent=0 // pred_check_branch
    %11 = sbr.rel (0) target = $region9
  $region8: #{forward.15} parent=0 // pred_region
    _
  $region9: #{forward.15} parent=0 // pred_fallthru
    _
  // Predicated region
  $region10: #{forward.15} parent=0 // pred_check
    _
  $region11: #{forward.15} parent=0 // pred_check_branch
    %13 = sbr.rel (0) target = $region13
  $region12: #{forward.15} parent=0 // pred_region
    _
  $region13: #{forward.15} parent=0 // pred_fallthru
    _
  %v14 = vld [vmem:[%s0] sm:$0xff]
  %v15 = vld [vmem:[%s0 + $0x8] sm:$0xff]
  %v16 = vld [vmem:[%s0 + $0x10] sm:$0xff]
  %v17 = vld [vmem:[%s0 + $0x18] sm:$0xff]
  %v18 = vld [vmem:[%s1] sm:$0xf]
  %v19 = vld [vmem:[%s1 + $0x4] sm:$0xf]
  %v20 = vld [vmem:[%s1 + $0x8] sm:$0xf]
  %v21 = vld [vmem:[%s1 + $0xc] sm:$0xf]
  %v22 = vld [vmem:[%s1 + $0x10] sm:$0xf]
  %v23 = vld [vmem:[%s1 + $0x14] sm:$0xf]
  %v24 = vld [vmem:[%s1 + $0x18] sm:$0xf]
  %v25 = vld [vmem:[%s1 + $0x1c] sm:$0xf]
  %v26 = vld [vmem:[%s1 + $0x20] sm:$0xf]
  %v27 = vld [vmem:[%s1 + $0x24] sm:$0xf]
  %v28 = vld [vmem:[%s1 + $0x28] sm:$0xf]
  %v29 = vld [vmem:[%s1 + $0x2c] sm:$0xf]
  %v30 = vld [vmem:[%s1 + $0x30] sm:$0xf]
  %v31 = vld [vmem:[%s1 + $0x34] sm:$0xf]
  %v32 = vld [vmem:[%s1 + $0x38] sm:$0xf]
  %v33 = vld [vmem:[%s1 + $0x3c] sm:$0xf]
  %v34 = vld [vmem:[%s1 + $0x40] sm:$0xf]
  %v35 = vld [vmem:[%s1 + $0x44] sm:$0xf]
  %v36 = vld [vmem:[%s1 + $0x48] sm:$0xf]
  %v37 = vld [vmem:[%s1 + $0x4c] sm:$0xf]
  %v38 = vld [vmem:[%s1 + $0x50] sm:$0xf]
  %v39 = vld [vmem:[%s1 + $0x54] sm:$0xf]
  %v40 = vld [vmem:[%s1 + $0x58] sm:$0xf]
  %v41 = vld [vmem:[%s1 + $0x5c] sm:$0xf]
  %v42 = vld [vmem:[%s1 + $0x60] sm:$0xf]
  %v43 = vld [vmem:[%s1 + $0x64] sm:$0xf]
  %v44 = vld [vmem:[%s1 + $0x68] sm:$0xf]
  %v45 = vld [vmem:[%s1 + $0x6c] sm:$0xf]
  %v46 = vld [vmem:[%s1 + $0x70] sm:$0xf]
  %v47 = vld [vmem:[%s1 + $0x74] sm:$0xf]
  %v48 = vld [vmem:[%s1 + $0x78] sm:$0xf]
  %v49 = vld [vmem:[%s1 + $0x7c] sm:$0xf]
  %v50 = vld [vmem:[%s2] sm:$0x1]
  %v51 = vunpack.c.l.bf16 %v50
  %v52 = vperm.slane %v51, 0
  %v57 = vunpack.c.l.b16 %v14
  %v58 = vunpack.c.h.b16 %v14
  %v59 = vunpack.c.l.b16 %v15
  %v60 = vunpack.c.h.b16 %v15
  %v61 = vunpack.c.l.b16 %v16
  %v62 = vunpack.c.h.b16 %v16
  %v63 = vunpack.c.l.b16 %v17
  %v64 = vunpack.c.h.b16 %v17
  %v65 = vpack.c.b16 %v59, %v57
  %v66 = vpack.c.b16 %v60, %v58
  %v67 = vpack.c.b16 %v63, %v61
  %v68 = vpack.c.b16 %v64, %v62
  %v105 = vunpack.c.l.b16 %v18
  %v106 = vunpack.c.l.b16 %v19
  %v107 = vunpack.c.l.b16 %v20
  %v108 = vunpack.c.l.b16 %v21
  %v109 = vunpack.c.l.b16 %v22
  %v110 = vunpack.c.l.b16 %v23
  %v111 = vunpack.c.l.b16 %v24
  %v112 = vunpack.c.l.b16 %v25
  %v113 = vunpack.c.l.b16 %v26
  %v114 = vunpack.c.l.b16 %v27
  %v115 = vunpack.c.l.b16 %v28
  %v116 = vunpack.c.l.b16 %v29
  %v117 = vunpack.c.l.b16 %v30
  %v118 = vunpack.c.l.b16 %v31
  %v119 = vunpack.c.l.b16 %v32
  %v120 = vunpack.c.l.b16 %v33
  %v121 = vunpack.c.l.b16 %v34
  %v122 = vunpack.c.l.b16 %v35
  %v123 = vunpack.c.l.b16 %v36
  %v124 = vunpack.c.l.b16 %v37
  %v125 = vunpack.c.l.b16 %v38
  %v126 = vunpack.c.l.b16 %v39
  %v127 = vunpack.c.l.b16 %v40
  %v128 = vunpack.c.l.b16 %v41
  %v129 = vunpack.c.l.b16 %v42
  %v130 = vunpack.c.l.b16 %v43
  %v131 = vunpack.c.l.b16 %v44
  %v132 = vunpack.c.l.b16 %v45
  %v133 = vunpack.c.l.b16 %v46
  %v134 = vunpack.c.l.b16 %v47
  %v135 = vunpack.c.l.b16 %v48
  %v136 = vunpack.c.l.b16 %v49
  %v137 = vpack.c.b16 %v106, %v105
  %v138 = vpack.c.b16 %v108, %v107
  %v139 = vpack.c.b16 %v110, %v109
  %v140 = vpack.c.b16 %v112, %v111
  %v141 = vpack.c.b16 %v114, %v113
  %v142 = vpack.c.b16 %v116, %v115
  %v143 = vpack.c.b16 %v118, %v117
  %v144 = vpack.c.b16 %v120, %v119
  %v145 = vpack.c.b16 %v122, %v121
  %v146 = vpack.c.b16 %v124, %v123
  %v147 = vpack.c.b16 %v126, %v125
  %v148 = vpack.c.b16 %v128, %v127
  %v149 = vpack.c.b16 %v130, %v129
  %v150 = vpack.c.b16 %v132, %v131
  %v151 = vpack.c.b16 %v134, %v133
  %v152 = vpack.c.b16 %v136, %v135
  %169 = vmatpush.bf16.msra.mxu0 %v144
  %170 = vmatpush.bf16.msra.mxu0 %v143
  %171 = vmatpush.bf16.msra.mxu0 %v142
  %172 = vmatpush.bf16.msra.mxu0 %v141
  %173 = vmatpush.bf16.msra.mxu0 %v140
  %174 = vmatpush.bf16.msra.mxu0 %v139
  %175 = vmatpush.bf16.msra.mxu0 %v138
  %176 = vmatpush.bf16.msra.mxu0 %v137
  %177 = vmatmul.bf16.gmra.mxu0 %v65
  %v178 = vpop.f32.mrf.mxu0
  %v179 = vadd.f32 %v52, %v178
  %v180 = vpop.f32.mrf.mxu0
  %v181 = vadd.f32 %v52, %v180
  %182 = vmatmul.bf16.gmra.mxu0 %v67
  %v183 = vpop.f32.mrf.mxu0
  %v184 = vadd.f32 %v52, %v183
  %v185 = vpop.f32.mrf.mxu0
  %v186 = vadd.f32 %v52, %v185
  %187 = vdwg.mxu0
  %188 = vmatpush.bf16.msra.mxu0 %v152
  %189 = vmatpush.bf16.msra.mxu0 %v151
  %190 = vmatpush.bf16.msra.mxu0 %v150
  %191 = vmatpush.bf16.msra.mxu0 %v149
  %192 = vmatpush.bf16.msra.mxu0 %v148
  %193 = vmatpush.bf16.msra.mxu0 %v147
  %194 = vmatpush.bf16.msra.mxu0 %v146
  %195 = vmatpush.bf16.msra.mxu0 %v145
  %196 = vmatmul.bf16.gmra.mxu0 %v66
  %v197 = vpop.f32.mrf.mxu0
  %v198 = vadd.f32 %v179, %v197
  %v199 = vpop.f32.mrf.mxu0
  %v200 = vadd.f32 %v181, %v199
  %201 = vmatmul.bf16.gmra.mxu0 %v68
  %v202 = vpop.f32.mrf.mxu0
  %v203 = vadd.f32 %v184, %v202
  %v204 = vpop.f32.mrf.mxu0
  %v205 = vadd.f32 %v186, %v204
  %206 = vdwg.mxu0
  %207 = vst [vmem:[%s3] sm:$0xff] %v198
  %208 = vst [vmem:[%s3 + $0x8] sm:$0xff] %v200
  %209 = vst [vmem:[%s3 + $0x10] sm:$0xff] %v203
  %210 = vst [vmem:[%s3 + $0x18] sm:$0xff] %v205
  // Predicated region
  $region14: #{forward.15} parent=0 // pred_check
    _
  $region15: #{forward.15} parent=0 // pred_check_branch
    %212 = sbr.rel (0) target = $region17
  $region16: #{forward.15} parent=0 // pred_region
    _
  $region17: #{forward.15} parent=0 // pred_fallthru
    _
  // Predicated region
  $region18: #{forward.15} parent=0 // pred_check
    _
  $region19: #{forward.15} parent=0 // pred_check_branch
    %214 = sbr.rel (0) target = $region21
  $region20: #{forward.15} parent=0 // pred_region
    _
  $region21: #{forward.15} parent=0 // pred_fallthru
    _

// kernel: forward.13
$region0: #{forward.13}
  #allocation0 [shape = 'u32[]', space=smem, size = 0x4, offset = 0x4, fixed_abs, tag = 'smem constant byte address 0x4 - core index']
  #allocation1 [shape = 'u32[72,128]{1,0:T(1,128)}', space=vmem, size = 0x9000, scoped, tag = 'internal scratch']
  #allocation2 [shape = 'f32[2,16,1]{2,1,0:T(8,128)}', space=vmem, size = 0x4000, scoped, tag = 'scratch operand']
  #allocation3 [shape = 'f32[2,16,1]{2,1,0:T(8,128)}', space=vmem, size = 0x4000, scoped, tag = 'scratch operand']
  #allocation4 [shape = 'f32[2,16,128]{2,1,0:T(8,128)}', space=vmem, size = 0x4000, scoped, tag = 'scratch operand']
  %s0 = inlined_call_operand.vmem [shape: bf16[32,768], index: 0, kind: input, shape index: {}, may-alias: {0,1,2}]
  %s1 = inlined_call_operand.vmem [shape: bf16[32,768], index: 1, kind: input, shape index: {}, may-alias: {0,1,2}]
  %s2 = inlined_call_operand.vmem [shape: bf16[32,768], index: 2, kind: input, shape index: {}, may-alias: {0,1,2}]
  %s3 = inlined_call_operand.vmem [shape: bf16[32,256], index: 3, kind: input, shape index: {}]
  %s4 = inlined_call_operand.hbm [shape: bf16[256,256], index: 4, kind: input, shape index: {}]
  %s5 = inlined_call_operand.vmem [shape: bf16[1,256], index: 5, kind: input, shape index: {}]
  %s6 = inlined_call_operand.vmem [shape: bf16[1,256], index: 6, kind: input, shape index: {}]
  %s7 = inlined_call_operand.vmem [shape: bf16[1,256], index: 7, kind: input, shape index: {}]
  %s8 = inlined_call_operand.vmem [shape: bf16[32,256], index: 8, kind: output, shape index: {}]
  %s9 = sld [smem:[#allocation0]]
  $region191: #{forward.13} parent=0
    _
  %s11 = ssub.s32 1, %s9
  %s12 = scalar_select 0, %s11, %s9
  $region1: #{forward.13} parent=0
    #allocation5 [shape = 'u8[16384]{0}', space=vmem, size = 0x4000, scoped, tag = 'input window, operand 0']
    #allocation6 [shape = 'u8[16384]{0}', space=vmem, size = 0x4000, scoped, tag = 'input window, operand 1']
    #allocation7 [shape = 'u8[16384]{0}', space=vmem, size = 0x4000, scoped, tag = 'input window, operand 2']
    #allocation8 [shape = 'u8[131072]{0}', space=vmem, size = 0x20000, scoped, tag = 'input window, operand 4, single buffered']
    #allocation9 [shape = 's32[2]{0}', space=sflag, size = 0x8, scoped, tag = 'scoped memory for forward.13']
    %13 = vsyncpa [#allocation9], 0
    loop: start=0, step=1, limit=4
    $region2: #{forward.13} parent=1 // loop_pre_header
      _
    $region3: #{forward.13} parent=1 // loop_header
      %s15 = sphi 0, %s19
      %p16 = scmp.ge.s32.totalorder %s15, 4
      %s22 = sphi 0, %s34
      %s23 = sphi 0, %s30
      %s24 = sphi 0, %s22
      %s25 = sphi 0, %s23
      %s26 = sphi 0, %s24
      %s27 = sphi 0, %s25
      %s37 = sphi 0, %s39
      %s40 = sphi 0, %s37
      %s41 = sphi 0, %s40
      %s57 = sphi 0, %s41
      %s65 = sphi 0, %s67
      %s68 = sphi 0, %s65
      %s69 = sphi 0, %s68
      %s85 = sphi 0, %s69
      %s93 = sphi 0, %s95
      %s96 = sphi 0, %s93
      %s97 = sphi 0, %s96
      %s113 = sphi 0, %s97
      %s119 = sphi 0, %s121
      %s122 = sphi 0, %s119
      %s123 = sphi 0, %s122
      %s139 = sphi 0, %s123
      %s143 = sphi 0, %s143
      %s145 = sphi 0, %s143
      %s146 = sphi 0, %s145
      %s160 = sphi 0, %s146
      %s164 = sphi 0, %s164
      %s166 = sphi 0, %s164
      %s167 = sphi 0, %s166
      %s181 = sphi 0, %s167
      %s185 = sphi 0, %s185
      %s187 = sphi 0, %s185
      %s188 = sphi 0, %s187
      %s202 = sphi 0, %s188
      %s206 = sphi 0, %s206
      %s208 = sphi 0, %s206
      %s209 = sphi 0, %s208
      %s223 = sphi 0, %s209
      %s229 = sphi 0, %s231
      %s232 = sphi 0, %s229
      %s233 = sphi 0, %s232
      %s249 = sphi 0, %s233
    $region4: #{forward.13} parent=1 // loop_header_branch
      %18 = sbr.rel (%p16) target = $region8
    $region5: #{forward.13} parent=1 // loop_body
      %s20 = ssub.s32 %s15, 1
      %s21 = ssub.s32 %s15, 2
      %s28 = sadd.s32 1, %s23
      %p29 = scmp.ge.s32.totalorder %s28, 1
      %s30 = scalar_select %p29, 0, %s28
      %s31 = sadd.s32 1, %s22
      %s32 = scalar_select %p29, %s31, %s22
      %p33 = scmp.ge.s32.totalorder %s32, 2
      %s34 = scalar_select %p33, 0, %s32
      %s35 = ssub.s32 %s22, %s34
      %p36 = scmp.eq.s32.totalorder %s35, 0
      %s38 = sadd.s32 %s37, 1
      %s39 = scalar_select %p36, %s37, %s38
      %p42 = pneg %p36
      %p43 = scmp.eq.s32.totalorder %s15, 1
      %p44 = por %p42, %p43
      %p45 = scmp.ne.s32.totalorder %s37, %s40
      %p46 = scmp.eq.s32.totalorder %s15, 0
      %p47 = por %p45, %p46
      %p48 = scmp.ne.s32.totalorder %s37, %s40
      %p49 = scmp.eq.s32.totalorder %s20, 1
      %p50 = por %p48, %p49
      %p51 = scmp.ne.s32.totalorder %s40, %s41
      %p52 = scmp.eq.s32.totalorder %s20, 0
      %p53 = por %p51, %p52
      %p54 = scmp.ne.s32.totalorder %s40, %s41
      %p55 = scmp.eq.s32.totalorder %s21, 1
      %p56 = por %p54, %p55
      %p58 = scmp.ne.s32.totalorder %s41, %s57
      %p59 = scmp.eq.s32.totalorder %s21, 0
      %p60 = por %p58, %p59
      %s61 = sadd.s32 %s22, %s23
      %s62 = sadd.s32 %s34, %s30
      %s63 = ssub.s32 %s61, %s62
      %p64 = scmp.eq.s32.totalorder %s63, 0
      %s66 = sadd.s32 %s65, 1
      %s67 = scalar_select %p64, %s65, %s66
      %p70 = pneg %p64
      %p71 = scmp.eq.s32.totalorder %s15, 1
      %p72 = por %p70, %p71
      %p73 = scmp.ne.s32.totalorder %s65, %s68
      %p74 = scmp.eq.s32.totalorder %s15, 0
      %p75 = por %p73, %p74
      %p76 = scmp.ne.s32.totalorder %s65, %s68
      %p77 = scmp.eq.s32.totalorder %s20, 1
      %p78 = por %p76, %p77
      %p79 = scmp.ne.s32.totalorder %s68, %s69
      %p80 = scmp.eq.s32.totalorder %s20, 0
      %p81 = por %p79, %p80
      %p82 = scmp.ne.s32.totalorder %s68, %s69
      %p83 = scmp.eq.s32.totalorder %s21, 1
      %p84 = por %p82, %p83
      %p86 = scmp.ne.s32.totalorder %s69, %s85
      %p87 = scmp.eq.s32.totalorder %s21, 0
      %p88 = por %p86, %p87
      %s89 = sadd.s32 %s22, %s23
      %s90 = sadd.s32 %s34, %s30
      %s91 = ssub.s32 %s89, %s90
      %p92 = scmp.eq.s32.totalorder %s91, 0
      %s94 = sadd.s32 %s93, 1
      %s95 = scalar_select %p92, %s93, %s94
      %p98 = pneg %p92
      %p99 = scmp.eq.s32.totalorder %s15, 1
      %p100 = por %p98, %p99
      %p101 = scmp.ne.s32.totalorder %s93, %s96
      %p102 = scmp.eq.s32.totalorder %s15, 0
      %p103 = por %p101, %p102
      %p104 = scmp.ne.s32.totalorder %s93, %s96
      %p105 = scmp.eq.s32.totalorder %s20, 1
      %p106 = por %p104, %p105
      %p107 = scmp.ne.s32.totalorder %s96, %s97
      %p108 = scmp.eq.s32.totalorder %s20, 0
      %p109 = por %p107, %p108
      %p110 = scmp.ne.s32.totalorder %s96, %s97
      %p111 = scmp.eq.s32.totalorder %s21, 1
      %p112 = por %p110, %p111
      %p114 = scmp.ne.s32.totalorder %s97, %s113
      %p115 = scmp.eq.s32.totalorder %s21, 0
      %p116 = por %p114, %p115
      %s117 = ssub.s32 %s22, %s34
      %p118 = scmp.eq.s32.totalorder %s117, 0
      %s120 = sadd.s32 %s119, 1
      %s121 = scalar_select %p118, %s119, %s120
      %p124 = pneg %p118
      %p125 = scmp.eq.s32.totalorder %s15, 1
      %p126 = por %p124, %p125
      %p127 = scmp.ne.s32.totalorder %s119, %s122
      %p128 = scmp.eq.s32.totalorder %s15, 0
      %p129 = por %p127, %p128
      %p130 = scmp.ne.s32.totalorder %s119, %s122
      %p131 = scmp.eq.s32.totalorder %s20, 1
      %p132 = por %p130, %p131
      %p133 = scmp.ne.s32.totalorder %s122, %s123
      %p134 = scmp.eq.s32.totalorder %s20, 0
      %p135 = por %p133, %p134
      %p136 = scmp.ne.s32.totalorder %s122, %s123
      %p137 = scmp.eq.s32.totalorder %s21, 1
      %p138 = por %p136, %p137
      %p140 = scmp.ne.s32.totalorder %s123, %s139
      %p141 = scmp.eq.s32.totalorder %s21, 0
      %p142 = por %p140, %p141
      %s144 = sadd.s32 %s143, 1
      %p147 = scmp.eq.s32.totalorder %s15, 1
      %p148 = scmp.ne.s32.totalorder %s143, %s145
      %p149 = scmp.eq.s32.totalorder %s15, 0
      %p150 = por %p148, %p149
      %p151 = scmp.ne.s32.totalorder %s143, %s145
      %p152 = scmp.eq.s32.totalorder %s20, 1
      %p153 = por %p151, %p152
      %p154 = scmp.ne.s32.totalorder %s145, %s146
      %p155 = scmp.eq.s32.totalorder %s20, 0
      %p156 = por %p154, %p155
      %p157 = scmp.ne.s32.totalorder %s145, %s146
      %p158 = scmp.eq.s32.totalorder %s21, 1
      %p159 = por %p157, %p158
      %p161 = scmp.ne.s32.totalorder %s146, %s160
      %p162 = scmp.eq.s32.totalorder %s21, 0
      %p163 = por %p161, %p162
      %s165 = sadd.s32 %s164, 1
      %p168 = scmp.eq.s32.totalorder %s15, 1
      %p169 = scmp.ne.s32.totalorder %s164, %s166
      %p170 = scmp.eq.s32.totalorder %s15, 0
      %p171 = por %p169, %p170
      %p172 = scmp.ne.s32.totalorder %s164, %s166
      %p173 = scmp.eq.s32.totalorder %s20, 1
      %p174 = por %p172, %p173
      %p175 = scmp.ne.s32.totalorder %s166, %s167
      %p176 = scmp.eq.s32.totalorder %s20, 0
      %p177 = por %p175, %p176
      %p178 = scmp.ne.s32.totalorder %s166, %s167
      %p179 = scmp.eq.s32.totalorder %s21, 1
      %p180 = por %p178, %p179
      %p182 = scmp.ne.s32.totalorder %s167, %s181
      %p183 = scmp.eq.s32.totalorder %s21, 0
      %p184 = por %p182, %p183
      %s186 = sadd.s32 %s185, 1
      %p189 = scmp.eq.s32.totalorder %s15, 1
      %p190 = scmp.ne.s32.totalorder %s185, %s187
      %p191 = scmp.eq.s32.totalorder %s15, 0
      %p192 = por %p190, %p191
      %p193 = scmp.ne.s32.totalorder %s185, %s187
      %p194 = scmp.eq.s32.totalorder %s20, 1
      %p195 = por %p193, %p194
      %p196 = scmp.ne.s32.totalorder %s187, %s188
      %p197 = scmp.eq.s32.totalorder %s20, 0
      %p198 = por %p196, %p197
      %p199 = scmp.ne.s32.totalorder %s187, %s188
      %p200 = scmp.eq.s32.totalorder %s21, 1
      %p201 = por %p199, %p200
      %p203 = scmp.ne.s32.totalorder %s188, %s202
      %p204 = scmp.eq.s32.totalorder %s21, 0
      %p205 = por %p203, %p204
      %s207 = sadd.s32 %s206, 1
      %p210 = scmp.eq.s32.totalorder %s15, 1
      %p211 = scmp.ne.s32.totalorder %s206, %s208
      %p212 = scmp.eq.s32.totalorder %s15, 0
      %p213 = por %p211, %p212
      %p214 = scmp.ne.s32.totalorder %s206, %s208
      %p215 = scmp.eq.s32.totalorder %s20, 1
      %p216 = por %p214, %p215
      %p217 = scmp.ne.s32.totalorder %s208, %s209
      %p218 = scmp.eq.s32.totalorder %s20, 0
      %p219 = por %p217, %p218
      %p220 = scmp.ne.s32.totalorder %s208, %s209
      %p221 = scmp.eq.s32.totalorder %s21, 1
      %p222 = por %p220, %p221
      %p224 = scmp.ne.s32.totalorder %s209, %s223
      %p225 = scmp.eq.s32.totalorder %s21, 0
      %p226 = por %p224, %p225
      %s227 = ssub.s32 %s22, %s34
      %p228 = scmp.eq.s32.totalorder %s227, 0
      %s230 = sadd.s32 %s229, 1
      %s231 = scalar_select %p228, %s229, %s230
      %p234 = pneg %p228
      %p235 = scmp.eq.s32.totalorder %s15, 1
      %p236 = por %p234, %p235
      %p237 = scmp.ne.s32.totalorder %s229, %s232
      %p238 = scmp.eq.s32.totalorder %s15, 0
      %p239 = por %p237, %p238
      %p240 = scmp.ne.s32.totalorder %s229, %s232
      %p241 = scmp.eq.s32.totalorder %s20, 1
      %p242 = por %p240, %p241
      %p243 = scmp.ne.s32.totalorder %s232, %s233
      %p244 = scmp.eq.s32.totalorder %s20, 0
      %p245 = por %p243, %p244
      %p246 = scmp.ne.s32.totalorder %s232, %s233
      %p247 = scmp.eq.s32.totalorder %s21, 1
      %p248 = por %p246, %p247
      %p250 = scmp.ne.s32.totalorder %s233, %s249
      %p251 = scmp.eq.s32.totalorder %s21, 0
      %p252 = por %p250, %p251
      %p253 = scmp.le.s32.totalorder 1, %s15
      %p254 = scmp.lt.s32.totalorder %s15, 3
      %p255 = pnand %p253, %p254
      %p256 = pneg %p255
      // Predicated region
      $region9: #{forward.13} parent=5 // pred_check
        _
      $region10: #{forward.13} parent=5 // pred_check_branch
        %258 = sbr.rel (%p255) target = $region12
      $region11: #{forward.13} parent=5 // pred_region
        %s259 = ssub.s32 %s15, 1
        // Predicated region
        $region13: #{forward.13} parent=11 // pred_check
          %p260 = pneg %p156
        $region14: #{forward.13} parent=11 // pred_check_branch
          %262 = sbr.rel (%p260) target = $region16
        $region15: #{forward.13} parent=11 // pred_region
          %264 = vsyncadd [#allocation9], 0
          %s265 = sshll.u32 %s4, 4
          %s266 = int_to_ptr.hbm [resolvable:$true] %s265
          %s267 = sshll.u32 [#allocation8], 4
          %s268 = int_to_ptr.vmem [resolvable:$true] %s267
          %273 = dma.hbm_to_vmem [thread:$0]  %s266, 4096, %s268, [#allocation9], 128, 128, 8
        $region16: #{forward.13} parent=11 // pred_fallthru
          _
        // Predicated region
        $region17: #{forward.13} parent=11 // pred_check
          %p274 = pneg %p177
        $region18: #{forward.13} parent=11 // pred_check_branch
          %276 = sbr.rel (%p274) target = $region20
        $region19: #{forward.13} parent=11 // pred_region
          _
        $region20: #{forward.13} parent=11 // pred_fallthru
          _
        // Predicated region
        $region21: #{forward.13} parent=11 // pred_check
          %p277 = pneg %p198
        $region22: #{forward.13} parent=11 // pred_check_branch
          %279 = sbr.rel (%p277) target = $region24
        $region23: #{forward.13} parent=11 // pred_region
          _
        $region24: #{forward.13} parent=11 // pred_fallthru
          _
        // Predicated region
        $region25: #{forward.13} parent=11 // pred_check
          %p280 = pneg %p219
        $region26: #{forward.13} parent=11 // pred_check_branch
          %282 = sbr.rel (%p280) target = $region28
        $region27: #{forward.13} parent=11 // pred_region
          _
        $region28: #{forward.13} parent=11 // pred_fallthru
          _
      $region12: #{forward.13} parent=5 // pred_fallthru
        _
      %p283 = scmp.lt.s32.totalorder %s15, 2
      // Predicated region
      $region29: #{forward.13} parent=5 // pred_check
        %p284 = pneg %p283
      $region30: #{forward.13} parent=5 // pred_check_branch
        %286 = sbr.rel (%p284) target = $region32
      $region31: #{forward.13} parent=5 // pred_region
        // Predicated region
        $region33: #{forward.13} parent=31 // pred_check
          %p287 = pneg %p47
        $region34: #{forward.13} parent=31 // pred_check_branch
          %289 = sbr.rel (%p287) target = $region36
        $region35: #{forward.13} parent=31 // pred_region
          %s290 = sand.u32 %s37, 1
          %s291 = sand.u32 %s37, 1
          %s292 = smul.addr %s291, 16
          %s293 = scalar_lea.vmem [#allocation5], %s292
          %s294 = smul.u32 2, %s22
          %s295 = smul.addr %s294, 6
          %s296 = smul.addr %s295, 4
          %s297 = scalar_lea.vmem %s0, %s296
          // Predicated region
          $region37: #{forward.13} parent=35 // pred_check
            _
          $region38: #{forward.13} parent=35 // pred_check_branch
            %299 = sbr.rel (0) target = $region40
          $region39: #{forward.13} parent=35 // pred_region
            // Predicated region
            $region41: #{forward.13} parent=39 // pred_check
              _
            $region42: #{forward.13} parent=39 // pred_check_branch
              %301 = sbr.rel (0) target = $region44
            $region43: #{forward.13} parent=39 // pred_region
              // Predicated region
              $region56: #{forward.13} parent=43 // pred_check
                _
              $region57: #{forward.13} parent=43 // pred_check_branch
                %319 = sbr.rel (0) target = $region59
              $region58: #{forward.13} parent=43 // pred_region
                loop: start=0, step=1, limit=1
                $region60: #{forward.13} parent=58 // loop_pre_header
                  _
                $region61: #{forward.13} parent=58 // loop_header
                  %s321 = sphi 0, %s325
                  %p322 = scmp.ge.s32.totalorder %s321, 1
                  %s326 = sphi %s297, %s297
                  %s327 = sphi %s293, %s293
                $region62: #{forward.13} parent=58 // loop_header_branch
                  %324 = sbr.rel (%p322) target = $region66
                $region63: #{forward.13} parent=58 // loop_body
                  %v328 = vld [vmem:[%s326] sm:$0xff]
                  %329 = vst [vmem:[%s327] sm:$0xff] %v328
                  %v330 = vld [vmem:[%s326 + $0x18] sm:$0xff]
                  %331 = vst [vmem:[%s327 + $0x8] sm:$0xff] %v330
                $region64: #{forward.13} parent=58 // loop_footer
                  %s325 = sadd.s32 1, %s321
                $region65: #{forward.13} parent=58 // loop_footer_branch
                  %320 = sbr.rel target = $region61
                $region66: #{forward.13} parent=58 // loop_exit
                  _
              $region59: #{forward.13} parent=43 // pred_fallthru
                _
              // Predicated region
              $region67: #{forward.13} parent=43 // pred_check
                _
              $region68: #{forward.13} parent=43 // pred_check_branch
                %333 = sbr.rel target = $region70
              $region69: #{forward.13} parent=43 // pred_region
                _
              $region70: #{forward.13} parent=43 // pred_fallthru
                _
            $region44: #{forward.13} parent=39 // pred_fallthru
              _
            // Predicated region
            $region45: #{forward.13} parent=39 // pred_check
              _
            $region46: #{forward.13} parent=39 // pred_check_branch
              %303 = sbr.rel target = $region48
            $region47: #{forward.13} parent=39 // pred_region
              %s305 = ssub.s32 256, 1
              loop: start=0, step=1, limit=1
              $region49: #{forward.13} parent=47 // loop_pre_header
                _
              $region50: #{forward.13} parent=47 // loop_header
                %s307 = sphi 0, %s311
                %p308 = scmp.ge.s32.totalorder %s307, 1
                %s312 = sphi %s297, %s297
                %s313 = sphi %s293, %s293
              $region51: #{forward.13} parent=47 // loop_header_branch
                %310 = sbr.rel (%p308) target = $region55
              $region52: #{forward.13} parent=47 // loop_body
                %v314 = vld [vmem:[%s312] sm:%s305]
                %315 = vst [vmem:[%s313] sm:%s305] %v314
                %v316 = vld [vmem:[%s312 + $0x18] sm:%s305]
                %317 = vst [vmem:[%s313 + $0x8] sm:%s305] %v316
              $region53: #{forward.13} parent=47 // loop_footer
                %s311 = sadd.s32 1, %s307
              $region54: #{forward.13} parent=47 // loop_footer_branch
                %306 = sbr.rel target = $region50
              $region55: #{forward.13} parent=47 // loop_exit
                _
            $region48: #{forward.13} parent=39 // pred_fallthru
              _
          $region40: #{forward.13} parent=35 // pred_fallthru
            _
          %334 = vnop
        $region36: #{forward.13} parent=31 // pred_fallthru
          _
        // Predicated region
        $region71: #{forward.13} parent=31 // pred_check
          %p335 = pneg %p75
        $region72: #{forward.13} parent=31 // pred_check_branch
          %337 = sbr.rel (%p335) target = $region74
        $region73: #{forward.13} parent=31 // pred_region
          %s338 = sand.u32 %s65, 1
          %s339 = sand.u32 %s65, 1
          %s340 = smul.addr %s339, 16
          %s341 = scalar_lea.vmem [#allocation6], %s340
          %s342 = sadd.s32 %s22, %s23
          %s343 = smul.u32 2, %s342
          %s344 = smul.addr %s343, 6
          %s345 = sadd.s32 2, %s344
          %s346 = smul.addr %s345, 4
          %s347 = scalar_lea.vmem %s1, %s346
          // Predicated region
          $region75: #{forward.13} parent=73 // pred_check
            _
          $region76: #{forward.13} parent=73 // pred_check_branch
            %349 = sbr.rel (0) target = $region78
          $region77: #{forward.13} parent=73 // pred_region
            // Predicated region
            $region79: #{forward.13} parent=77 // pred_check
              _
            $region80: #{forward.13} parent=77 // pred_check_branch
              %351 = sbr.rel (0) target = $region82
            $region81: #{forward.13} parent=77 // pred_region
              // Predicated region
              $region94: #{forward.13} parent=81 // pred_check
                _
              $region95: #{forward.13} parent=81 // pred_check_branch
                %369 = sbr.rel (0) target = $region97
              $region96: #{forward.13} parent=81 // pred_region
                loop: start=0, step=1, limit=1
                $region98: #{forward.13} parent=96 // loop_pre_header
                  _
                $region99: #{forward.13} parent=96 // loop_header
                  %s371 = sphi 0, %s375
                  %p372 = scmp.ge.s32.totalorder %s371, 1
                  %s376 = sphi %s347, %s347
                  %s377 = sphi %s341, %s341
                $region100: #{forward.13} parent=96 // loop_header_branch
                  %374 = sbr.rel (%p372) target = $region104
                $region101: #{forward.13} parent=96 // loop_body
                  %v378 = vld [vmem:[%s376] sm:$0xff]
                  %379 = vst [vmem:[%s377] sm:$0xff] %v378
                  %v380 = vld [vmem:[%s376 + $0x18] sm:$0xff]
                  %381 = vst [vmem:[%s377 + $0x8] sm:$0xff] %v380
                $region102: #{forward.13} parent=96 // loop_footer
                  %s375 = sadd.s32 1, %s371
                $region103: #{forward.13} parent=96 // loop_footer_branch
                  %370 = sbr.rel target = $region99
                $region104: #{forward.13} parent=96 // loop_exit
                  _
              $region97: #{forward.13} parent=81 // pred_fallthru
                _
              // Predicated region
              $region105: #{forward.13} parent=81 // pred_check
                _
              $region106: #{forward.13} parent=81 // pred_check_branch
                %383 = sbr.rel target = $region108
              $region107: #{forward.13} parent=81 // pred_region
                _
              $region108: #{forward.13} parent=81 // pred_fallthru
                _
            $region82: #{forward.13} parent=77 // pred_fallthru
              _
            // Predicated region
            $region83: #{forward.13} parent=77 // pred_check
              _
            $region84: #{forward.13} parent=77 // pred_check_branch
              %353 = sbr.rel target = $region86
            $region85: #{forward.13} parent=77 // pred_region
              %s355 = ssub.s32 256, 1
              loop: start=0, step=1, limit=1
              $region87: #{forward.13} parent=85 // loop_pre_header
                _
              $region88: #{forward.13} parent=85 // loop_header
                %s357 = sphi 0, %s361
                %p358 = scmp.ge.s32.totalorder %s357, 1
                %s362 = sphi %s347, %s347
                %s363 = sphi %s341, %s341
              $region89: #{forward.13} parent=85 // loop_header_branch
                %360 = sbr.rel (%p358) target = $region93
              $region90: #{forward.13} parent=85 // loop_body
                %v364 = vld [vmem:[%s362] sm:%s355]
                %365 = vst [vmem:[%s363] sm:%s355] %v364
                %v366 = vld [vmem:[%s362 + $0x18] sm:%s355]
                %367 = vst [vmem:[%s363 + $0x8] sm:%s355] %v366
              $region91: #{forward.13} parent=85 // loop_footer
                %s361 = sadd.s32 1, %s357
              $region92: #{forward.13} parent=85 // loop_footer_branch
                %356 = sbr.rel target = $region88
              $region93: #{forward.13} parent=85 // loop_exit
                _
            $region86: #{forward.13} parent=77 // pred_fallthru
              _
          $region78: #{forward.13} parent=73 // pred_fallthru
            _
          %384 = vnop
        $region74: #{forward.13} parent=31 // pred_fallthru
          _
        // Predicated region
        $region109: #{forward.13} parent=31 // pred_check
          %p385 = pneg %p103
        $region110: #{forward.13} parent=31 // pred_check_branch
          %387 = sbr.rel (%p385) target = $region112
        $region111: #{forward.13} parent=31 // pred_region
          %s388 = sand.u32 %s93, 1
          %s389 = sand.u32 %s93, 1
          %s390 = smul.addr %s389, 16
          %s391 = scalar_lea.vmem [#allocation7], %s390
          %s392 = sadd.s32 %s22, %s23
          %s393 = smul.u32 2, %s392
          %s394 = smul.addr %s393, 6
          %s395 = sadd.s32 4, %s394
          %s396 = smul.addr %s395, 4
          %s397 = scalar_lea.vmem %s2, %s396
          // Predicated region
          $region113: #{forward.13} parent=111 // pred_check
            _
          $region114: #{forward.13} parent=111 // pred_check_branch
            %399 = sbr.rel (0) target = $region116
          $region115: #{forward.13} parent=111 // pred_region
            // Predicated region
            $region117: #{forward.13} parent=115 // pred_check
              _
            $region118: #{forward.13} parent=115 // pred_check_branch
              %401 = sbr.rel (0) target = $region120
            $region119: #{forward.13} parent=115 // pred_region
              // Predicated region
              $region132: #{forward.13} parent=119 // pred_check
                _
              $region133: #{forward.13} parent=119 // pred_check_branch
                %419 = sbr.rel (0) target = $region135
              $region134: #{forward.13} parent=119 // pred_region
                loop: start=0, step=1, limit=1
                $region136: #{forward.13} parent=134 // loop_pre_header
                  _
                $region137: #{forward.13} parent=134 // loop_header
                  %s421 = sphi 0, %s425
                  %p422 = scmp.ge.s32.totalorder %s421, 1
                  %s426 = sphi %s397, %s397
                  %s427 = sphi %s391, %s391
                $region138: #{forward.13} parent=134 // loop_header_branch
                  %424 = sbr.rel (%p422) target = $region142
                $region139: #{forward.13} parent=134 // loop_body
                  %v428 = vld [vmem:[%s426] sm:$0xff]
                  %429 = vst [vmem:[%s427] sm:$0xff] %v428
                  %v430 = vld [vmem:[%s426 + $0x18] sm:$0xff]
                  %431 = vst [vmem:[%s427 + $0x8] sm:$0xff] %v430
                $region140: #{forward.13} parent=134 // loop_footer
                  %s425 = sadd.s32 1, %s421
                $region141: #{forward.13} parent=134 // loop_footer_branch
                  %420 = sbr.rel target = $region137
                $region142: #{forward.13} parent=134 // loop_exit
                  _
              $region135: #{forward.13} parent=119 // pred_fallthru
                _
              // Predicated region
              $region143: #{forward.13} parent=119 // pred_check
                _
              $region144: #{forward.13} parent=119 // pred_check_branch
                %433 = sbr.rel target = $region146
              $region145: #{forward.13} parent=119 // pred_region
                _
              $region146: #{forward.13} parent=119 // pred_fallthru
                _
            $region120: #{forward.13} parent=115 // pred_fallthru
              _
            // Predicated region
            $region121: #{forward.13} parent=115 // pred_check
              _
            $region122: #{forward.13} parent=115 // pred_check_branch
              %403 = sbr.rel target = $region124
            $region123: #{forward.13} parent=115 // pred_region
              %s405 = ssub.s32 256, 1
              loop: start=0, step=1, limit=1
              $region125: #{forward.13} parent=123 // loop_pre_header
                _
              $region126: #{forward.13} parent=123 // loop_header
                %s407 = sphi 0, %s411
                %p408 = scmp.ge.s32.totalorder %s407, 1
                %s412 = sphi %s397, %s397
                %s413 = sphi %s391, %s391
              $region127: #{forward.13} parent=123 // loop_header_branch
                %410 = sbr.rel (%p408) target = $region131
              $region128: #{forward.13} parent=123 // loop_body
                %v414 = vld [vmem:[%s412] sm:%s405]
                %415 = vst [vmem:[%s413] sm:%s405] %v414
                %v416 = vld [vmem:[%s412 + $0x18] sm:%s405]
                %417 = vst [vmem:[%s413 + $0x8] sm:%s405] %v416
              $region129: #{forward.13} parent=123 // loop_footer
                %s411 = sadd.s32 1, %s407
              $region130: #{forward.13} parent=123 // loop_footer_branch
                %406 = sbr.rel target = $region126
              $region131: #{forward.13} parent=123 // loop_exit
                _
            $region124: #{forward.13} parent=115 // pred_fallthru
              _
          $region116: #{forward.13} parent=111 // pred_fallthru
            _
          %434 = vnop
        $region112: #{forward.13} parent=31 // pred_fallthru
          _
        // Predicated region
        $region147: #{forward.13} parent=31 // pred_check
          %p435 = pneg %p129
        $region148: #{forward.13} parent=31 // pred_check_branch
          %437 = sbr.rel (%p435) target = $region150
        $region149: #{forward.13} parent=31 // pred_region
          %s438 = smul.u32 2, %s22
          %p439 = scmp.lt.s32.totalorder %s438, 3
          %s440 = scalar_select %p439, %s438, 3
          %s441 = smul.addr %s440, 2
          %s442 = smul.addr %s441, 4
          %s443 = scalar_lea.vmem %s3, %s442
          %s444 = smul.u32 2, %s22
        $region150: #{forward.13} parent=31 // pred_fallthru
          _
      $region32: #{forward.13} parent=5 // pred_fallthru
        _
      %p445 = scmp.le.s32.totalorder 1, %s15
      %p446 = scmp.lt.s32.totalorder %s15, 3
      %p447 = pnand %p445, %p446
      %p448 = pneg %p447
      // Predicated region
      $region151: #{forward.13} parent=5 // pred_check
        _
      $region152: #{forward.13} parent=5 // pred_check_branch
        %450 = sbr.rel (%p447) target = $region154
      $region153: #{forward.13} parent=5 // pred_region
        %s451 = ssub.s32 %s15, 1
        %s452 = sand.u32 %s40, 1
        %s453 = sand.u32 %s40, 1
        %s454 = smul.addr %s453, 16
        %s455 = scalar_lea.vmem [#allocation5], %s454
        // Predicated region
        $region155: #{forward.13} parent=153 // pred_check
          %p456 = pneg %p53
        $region156: #{forward.13} parent=153 // pred_check_branch
          %458 = sbr.rel (%p456) target = $region158
        $region157: #{forward.13} parent=153 // pred_region
          _
        $region158: #{forward.13} parent=153 // pred_fallthru
          _
        %s459 = sand.u32 %s68, 1
        %s460 = sand.u32 %s68, 1
        %s461 = smul.addr %s460, 16
        %s462 = scalar_lea.vmem [#allocation6], %s461
        // Predicated region
        $region159: #{forward.13} parent=153 // pred_check
          %p463 = pneg %p81
        $region160: #{forward.13} parent=153 // pred_check_branch
          %465 = sbr.rel (%p463) target = $region162
        $region161: #{forward.13} parent=153 // pred_region
          _
        $region162: #{forward.13} parent=153 // pred_fallthru
          _
        %s466 = sand.u32 %s96, 1
        %s467 = sand.u32 %s96, 1
        %s468 = smul.addr %s467, 16
        %s469 = scalar_lea.vmem [#allocation7], %s468
        // Predicated region
        $region163: #{forward.13} parent=153 // pred_check
          %p470 = pneg %p109
        $region164: #{forward.13} parent=153 // pred_check_branch
          %472 = sbr.rel (%p470) target = $region166
        $region165: #{forward.13} parent=153 // pred_region
          _
        $region166: #{forward.13} parent=153 // pred_fallthru
          _
        // Predicated region
        $region167: #{forward.13} parent=153 // pred_check
          %p473 = pneg %p156
        $region168: #{forward.13} parent=153 // pred_check_branch
          %475 = sbr.rel (%p473) target = $region170
        $region169: #{forward.13} parent=153 // pred_region
          %477 = dma.done [#allocation9], 4096
        $region170: #{forward.13} parent=153 // pred_fallthru
          _
        %s478 = sand.u32 %s40, 1
        %s479 = sand.u32 %s40, 1
        %s480 = smul.addr %s479, 16
        %s481 = scalar_lea.vmem [#allocation5], %s480
        %p482 = pneg %p53
        %p483 = pneg %p50
        %s484 = sand.u32 %s68, 1
        %s485 = sand.u32 %s68, 1
        %s486 = smul.addr %s485, 16
        %s487 = scalar_lea.vmem [#allocation6], %s486
        %p488 = pneg %p81
        %p489 = pneg %p78
        %s490 = sand.u32 %s96, 1
        %s491 = sand.u32 %s96, 1
        %s492 = smul.addr %s491, 16
        %s493 = scalar_lea.vmem [#allocation7], %s492
        %p494 = pneg %p109
        %p495 = pneg %p106
        %s496 = smul.u32 2, %s24
        %p497 = scmp.lt.s32.totalorder %s496, 3
        %s498 = scalar_select %p497, %s496, 3
        %s499 = smul.addr %s498, 2
        %s500 = smul.addr %s499, 4
        %s501 = scalar_lea.vmem %s3, %s500
        %p502 = pneg %p135
        %p503 = pneg %p132
        %p504 = pneg %p156
        %p505 = pneg %p153
        %p506 = pneg %p177
        %p507 = pneg %p174
        %p508 = pneg %p198
        %p509 = pneg %p195
        %p510 = pneg %p219
        %p511 = pneg %p216
        %p512 = pneg %p245
        %p513 = pneg %p242
        %s514 = smul.u32 2, %s24
        %p515 = scmp.lt.s32.totalorder %s514, 3
        %s516 = scalar_select %p515, %s514, 3
        %s517 = smul.addr %s516, 2
        %s518 = smul.addr %s517, 4
        %s519 = scalar_lea.vmem %s8, %s518
        %s520 = smul.u32 2, %s24
        %s521 = sadd.s32 %s24, %s25
        %s522 = smul.u32 2, %s521
        %s523 = sadd.s32 %s24, %s25
        %s524 = smul.u32 2, %s523
        %s525 = smul.u32 2, %s24
        %p526 = scmp.lt.s32.totalorder %s525, 3
        %s527 = scalar_select %p526, %s525, 3
        %s528 = smul.addr %s527, 2
        %s529 = smul.addr %s528, 4
        %s530 = scalar_lea.vmem %s3, %s529
        %s531 = smul.u32 2, %s24
        %s532 = smul.u32 2, %s24
        %p533 = scmp.lt.s32.totalorder %s532, 3
        %s534 = scalar_select %p533, %s532, 3
        %s535 = smul.addr %s534, 2
        %s536 = smul.addr %s535, 4
        %s537 = scalar_lea.vmem %s8, %s536
        %s538 = smul.u32 2, %s24
        %p540 = scmp.eq.s32.totalorder %s25, 0
        // Predicated region
        $region171: #{forward.13} parent=153 // pred_check
          %p541 = pneg %p540
        $region172: #{forward.13} parent=153 // pred_check_branch
          %543 = sbr.rel (%p541) target = $region174
        $region173: #{forward.13} parent=153 // pred_region
          %vm544 = vcmask 7168
          %545 = vst.msk [vmem:[#allocation2] sm:$0xff] %vm544, -inf
          %546 = vst.msk [vmem:[#allocation2 + $0x8] sm:$0xff] %vm544, -inf
          %547 = vst.msk [vmem:[#allocation2 + $0x10] sm:$0xff] %vm544, -inf
          %548 = vst.msk [vmem:[#allocation2 + $0x18] sm:$0xff] %vm544, -inf
          %549 = vst.msk [vmem:[#allocation3] sm:$0xff] %vm544, 0.0
          %550 = vst.msk [vmem:[#allocation3 + $0x8] sm:$0xff] %vm544, 0.0
          %551 = vst.msk [vmem:[#allocation3 + $0x10] sm:$0xff] %vm544, 0.0
          %552 = vst.msk [vmem:[#allocation3 + $0x18] sm:$0xff] %vm544, 0.0
          %553 = vst [vmem:[#allocation4] sm:$0xff] 0.0
          %554 = vst [vmem:[#allocation4 + $0x8] sm:$0xff] 0.0
          %555 = vst [vmem:[#allocation4 + $0x10] sm:$0xff] 0.0
          %556 = vst [vmem:[#allocation4 + $0x18] sm:$0xff] 0.0
        $region174: #{forward.13} parent=153 // pred_fallthru
          _
        %v557 = vld [vmem:[%s455] sm:$0xf]
        %v558 = vld [vmem:[%s455 + $0x8] sm:$0xf]
        %v559 = vld [vmem:[%s462] sm:$0xf]
        %v560 = vld [vmem:[%s462 + $0x8] sm:$0xf]
        %v561 = vld [vmem:[%s469] sm:$0xf]
        %v562 = vld [vmem:[%s469 + $0x8] sm:$0xf]
        %v565 = vunpack.c.l.b16 %v557
        %v566 = vunpack.c.l.b16 %v558
        %v567 = vpack.c.b16 %v566, %v565
        %v571 = vunpack.c.l.b16 %v559
        %v572 = vunpack.c.l.b16 %v560
        %v573 = vpack.c.b16 %v572, %v571
        %575 = vmatpush.bf16.xpose.msra.mxu0 0
        %576 = vmatpush.bf16.xpose.msra.mxu0 0
        %577 = vmatpush.bf16.xpose.msra.mxu0 0
        %578 = vmatpush.bf16.xpose.msra.mxu0 0
        %579 = vmatpush.bf16.xpose.msra.mxu0 0
        %580 = vmatpush.bf16.xpose.msra.mxu0 0
        %581 = vmatpush.bf16.xpose.msra.mxu0 0
        %582 = vmatpush.bf16.xpose.msra.mxu0 %v573
        %583 = vmatmul.bf16.gmra.mxu0 %v567
        %v584 = vpop.f32.mrf.mxu0
        %v585 = vadd.f32 0.0, %v584
        %v586 = vpop.f32.mrf.mxu0
        %v587 = vadd.f32 0.0, %v586
        %588 = vdwg.mxu0
        %v589 = vld [vmem:[#allocation2] sm:$0xff]
        %v590 = vld [vmem:[#allocation2 + $0x8] sm:$0xff]
        %vm591 = vcmask 130048
        %v592 = vsel %vm591, %v585, -inf
        %593 = vmax.xlane.f32.xlu0 %v592
        %v594 = vpop.xlane.xlu0 %593
        %v595 = vsel %vm591, %v587, -inf
        %596 = vmax.xlane.f32.xlu0 %v595
        %v597 = vpop.xlane.xlu0 %596
        %v598 = vmax.f32 %v589, %v594
        %v599 = vmax.f32 %v590, %v597
        %v600 = vsub.f32 %v589, %v598
        %v601 = vsub.f32 %v590, %v599
        %v602 = vmul.f32 %v600, 1.442695
        %v603 = vpow.pop %v602
        %v604 = vmul.f32 %v601, 1.442695
        %v605 = vpow.pop %v604
        %607 = vset.pattern.permute.xlu0 0
        %608 = vperm.xlu0 %607, %v598
        %v609 = vpop.permute.xlu0 %608
        %612 = vset.pattern.permute.xlu0 0
        %613 = vperm.xlu0 %612, %v599
        %v614 = vpop.permute.xlu0 %613
        %v616 = vsub.f32 %v585, %v609
        %v617 = vsub.f32 %v587, %v614
        %v618 = vmul.f32 %v616, 1.442695
        %v619 = vpow.pop %v618
        %v620 = vmul.f32 %v617, 1.442695
        %v621 = vpow.pop %v620
        %v622 = vld [vmem:[#allocation3] sm:$0xff]
        %v623 = vld [vmem:[#allocation3 + $0x8] sm:$0xff]
        %v624 = vmul.f32 %v603, %v622
        %v625 = vmul.f32 %v605, %v623
        %v626 = vsel %vm591, %v619, 0.0
        %627 = vadd.xlane.f32.xlu0 %v626
        %v628 = vpop.xlane.xlu0 %627
        %v629 = vsel %vm591, %v621, 0.0
        %630 = vadd.xlane.f32.xlu0 %v629
        %v631 = vpop.xlane.xlu0 %630
        %v632 = vadd.f32 %v624, %v628
        %v633 = vadd.f32 %v625, %v631
        %vm634 = vcmask 7168
        %635 = vst.msk [vmem:[#allocation3] sm:$0xff] %vm634, %v632
        %636 = vst.msk [vmem:[#allocation3 + $0x8] sm:$0xff] %vm634, %v633
        %v637 = vld [vmem:[#allocation4] sm:$0xff]
        %v638 = vld [vmem:[#allocation4 + $0x8] sm:$0xff]
        %640 = vset.pattern.permute.xlu0 0
        %641 = vperm.xlu0 %640, %v603
        %v642 = vpop.permute.xlu0 %641
        %645 = vset.pattern.permute.xlu0 0
        %646 = vperm.xlu0 %645, %v605
        %v647 = vpop.permute.xlu0 %646
        %v649 = vmul.f32 %v642, %v637
        %v650 = vmul.f32 %v647, %v638
        %v651 = vpack.c.bf16 %v621, %v619
        %v654 = vunpack.c.l.b16 %v561
        %v655 = vunpack.c.l.b16 %v562
        %v656 = vpack.c.b16 %v655, %v654
        %v659 = vsel %vm591, %v651, 0
        %661 = vmatpush.bf16.msra.mxu0 0
        %662 = vmatpush.bf16.msra.mxu0 0
        %663 = vmatpush.bf16.msra.mxu0 0
        %664 = vmatpush.bf16.msra.mxu0 0
        %665 = vmatpush.bf16.msra.mxu0 0
        %666 = vmatpush.bf16.msra.mxu0 0
        %667 = vmatpush.bf16.msra.mxu0 0
        %668 = vmatpush.bf16.msra.mxu0 %v656
        %669 = vmatmul.bf16.gmra.mxu0 %v659
        %v670 = vpop.f32.mrf.mxu0
        %v671 = vadd.f32 0.0, %v670
        %v672 = vpop.f32.mrf.mxu0
        %v673 = vadd.f32 0.0, %v672
        %674 = vdwg.mxu0
        %v675 = vadd.f32 %v649, %v671
        %v676 = vadd.f32 %v650, %v673
        %677 = vst [vmem:[#allocation4] sm:$0xff] %v675
        %678 = vst [vmem:[#allocation4 + $0x8] sm:$0xff] %v676
        %679 = vst.msk [vmem:[#allocation2] sm:$0xff] %vm634, %v598
        %680 = vst.msk [vmem:[#allocation2 + $0x8] sm:$0xff] %vm634, %v599
        %v681 = vld [vmem:[%s455 + $0x4] sm:$0xf]
        %v682 = vld [vmem:[%s455 + $0xc] sm:$0xf]
        %v683 = vld [vmem:[%s462 + $0x4] sm:$0xf]
        %v684 = vld [vmem:[%s462 + $0xc] sm:$0xf]
        %v685 = vld [vmem:[%s469 + $0x4] sm:$0xf]
        %v686 = vld [vmem:[%s469 + $0xc] sm:$0xf]
        %v689 = vunpack.c.l.b16 %v681
        %v690 = vunpack.c.l.b16 %v682
        %v691 = vpack.c.b16 %v690, %v689
        %v695 = vunpack.c.l.b16 %v683
        %v696 = vunpack.c.l.b16 %v684
        %v697 = vpack.c.b16 %v696, %v695
        %699 = vmatpush.bf16.xpose.msra.mxu0 0
        %700 = vmatpush.bf16.xpose.msra.mxu0 0
        %701 = vmatpush.bf16.xpose.msra.mxu0 0
        %702 = vmatpush.bf16.xpose.msra.mxu0 0
        %703 = vmatpush.bf16.xpose.msra.mxu0 0
        %704 = vmatpush.bf16.xpose.msra.mxu0 0
        %705 = vmatpush.bf16.xpose.msra.mxu0 0
        %706 = vmatpush.bf16.xpose.msra.mxu0 %v697
        %707 = vmatmul.bf16.gmra.mxu0 %v691
        %v708 = vpop.f32.mrf.mxu0
        %v709 = vadd.f32 0.0, %v708
        %v710 = vpop.f32.mrf.mxu0
        %v711 = vadd.f32 0.0, %v710
        %712 = vdwg.mxu0
        %s713 = scalar_lea.vmem [#allocation2], 16
        %v714 = vld [vmem:[%s713] sm:$0xff]
        %v715 = vld [vmem:[%s713 + $0x8] sm:$0xff]
        %v716 = vsel %vm591, %v709, -inf
        %717 = vmax.xlane.f32.xlu0 %v716
        %v718 = vpop.xlane.xlu0 %717
        %v719 = vsel %vm591, %v711, -inf
        %720 = vmax.xlane.f32.xlu0 %v719
        %v721 = vpop.xlane.xlu0 %720
        %v722 = vmax.f32 %v714, %v718
        %v723 = vmax.f32 %v715, %v721
        %v724 = vsub.f32 %v714, %v722
        %v725 = vsub.f32 %v715, %v723
        %v726 = vmul.f32 %v724, 1.442695
        %v727 = vpow.pop %v726
        %v728 = vmul.f32 %v725, 1.442695
        %v729 = vpow.pop %v728
        %731 = vset.pattern.permute.xlu0 0
        %732 = vperm.xlu0 %731, %v722
        %v733 = vpop.permute.xlu0 %732
        %736 = vset.pattern.permute.xlu0 0
        %737 = vperm.xlu0 %736, %v723
        %v738 = vpop.permute.xlu0 %737
        %v740 = vsub.f32 %v709, %v733
        %v741 = vsub.f32 %v711, %v738
        %v742 = vmul.f32 %v740, 1.442695
        %v743 = vpow.pop %v742
        %v744 = vmul.f32 %v741, 1.442695
        %v745 = vpow.pop %v744
        %s746 = scalar_lea.vmem [#allocation3], 16
        %v747 = vld [vmem:[%s746] sm:$0xff]
        %v748 = vld [vmem:[%s746 + $0x8] sm:$0xff]
        %v749 = vmul.f32 %v727, %v747
        %v750 = vmul.f32 %v729, %v748
        %v751 = vsel %vm591, %v743, 0.0
        %752 = vadd.xlane.f32.xlu0 %v751
        %v753 = vpop.xlane.xlu0 %752
        %v754 = vsel %vm591, %v745, 0.0
        %755 = vadd.xlane.f32.xlu0 %v754
        %v756 = vpop.xlane.xlu0 %755
        %v757 = vadd.f32 %v749, %v753
        %v758 = vadd.f32 %v750, %v756
        %759 = vst.msk [vmem:[%s746] sm:$0xff] %vm634, %v757
        %760 = vst.msk [vmem:[%s746 + $0x8] sm:$0xff] %vm634, %v758
        %s761 = scalar_lea.vmem [#allocation4], 16
        %v762 = vld [vmem:[%s761] sm:$0xff]
        %v763 = vld [vmem:[%s761 + $0x8] sm:$0xff]
        %765 = vset.pattern.permute.xlu0 0
        %766 = vperm.xlu0 %765, %v727
        %v767 = vpop.permute.xlu0 %766
        %770 = vset.pattern.permute.xlu0 0
        %771 = vperm.xlu0 %770, %v729
        %v772 = vpop.permute.xlu0 %771
        %v774 = vmul.f32 %v767, %v762
        %v775 = vmul.f32 %v772, %v763
        %v776 = vpack.c.bf16 %v745, %v743
        %v779 = vunpack.c.l.b16 %v685
        %v780 = vunpack.c.l.b16 %v686
        %v781 = vpack.c.b16 %v780, %v779
        %v784 = vsel %vm591, %v776, 0
        %786 = vmatpush.bf16.msra.mxu0 0
        %787 = vmatpush.bf16.msra.mxu0 0
        %788 = vmatpush.bf16.msra.mxu0 0
        %789 = vmatpush.bf16.msra.mxu0 0
        %790 = vmatpush.bf16.msra.mxu0 0
        %791 = vmatpush.bf16.msra.mxu0 0
        %792 = vmatpush.bf16.msra.mxu0 0
        %793 = vmatpush.bf16.msra.mxu0 %v781
        %794 = vmatmul.bf16.gmra.mxu0 %v784
        %v795 = vpop.f32.mrf.mxu0
        %v796 = vadd.f32 0.0, %v795
        %v797 = vpop.f32.mrf.mxu0
        %v798 = vadd.f32 0.0, %v797
        %799 = vdwg.mxu0
        %v800 = vadd.f32 %v774, %v796
        %v801 = vadd.f32 %v775, %v798
        %802 = vst [vmem:[%s761] sm:$0xff] %v800
        %803 = vst [vmem:[%s761 + $0x8] sm:$0xff] %v801
        %804 = vst.msk [vmem:[%s713] sm:$0xff] %vm634, %v722
        %805 = vst.msk [vmem:[%s713 + $0x8] sm:$0xff] %vm634, %v723
        // Predicated region
        $region175: #{forward.13} parent=153 // pred_check
          %p806 = pneg %p540
        $region176: #{forward.13} parent=153 // pred_check_branch
          %808 = sbr.rel (%p806) target = $region178
        $region177: #{forward.13} parent=153 // pred_region
          %v809 = vld [vmem:[%s5] sm:$0x3]
          %v810 = vunpack.c.l.bf16 %v809
          %v811 = vld [vmem:[%s530] sm:$0xff]
          %v812 = vld [vmem:[%s530 + $0x8] sm:$0xff]
          %v813 = vunpack.c.l.bf16 %v811
          %v814 = vunpack.c.h.bf16 %v811
          %v815 = vunpack.c.l.bf16 %v812
          %v816 = vunpack.c.h.bf16 %v812
          %v818 = vperm.slane %v810, 0
          %v819 = vperm.slane %v810, 2
          %v822 = vperm.slane %v818, 0
          %v823 = vperm.slane %v819, 0
          %v824 = vadd.f32 %v822, %v813
          %v825 = vadd.f32 %v823, %v814
          %v826 = vadd.f32 %v822, %v815
          %v827 = vadd.f32 %v823, %v816
          %v828 = vld [vmem:[#allocation4] sm:$0xff]
          %v829 = vld [vmem:[#allocation4 + $0x8] sm:$0xff]
          %v830 = vld [vmem:[#allocation3] sm:$0xff]
          %v831 = vld [vmem:[#allocation3 + $0x8] sm:$0xff]
          %v832 = vrcp.pop %v830
          %v833 = vrcp.pop %v831
          %835 = vset.pattern.permute.xlu0 0
          %836 = vperm.xlu0 %835, %v832
          %v837 = vpop.permute.xlu0 %836
          %840 = vset.pattern.permute.xlu0 0
          %841 = vperm.xlu0 %840, %v833
          %v842 = vpop.permute.xlu0 %841
          %v844 = vmul.f32 %v828, %v837
          %v845 = vmul.f32 %v829, %v842
          %v846 = vpack.c.bf16 %v845, %v844
          %v847 = vld [vmem:[#allocation8] sm:$0xff]
          %v848 = vld [vmem:[#allocation8 + $0x8] sm:$0xff]
          %v849 = vld [vmem:[#allocation8 + $0x10] sm:$0xff]
          %v850 = vld [vmem:[#allocation8 + $0x18] sm:$0xff]
          %v851 = vld [vmem:[#allocation8 + $0x20] sm:$0xff]
          %v852 = vld [vmem:[#allocation8 + $0x28] sm:$0xff]
          %v853 = vld [vmem:[#allocation8 + $0x30] sm:$0xff]
          %v854 = vld [vmem:[#allocation8 + $0x38] sm:$0xff]
          %v855 = vld [vmem:[#allocation8 + $0x40] sm:$0xff]
          %v856 = vld [vmem:[#allocation8 + $0x48] sm:$0xff]
          %v857 = vld [vmem:[#allocation8 + $0x50] sm:$0xff]
          %v858 = vld [vmem:[#allocation8 + $0x58] sm:$0xff]
          %v859 = vld [vmem:[#allocation8 + $0x60] sm:$0xff]
          %v860 = vld [vmem:[#allocation8 + $0x68] sm:$0xff]
          %v861 = vld [vmem:[#allocation8 + $0x70] sm:$0xff]
          %v862 = vld [vmem:[#allocation8 + $0x78] sm:$0xff]
          %v879 = vunpack.c.l.b16 %v847
          %v880 = vunpack.c.h.b16 %v847
          %v881 = vunpack.c.l.b16 %v848
          %v882 = vunpack.c.h.b16 %v848
          %v883 = vunpack.c.l.b16 %v849
          %v884 = vunpack.c.h.b16 %v849
          %v885 = vunpack.c.l.b16 %v850
          %v886 = vunpack.c.h.b16 %v850
          %v887 = vunpack.c.l.b16 %v851
          %v888 = vunpack.c.h.b16 %v851
          %v889 = vunpack.c.l.b16 %v852
          %v890 = vunpack.c.h.b16 %v852
          %v891 = vunpack.c.l.b16 %v853
          %v892 = vunpack.c.h.b16 %v853
          %v893 = vunpack.c.l.b16 %v854
          %v894 = vunpack.c.h.b16 %v854
          %v895 = vunpack.c.l.b16 %v855
          %v896 = vunpack.c.h.b16 %v855
          %v897 = vunpack.c.l.b16 %v856
          %v898 = vunpack.c.h.b16 %v856
          %v899 = vunpack.c.l.b16 %v857
          %v900 = vunpack.c.h.b16 %v857
          %v901 = vunpack.c.l.b16 %v858
          %v902 = vunpack.c.h.b16 %v858
          %v903 = vunpack.c.l.b16 %v859
          %v904 = vunpack.c.h.b16 %v859
          %v905 = vunpack.c.l.b16 %v860
          %v906 = vunpack.c.h.b16 %v860
          %v907 = vunpack.c.l.b16 %v861
          %v908 = vunpack.c.h.b16 %v861
          %v909 = vunpack.c.l.b16 %v862
          %v910 = vunpack.c.h.b16 %v862
          %v911 = vpack.c.b16 %v881, %v879
          %v912 = vpack.c.b16 %v882, %v880
          %v913 = vpack.c.b16 %v885, %v883
          %v914 = vpack.c.b16 %v886, %v884
          %v915 = vpack.c.b16 %v889, %v887
          %v916 = vpack.c.b16 %v890, %v888
          %v917 = vpack.c.b16 %v893, %v891
          %v918 = vpack.c.b16 %v894, %v892
          %v919 = vpack.c.b16 %v897, %v895
          %v920 = vpack.c.b16 %v898, %v896
          %v921 = vpack.c.b16 %v901, %v899
          %v922 = vpack.c.b16 %v902, %v900
          %v923 = vpack.c.b16 %v905, %v903
          %v924 = vpack.c.b16 %v906, %v904
          %v925 = vpack.c.b16 %v909, %v907
          %v926 = vpack.c.b16 %v910, %v908
          %943 = vmatpush.bf16.msra.mxu0 %v925
          %944 = vmatpush.bf16.msra.mxu0 %v923
          %945 = vmatpush.bf16.msra.mxu0 %v921
          %946 = vmatpush.bf16.msra.mxu0 %v919
          %947 = vmatpush.bf16.msra.mxu0 %v917
          %948 = vmatpush.bf16.msra.mxu0 %v915
          %949 = vmatpush.bf16.msra.mxu0 %v913
          %950 = vmatpush.bf16.msra.mxu0 %v911
          %951 = vmatmul.bf16.gmra.mxu0 %v846
          %v952 = vpop.f32.mrf.mxu0
          %v953 = vadd.f32 0.0, %v952
          %v954 = vpop.f32.mrf.mxu0
          %v955 = vadd.f32 0.0, %v954
          %956 = vdwg.mxu0
          %957 = vmatpush.bf16.msra.mxu0 %v926
          %958 = vmatpush.bf16.msra.mxu0 %v924
          %959 = vmatpush.bf16.msra.mxu0 %v922
          %960 = vmatpush.bf16.msra.mxu0 %v920
          %961 = vmatpush.bf16.msra.mxu0 %v918
          %962 = vmatpush.bf16.msra.mxu0 %v916
          %963 = vmatpush.bf16.msra.mxu0 %v914
          %964 = vmatpush.bf16.msra.mxu0 %v912
          %965 = vmatmul.bf16.gmra.mxu0 %v846
          %v966 = vpop.f32.mrf.mxu0
          %v967 = vadd.f32 0.0, %v966
          %v968 = vpop.f32.mrf.mxu0
          %v969 = vadd.f32 0.0, %v968
          %970 = vdwg.mxu0
          %v971 = vadd.f32 %v824, %v953
          %v972 = vadd.f32 %v825, %v967
          %v973 = vadd.f32 %v826, %v955
          %v974 = vadd.f32 %v827, %v969
          %v975 = vld [vmem:[%s761] sm:$0xff]
          %v976 = vld [vmem:[%s761 + $0x8] sm:$0xff]
          %v977 = vld [vmem:[%s746] sm:$0xff]
          %v978 = vld [vmem:[%s746 + $0x8] sm:$0xff]
          %v979 = vrcp.pop %v977
          %v980 = vrcp.pop %v978
          %982 = vset.pattern.permute.xlu0 0
          %983 = vperm.xlu0 %982, %v979
          %v984 = vpop.permute.xlu0 %983
          %987 = vset.pattern.permute.xlu0 0
          %988 = vperm.xlu0 %987, %v980
          %v989 = vpop.permute.xlu0 %988
          %v991 = vmul.f32 %v975, %v984
          %v992 = vmul.f32 %v976, %v989
          %v993 = vpack.c.bf16 %v992, %v991
          %v994 = vld [vmem:[#allocation8 + $0x80] sm:$0xff]
          %v995 = vld [vmem:[#allocation8 + $0x88] sm:$0xff]
          %v996 = vld [vmem:[#allocation8 + $0x90] sm:$0xff]
          %v997 = vld [vmem:[#allocation8 + $0x98] sm:$0xff]
          %v998 = vld [vmem:[#allocation8 + $0xa0] sm:$0xff]
          %v999 = vld [vmem:[#allocation8 + $0xa8] sm:$0xff]
          %v1000 = vld [vmem:[#allocation8 + $0xb0] sm:$0xff]
          %v1001 = vld [vmem:[#allocation8 + $0xb8] sm:$0xff]
          %v1002 = vld [vmem:[#allocation8 + $0xc0] sm:$0xff]
          %v1003 = vld [vmem:[#allocation8 + $0xc8] sm:$0xff]
          %v1004 = vld [vmem:[#allocation8 + $0xd0] sm:$0xff]
          %v1005 = vld [vmem:[#allocation8 + $0xd8] sm:$0xff]
          %v1006 = vld [vmem:[#allocation8 + $0xe0] sm:$0xff]
          %v1007 = vld [vmem:[#allocation8 + $0xe8] sm:$0xff]
          %v1008 = vld [vmem:[#allocation8 + $0xf0] sm:$0xff]
          %v1009 = vld [vmem:[#allocation8 + $0xf8] sm:$0xff]
          %v1026 = vunpack.c.l.b16 %v994
          %v1027 = vunpack.c.h.b16 %v994
          %v1028 = vunpack.c.l.b16 %v995
          %v1029 = vunpack.c.h.b16 %v995
          %v1030 = vunpack.c.l.b16 %v996
          %v1031 = vunpack.c.h.b16 %v996
          %v1032 = vunpack.c.l.b16 %v997
          %v1033 = vunpack.c.h.b16 %v997
          %v1034 = vunpack.c.l.b16 %v998
          %v1035 = vunpack.c.h.b16 %v998
          %v1036 = vunpack.c.l.b16 %v999
          %v1037 = vunpack.c.h.b16 %v999
          %v1038 = vunpack.c.l.b16 %v1000
          %v1039 = vunpack.c.h.b16 %v1000
          %v1040 = vunpack.c.l.b16 %v1001
          %v1041 = vunpack.c.h.b16 %v1001
          %v1042 = vunpack.c.l.b16 %v1002
          %v1043 = vunpack.c.h.b16 %v1002
          %v1044 = vunpack.c.l.b16 %v1003
          %v1045 = vunpack.c.h.b16 %v1003
          %v1046 = vunpack.c.l.b16 %v1004
          %v1047 = vunpack.c.h.b16 %v1004
          %v1048 = vunpack.c.l.b16 %v1005
          %v1049 = vunpack.c.h.b16 %v1005
          %v1050 = vunpack.c.l.b16 %v1006
          %v1051 = vunpack.c.h.b16 %v1006
          %v1052 = vunpack.c.l.b16 %v1007
          %v1053 = vunpack.c.h.b16 %v1007
          %v1054 = vunpack.c.l.b16 %v1008
          %v1055 = vunpack.c.h.b16 %v1008
          %v1056 = vunpack.c.l.b16 %v1009
          %v1057 = vunpack.c.h.b16 %v1009
          %v1058 = vpack.c.b16 %v1028, %v1026
          %v1059 = vpack.c.b16 %v1029, %v1027
          %v1060 = vpack.c.b16 %v1032, %v1030
          %v1061 = vpack.c.b16 %v1033, %v1031
          %v1062 = vpack.c.b16 %v1036, %v1034
          %v1063 = vpack.c.b16 %v1037, %v1035
          %v1064 = vpack.c.b16 %v1040, %v1038
          %v1065 = vpack.c.b16 %v1041, %v1039
          %v1066 = vpack.c.b16 %v1044, %v1042
          %v1067 = vpack.c.b16 %v1045, %v1043
          %v1068 = vpack.c.b16 %v1048, %v1046
          %v1069 = vpack.c.b16 %v1049, %v1047
          %v1070 = vpack.c.b16 %v1052, %v1050
          %v1071 = vpack.c.b16 %v1053, %v1051
          %v1072 = vpack.c.b16 %v1056, %v1054
          %v1073 = vpack.c.b16 %v1057, %v1055
          %1090 = vmatpush.bf16.msra.mxu0 %v1072
          %1091 = vmatpush.bf16.msra.mxu0 %v1070
          %1092 = vmatpush.bf16.msra.mxu0 %v1068
          %1093 = vmatpush.bf16.msra.mxu0 %v1066
          %1094 = vmatpush.bf16.msra.mxu0 %v1064
          %1095 = vmatpush.bf16.msra.mxu0 %v1062
          %1096 = vmatpush.bf16.msra.mxu0 %v1060
          %1097 = vmatpush.bf16.msra.mxu0 %v1058
          %1098 = vmatmul.bf16.gmra.mxu0 %v993
          %v1099 = vpop.f32.mrf.mxu0
          %v1100 = vadd.f32 0.0, %v1099
          %v1101 = vpop.f32.mrf.mxu0
          %v1102 = vadd.f32 0.0, %v1101
          %1103 = vdwg.mxu0
          %1104 = vmatpush.bf16.msra.mxu0 %v1073
          %1105 = vmatpush.bf16.msra.mxu0 %v1071
          %1106 = vmatpush.bf16.msra.mxu0 %v1069
          %1107 = vmatpush.bf16.msra.mxu0 %v1067
          %1108 = vmatpush.bf16.msra.mxu0 %v1065
          %1109 = vmatpush.bf16.msra.mxu0 %v1063
          %1110 = vmatpush.bf16.msra.mxu0 %v1061
          %1111 = vmatpush.bf16.msra.mxu0 %v1059
          %1112 = vmatmul.bf16.gmra.mxu0 %v993
          %v1113 = vpop.f32.mrf.mxu0
          %v1114 = vadd.f32 0.0, %v1113
          %v1115 = vpop.f32.mrf.mxu0
          %v1116 = vadd.f32 0.0, %v1115
          %1117 = vdwg.mxu0
          %v1118 = vadd.f32 %v971, %v1100
          %v1119 = vadd.f32 %v972, %v1114
          %v1120 = vadd.f32 %v973, %v1102
          %v1121 = vadd.f32 %v974, %v1116
          %v1122 = vld [vmem:[%s6] sm:$0x3]
          %v1123 = vunpack.c.l.bf16 %v1122
          %v1124 = vld [vmem:[%s7] sm:$0x3]
          %v1125 = vunpack.c.l.bf16 %v1124
          %v1126 = vadd.f32 %v1118, %v1119
          %1127 = vadd.xlane.f32.xlu0 %v1126
          %v1128 = vpop.xlane.xlu0 %1127
          %v1129 = vadd.f32 %v1120, %v1121
          %1130 = vadd.xlane.f32.xlu0 %v1129
          %v1131 = vpop.xlane.xlu0 %1130
          %v1132 = vrcp.pop 256.0
          %v1133 = vmul.f32 256.0, %v1132
          %v1134 = vsub.f32 1.0, %v1133
          %v1135 = vmul.f32 %v1132, %v1134
          %v1136 = vadd.f32 %v1132, %v1135
          %vm1137 = vweird.f32 %v1132
          %v1138 = vsel %vm1137, %v1132, %v1136
          %v1139 = vmul.f32 %v1128, %v1138
          %v1140 = vmul.f32 %v1131, %v1138
          %v1141 = vsub.f32 %v1118, %v1139
          %v1142 = vsub.f32 %v1119, %v1139
          %v1143 = vsub.f32 %v1120, %v1140
          %v1144 = vsub.f32 %v1121, %v1140
          %v1145 = vmul.f32 %v1141, %v1141
          %v1146 = vmul.f32 %v1142, %v1142
          %v1147 = vmul.f32 %v1143, %v1143
          %v1148 = vmul.f32 %v1144, %v1144
          %v1149 = vadd.f32 %v1145, %v1146
          %1150 = vadd.xlane.f32.xlu0 %v1149
          %v1151 = vpop.xlane.xlu0 %1150
          %v1152 = vadd.f32 %v1147, %v1148
          %1153 = vadd.xlane.f32.xlu0 %v1152
          %v1154 = vpop.xlane.xlu0 %1153
          %v1155 = vmul.f32 %v1151, %v1138
          %v1156 = vmul.f32 %v1154, %v1138
          %v1157 = vadd.f32 %v1155, 1e-12
          %v1158 = vadd.f32 %v1156, 1e-12
          %v1159 = vrsqrt.pop %v1157
          %v1160 = vmul.f32 %v1159, %v1157
          %v1161 = vmul.f32 %v1160, %v1159
          %v1162 = vmul.f32 0.5, %v1161
          %v1163 = vsub.f32 1.5, %v1162
          %v1164 = vmul.f32 %v1159, %v1163
          %vm1165 = vweird.f32 %v1157
          %vm1166 = vweird.f32 %v1159
          %vm1167 = vmor %vm1165, %vm1166
          %v1168 = vsel %vm1167, %v1159, %v1164
          %v1169 = vrsqrt.pop %v1158
          %v1170 = vmul.f32 %v1169, %v1158
          %v1171 = vmul.f32 %v1170, %v1169
          %v1172 = vmul.f32 0.5, %v1171
          %v1173 = vsub.f32 1.5, %v1172
          %v1174 = vmul.f32 %v1169, %v1173
          %vm1175 = vweird.f32 %v1158
          %vm1176 = vweird.f32 %v1169
          %vm1177 = vmor %vm1175, %vm1176
          %v1178 = vsel %vm1177, %v1169, %v1174
          %v1179 = vmul.f32 %v1141, %v1168
          %v1180 = vmul.f32 %v1142, %v1168
          %v1181 = vmul.f32 %v1143, %v1178
          %v1182 = vmul.f32 %v1144, %v1178
          %v1184 = vperm.slane %v1123, 0
          %v1185 = vperm.slane %v1123, 2
          %v1188 = vperm.slane %v1184, 0
          %v1189 = vperm.slane %v1185, 0
          %v1190 = vmul.f32 %v1179, %v1188
          %v1191 = vmul.f32 %v1180, %v1189
          %v1192 = vmul.f32 %v1181, %v1188
          %v1193 = vmul.f32 %v1182, %v1189
          %v1195 = vperm.slane %v1125, 0
          %v1196 = vperm.slane %v1125, 2
          %v1199 = vperm.slane %v1195, 0
          %v1200 = vperm.slane %v1196, 0
          %v1201 = vadd.f32 %v1190, %v1199
          %v1202 = vadd.f32 %v1191, %v1200
          %v1203 = vadd.f32 %v1192, %v1199
          %v1204 = vadd.f32 %v1193, %v1200
          %v1205 = vpack.c.bf16 %v1202, %v1201
          %v1206 = vpack.c.bf16 %v1204, %v1203
          %1207 = vst [vmem:[%s537] sm:$0xff] %v1205
          %1208 = vst [vmem:[%s537 + $0x8] sm:$0xff] %v1206
        $region178: #{forward.13} parent=153 // pred_fallthru
          _
        %s1209 = smul.u32 2, %s24
        %p1210 = scmp.lt.s32.totalorder %s1209, 3
        %s1211 = scalar_select %p1210, %s1209, 3
        %s1212 = smul.addr %s1211, 2
        %s1213 = smul.addr %s1212, 4
        %s1214 = scalar_lea.vmem %s8, %s1213
        // Predicated region
        $region179: #{forward.13} parent=153 // pred_check
          %p1215 = pneg %p242
        $region180: #{forward.13} parent=153 // pred_check_branch
          %1217 = sbr.rel (%p1215) target = $region182
        $region181: #{forward.13} parent=153 // pred_region
          %s1218 = smul.u32 2, %s24
        $region182: #{forward.13} parent=153 // pred_fallthru
          _
      $region154: #{forward.13} parent=5 // pred_fallthru
        _
      %p1219 = scmp.le.s32.totalorder 2, %s15
      // Predicated region
      $region183: #{forward.13} parent=5 // pred_check
        %p1220 = pneg %p1219
      $region184: #{forward.13} parent=5 // pred_check_branch
        %1222 = sbr.rel (%p1220) target = $region186
      $region185: #{forward.13} parent=5 // pred_region
        %s1223 = ssub.s32 %s15, 2
        // Predicated region
        $region187: #{forward.13} parent=185 // pred_check
          %p1224 = pneg %p248
        $region188: #{forward.13} parent=185 // pred_check_branch
          %1226 = sbr.rel (%p1224) target = $region190
        $region189: #{forward.13} parent=185 // pred_region
          %s1227 = smul.u32 2, %s26
          %p1228 = scmp.lt.s32.totalorder %s1227, 3
          %s1229 = scalar_select %p1228, %s1227, 3
          %s1230 = smul.addr %s1229, 2
          %s1231 = smul.addr %s1230, 4
          %s1232 = scalar_lea.vmem %s8, %s1231
        $region190: #{forward.13} parent=185 // pred_fallthru
          _
      $region186: #{forward.13} parent=5 // pred_fallthru
        _
    $region6: #{forward.13} parent=1 // loop_footer
      %s19 = sadd.s32 1, %s15
    $region7: #{forward.13} parent=1 // loop_footer_branch
      %14 = sbr.rel target = $region3
    $region8: #{forward.13} parent=1 // loop_exit
      _
    %1233 = vsyncpa [#allocation9], 1
    %s1234 = scalar_lea.sflag [#allocation9], 1
    %1235 = vsyncpa %s1234, 1

</llo_original>
